<compile_context>
chip_gen: v5e
topology: v5e:2x2
jax: 0.10.0
libtpu: 0.0.40
codegen_flags: <defaults>
</compile_context>

<pallas_src>
import jax
import jax.numpy as jnp
from jax.experimental import pallas as pl
from jax.experimental.pallas import tpu as pltpu

TARGET_LENGTH = 512  # reduced from 8192 for a small, runnable example


# ----------------------------------------------------------------------------
# Kernel 1: fused conv1 -> ReLU -> pool -> conv2 -> ReLU -> pool
#           (one batch element per grid step, length-major activations)
# ----------------------------------------------------------------------------
def conv_stack_kernel(x_ref, w1_ref, b1_ref, w2_ref, b2_ref, o_ref,
                      xp_ref, y1_ref, h1p_ref, y2_ref):
    # x_ref : (1, L, Cin)   NWC input block (length in sublanes, channels in lanes)
    # w1_ref: (3, Cin, C1)  conv1 taps, b1_ref: (1, C1)
    # w2_ref: (3, C1, C2)   conv2 taps, b2_ref: (1, C2)
    # o_ref : (1, L//4, C2) length-major pooled conv2 output
    # scratch:
    #   xp_ref : (L+2,    Cin) zero-padded conv1 input
    #   y1_ref : (L,      C1 ) pre-pool conv1 activations
    #   h1p_ref: (L//2+2, C1 ) zero-padded pooled conv1 output
    #   y2_ref : (L//2,   C2 ) pre-pool conv2 activations
    L = x_ref.shape[1]
    Cin = x_ref.shape[2]
    C1 = w1_ref.shape[2]
    C2 = w2_ref.shape[2]
    Lh, Lq = L // 2, L // 4

    # ---- zero-padded (L+2, Cin) input for the k=3 halo ----------------------
    xp_ref[pl.ds(0, 1), :] = jnp.zeros((1, Cin), jnp.float32)
    xp_ref[pl.ds(L + 1, 1), :] = jnp.zeros((1, Cin), jnp.float32)
    xp_ref[pl.ds(1, L), :] = x_ref[0]

    # ---- conv1 (3 shifted MXU matmuls) + bias + ReLU -------------------------
    acc1 = jnp.zeros((L, C1), jnp.float32)
    for k in range(3):
        acc1 = acc1 + jnp.dot(xp_ref[pl.ds(k, L), :], w1_ref[k],
                              preferred_element_type=jnp.float32)
    y1_ref[...] = jnp.maximum(acc1 + b1_ref[...], 0.0)

    # ---- MaxPool1d(2, 2) via stride-2 sublane reads + halo for conv2 ---------
    h1 = jnp.maximum(y1_ref[pl.ds(0, Lh, 2), :],
                     y1_ref[pl.ds(1, Lh, 2), :])             # (Lh, C1)
    h1p_ref[pl.ds(0, 1), :] = jnp.zeros((1, C1), jnp.float32)
    h1p_ref[pl.ds(Lh + 1, 1), :] = jnp.zeros((1, C1), jnp.float32)
    h1p_ref[pl.ds(1, Lh), :] = h1

    # ---- conv2 (3 shifted MXU matmuls) + bias + ReLU --------------------------
    acc2 = jnp.zeros((Lh, C2), jnp.float32)
    for k in range(3):
        acc2 = acc2 + jnp.dot(h1p_ref[pl.ds(k, Lh), :], w2_ref[k],
                              preferred_element_type=jnp.float32)
    y2_ref[...] = jnp.maximum(acc2 + b2_ref[...], 0.0)

    # ---- MaxPool1d(2, 2); keep length-major (no in-kernel transpose) ---------
    o_ref[0] = jnp.maximum(y2_ref[pl.ds(0, Lq, 2), :],
                           y2_ref[pl.ds(1, Lq, 2), :])       # (Lq, C2)


def conv_stack(x_nwc, w1, b1, w2, b2):
    # x_nwc: (B, L, Cin); w1: (3, Cin, C1); w2: (3, C1, C2)
    B, L, Cin = x_nwc.shape
    C1 = w1.shape[2]
    C2 = w2.shape[2]
    Lh, Lq = L // 2, L // 4
    return pl.pallas_call(
        conv_stack_kernel,
        out_shape=jax.ShapeDtypeStruct((B, Lq, C2), jnp.float32),
        grid_spec=pltpu.PrefetchScalarGridSpec(
            num_scalar_prefetch=0,
            grid=(B,),
            in_specs=[
                pl.BlockSpec((1, L, Cin), lambda b: (b, 0, 0)),
                pl.BlockSpec((3, Cin, C1), lambda b: (0, 0, 0)),
                pl.BlockSpec((1, C1), lambda b: (0, 0)),
                pl.BlockSpec((3, C1, C2), lambda b: (0, 0, 0)),
                pl.BlockSpec((1, C2), lambda b: (0, 0)),
            ],
            out_specs=pl.BlockSpec((1, Lq, C2), lambda b: (b, 0, 0)),
            scratch_shapes=[
                pltpu.VMEM((L + 2, Cin), jnp.float32),
                pltpu.VMEM((L, C1), jnp.float32),
                pltpu.VMEM((Lh + 2, C1), jnp.float32),
                pltpu.VMEM((Lh, C2), jnp.float32),
            ],
        ),
        compiler_params=pltpu.CompilerParams(
            dimension_semantics=("parallel",)),
    )(x_nwc, w1, b1.reshape(1, C1), w2, b2.reshape(1, C2))


# ----------------------------------------------------------------------------
# Kernel 2: fused fc1 (K-tiled streaming) + ReLU + fc2
# ----------------------------------------------------------------------------
def mlp_kernel(x_ref, w1_ref, b1_ref, w2_ref, b2_ref, o_ref, acc_ref):
    # x_ref: (B, tk), w1_ref: (tk, H), b1_ref: (1, H)
    # w2_ref: (H, 1), b2_ref: (1, 1), o_ref: (B, 1), acc_ref: (B, H) f32
    k = pl.program_id(0)

    @pl.when(k == 0)
    def _():
        acc_ref[...] = jnp.zeros_like(acc_ref)

    acc_ref[...] += jnp.dot(x_ref[...], w1_ref[...],
                            preferred_element_type=jnp.float32)

    @pl.when(k == pl.num_programs(0) - 1)
    def _():
        h = jnp.maximum(acc_ref[...] + b1_ref[...], 0.0)      # ReLU(fc1)
        o_ref[...] = jnp.dot(h, w2_ref[...],
                             preferred_element_type=jnp.float32) + b2_ref[...]


def mlp(x_flat, w1, b1, w2, b2, tk=2048):
    B, K = x_flat.shape
    H = w1.shape[1]
    tk = min(tk, K)
    while K % tk:           # pick a divisor of K -> no partial last block
        tk //= 2
    return pl.pallas_call(
        mlp_kernel,
        out_shape=jax.ShapeDtypeStruct((B, 1), jnp.float32),
        grid_spec=pltpu.PrefetchScalarGridSpec(
            num_scalar_prefetch=0,
            grid=(K // tk,),
            in_specs=[
                pl.BlockSpec((B, tk), lambda k: (0, k)),
                pl.BlockSpec((tk, H), lambda k: (k, 0)),
                pl.BlockSpec((1, H), lambda k: (0, 0)),
                pl.BlockSpec((H, 1), lambda k: (0, 0)),
                pl.BlockSpec((1, 1), lambda k: (0, 0)),
            ],
            out_specs=pl.BlockSpec((B, 1), lambda k: (0, 0)),
            scratch_shapes=[pltpu.VMEM((B, H), jnp.float32)],
        ),
        compiler_params=pltpu.CompilerParams(
            dimension_semantics=("arbitrary",)),
    )(x_flat, w1, b1.reshape(1, H), w2, b2.reshape(1, 1))


# ----------------------------------------------------------------------------
# Parameter prep (one-time, outside the jitted forward)
# ----------------------------------------------------------------------------
def prepare_params(params, target_length):
    """Permute fc1 rows from PyTorch channel-major flatten order (c*Lq + l) to
    the kernel's length-major flatten order (l*C2 + c)."""
    Lq = target_length // 4
    C2 = params["conv2_w"].shape[2]
    H = params["fc1_w"].shape[1]
    p = dict(params)
    p["fc1_w"] = (params["fc1_w"].reshape(C2, Lq, H)
                  .transpose(1, 0, 2).reshape(C2 * Lq, H))
    return p


# ----------------------------------------------------------------------------
# Full forward pass
# ----------------------------------------------------------------------------
@jax.jit
def simple_cnn_forward(x_ncw, kparams):
    x_nwc = jnp.transpose(x_ncw, (0, 2, 1))                   # tiny input transpose
    h = conv_stack(x_nwc, kparams["conv1_w"], kparams["conv1_b"],
                   kparams["conv2_w"], kparams["conv2_b"])    # (B, L/4, 64)
    flat = h.reshape(h.shape[0], -1)                          # free reshape (l*C2+c)
    return mlp(flat, kparams["fc1_w"], kparams["fc1_b"],
               kparams["fc2_w"], kparams["fc2_b"])            # (B, 1)


# Pure-JAX reference in PyTorch conventions (correctness check only)
def reference_forward(x_ncw, params):
    hi = jax.lax.Precision.HIGHEST

    def conv1d(x, w_kio, b):
        w = jnp.transpose(w_kio, (2, 1, 0))                   # (K,Cin,Cout)->OIW
        y = jax.lax.conv_general_dilated(
            x, w, window_strides=(1,), padding=((1, 1),),
            dimension_numbers=("NCW", "OIW", "NCW"), precision=hi)
        return y + b[None, :, None]

    def pool(x):
        B, C, W = x.shape
        return jnp.max(x.reshape(B, C, W // 2, 2), axis=-1)

    h = pool(jnp.maximum(conv1d(x_ncw, params["conv1_w"], params["conv1_b"]), 0.0))
    h = pool(jnp.maximum(conv1d(h, params["conv2_w"], params["conv2_b"]), 0.0))
    flat = h.reshape(h.shape[0], -1)                          # channel-major (c*Lq+l)
    h = jnp.maximum(jnp.dot(flat, params["fc1_w"], precision=hi) + params["fc1_b"], 0.0)
    return jnp.dot(h, params["fc2_w"], precision=hi) + params["fc2_b"]


def init_params(key, target_length):
    feat = 64 * (target_length // 4)
    ks = jax.random.split(key, 8)
    s = 0.05
    return {
        # conv weights stored as (K, Cin, Cout); PyTorch uses (Cout, Cin, K).
        "conv1_w": s * jax.random.normal(ks[0], (3, 3, 32), jnp.float32),
        "conv1_b": s * jax.random.normal(ks[1], (32,), jnp.float32),
        "conv2_w": s * jax.random.normal(ks[2], (3, 32, 64), jnp.float32),
        "conv2_b": s * jax.random.normal(ks[3], (64,), jnp.float32),
        # fc weights stored transposed vs torch: (in_features, out_features),
        # rows in PyTorch channel-major flatten order.
        "fc1_w": s * jax.random.normal(ks[4], (feat, 128), jnp.float32),
        "fc1_b": s * jax.random.normal(ks[5], (128,), jnp.float32),
        "fc2_w": s * jax.random.normal(ks[6], (128, 1), jnp.float32),
        "fc2_b": s * jax.random.normal(ks[7], (1,), jnp.float32),
    }


if __name__ == "__main__":
    key = jax.random.PRNGKey(0)
    kx, kp = jax.random.split(key)
    B = 2
    x = jax.random.normal(kx, (B, 3, TARGET_LENGTH), jnp.float32)  # NCW, like PyTorch
    params = init_params(kp, TARGET_LENGTH)
    kparams = prepare_params(params, TARGET_LENGTH)                # one-time weight permute

    out = jax.block_until_ready(simple_cnn_forward(x, kparams))
    assert out.shape == (B, 1), out.shape

    ref = reference_forward(x, params)
    assert jnp.allclose(out, ref, rtol=1e-3, atol=1e-3), (out, ref)

    print("KERNEL_OK")
</pallas_src>

<mosaic_0001>
module attributes {stable_mosaic.version = 11 : i64} {
  func.func @conv_stack_kernel(%arg0: i32, %arg1: memref<1x512x3xf32, #tpu.memory_space<vmem>>, %arg2: memref<3x3x32xf32, #tpu.memory_space<vmem>>, %arg3: memref<1x32xf32, #tpu.memory_space<vmem>>, %arg4: memref<3x32x64xf32, #tpu.memory_space<vmem>>, %arg5: memref<1x64xf32, #tpu.memory_space<vmem>>, %arg6: memref<1x128x64xf32, #tpu.memory_space<vmem>>, %arg7: memref<514x3xf32, #tpu.memory_space<vmem>>, %arg8: memref<512x32xf32, #tpu.memory_space<vmem>>, %arg9: memref<258x32xf32, #tpu.memory_space<vmem>>, %arg10: memref<256x64xf32, #tpu.memory_space<vmem>>) attributes {dimension_semantics = [#tpu.dimension_semantics<parallel>], iteration_bounds = array<i64: 2>, scalar_prefetch = 0 : i64, scratch_operands = 4 : i64, tpu.core_type = #tpu.core_type<tc>, window_params = [{transform_indices = @transform_0, window_bounds = array<i64: 1, 512, 3>}, {pipeline_mode = #tpu.pipeline_mode<synchronous>, transform_indices = @transform_1, window_bounds = array<i64: 3, 3, 32>}, {pipeline_mode = #tpu.pipeline_mode<synchronous>, transform_indices = @transform_2, window_bounds = array<i64: 1, 32>}, {pipeline_mode = #tpu.pipeline_mode<synchronous>, transform_indices = @transform_3, window_bounds = array<i64: 3, 32, 64>}, {pipeline_mode = #tpu.pipeline_mode<synchronous>, transform_indices = @transform_4, window_bounds = array<i64: 1, 64>}, {transform_indices = @transform_5, window_bounds = array<i64: 1, 128, 64>}]} {
    %cst = arith.constant 0.000000e+00 : f32
    %0 = vector.broadcast %cst : f32 to vector<1x3xf32>
    %c0 = arith.constant 0 : index
    %c0_0 = arith.constant 0 : index
    %1 = vector.load %arg7[%c0, %c0_0] : memref<514x3xf32, #tpu.memory_space<vmem>>, vector<1x3xf32>
    tpu.vector_store %arg7[%c0, %c0_0], %0 {strides = array<i32>} : memref<514x3xf32, #tpu.memory_space<vmem>>, vector<1x3xf32>,
    %cst_1 = arith.constant 0.000000e+00 : f32
    %2 = vector.broadcast %cst_1 : f32 to vector<1x3xf32>
    %c513 = arith.constant 513 : index
    %c0_2 = arith.constant 0 : index
    %3 = vector.load %arg7[%c513, %c0_2] : memref<514x3xf32, #tpu.memory_space<vmem>>, vector<1x3xf32>
    tpu.vector_store %arg7[%c513, %c0_2], %2 {strides = array<i32>} : memref<514x3xf32, #tpu.memory_space<vmem>>, vector<1x3xf32>,
    %c0_3 = arith.constant 0 : index
    %c0_4 = arith.constant 0 : index
    %c0_5 = arith.constant 0 : index
    %4 = vector.load %arg1[%c0_3, %c0_4, %c0_5] : memref<1x512x3xf32, #tpu.memory_space<vmem>>, vector<1x512x3xf32>
    %5 = vector.shape_cast %4 : vector<1x512x3xf32> to vector<512x3xf32>
    %c1 = arith.constant 1 : index
    %c0_6 = arith.constant 0 : index
    %6 = vector.load %arg7[%c1, %c0_6] : memref<514x3xf32, #tpu.memory_space<vmem>>, vector<512x3xf32>
    tpu.vector_store %arg7[%c1, %c0_6], %5 {strides = array<i32>} : memref<514x3xf32, #tpu.memory_space<vmem>>, vector<512x3xf32>,
    %cst_7 = arith.constant 0.000000e+00 : f32
    %7 = vector.broadcast %cst_7 : f32 to vector<512x32xf32>
    %c0_8 = arith.constant 0 : index
    %c0_9 = arith.constant 0 : index
    %8 = vector.load %arg7[%c0_8, %c0_9] : memref<514x3xf32, #tpu.memory_space<vmem>>, vector<512x3xf32>
    %c0_10 = arith.constant 0 : index
    %c0_11 = arith.constant 0 : index
    %c0_12 = arith.constant 0 : index
    %9 = vector.load %arg2[%c0_10, %c0_11, %c0_12] : memref<3x3x32xf32, #tpu.memory_space<vmem>>, vector<1x3x32xf32>
    %10 = vector.shape_cast %9 : vector<1x3x32xf32> to vector<3x32xf32>
    %cst_13 = arith.constant dense<0.000000e+00> : vector<512x32xf32>
    %11 = tpu.matmul %8, %10, %cst_13 {dimension_numbers = #tpu.dot_dimension_numbers<[1], [0], [0], [1], [0, 0, 1, 1], [], []>} : vector<512x3xf32>, vector<3x32xf32>, vector<512x32xf32> -> vector<512x32xf32>
    %12 = arith.addf %7, %11 : vector<512x32xf32>
    %c1_14 = arith.constant 1 : index
    %c0_15 = arith.constant 0 : index
    %13 = vector.load %arg7[%c1_14, %c0_15] : memref<514x3xf32, #tpu.memory_space<vmem>>, vector<512x3xf32>
    %c1_16 = arith.constant 1 : index
    %c0_17 = arith.constant 0 : index
    %c0_18 = arith.constant 0 : index
    %14 = vector.load %arg2[%c1_16, %c0_17, %c0_18] : memref<3x3x32xf32, #tpu.memory_space<vmem>>, vector<1x3x32xf32>
    %15 = vector.shape_cast %14 : vector<1x3x32xf32> to vector<3x32xf32>
    %cst_19 = arith.constant dense<0.000000e+00> : vector<512x32xf32>
    %16 = tpu.matmul %13, %15, %cst_19 {dimension_numbers = #tpu.dot_dimension_numbers<[1], [0], [0], [1], [0, 0, 1, 1], [], []>} : vector<512x3xf32>, vector<3x32xf32>, vector<512x32xf32> -> vector<512x32xf32>
    %17 = arith.addf %12, %16 : vector<512x32xf32>
    %c2 = arith.constant 2 : index
    %c0_20 = arith.constant 0 : index
    %18 = vector.load %arg7[%c2, %c0_20] : memref<514x3xf32, #tpu.memory_space<vmem>>, vector<512x3xf32>
    %c2_21 = arith.constant 2 : index
    %c0_22 = arith.constant 0 : index
    %c0_23 = arith.constant 0 : index
    %19 = vector.load %arg2[%c2_21, %c0_22, %c0_23] : memref<3x3x32xf32, #tpu.memory_space<vmem>>, vector<1x3x32xf32>
    %20 = vector.shape_cast %19 : vector<1x3x32xf32> to vector<3x32xf32>
    %cst_24 = arith.constant dense<0.000000e+00> : vector<512x32xf32>
    %21 = tpu.matmul %18, %20, %cst_24 {dimension_numbers = #tpu.dot_dimension_numbers<[1], [0], [0], [1], [0, 0, 1, 1], [], []>} : vector<512x3xf32>, vector<3x32xf32>, vector<512x32xf32> -> vector<512x32xf32>
    %22 = arith.addf %17, %21 : vector<512x32xf32>
    %c0_25 = arith.constant 0 : index
    %c0_26 = arith.constant 0 : index
    %23 = vector.load %arg3[%c0_25, %c0_26] : memref<1x32xf32, #tpu.memory_space<vmem>>, vector<1x32xf32>
    %24 = vector.broadcast %23 : vector<1x32xf32> to vector<512x32xf32>
    %25 = arith.addf %22, %24 : vector<512x32xf32>
    %cst_27 = arith.constant 0.000000e+00 : f32
    %26 = vector.broadcast %cst_27 : f32 to vector<512x32xf32>
    %27 = arith.maximumf %25, %26 : vector<512x32xf32>
    %c0_28 = arith.constant 0 : index
    %c0_29 = arith.constant 0 : index
    %28 = vector.load %arg8[%c0_28, %c0_29] : memref<512x32xf32, #tpu.memory_space<vmem>>, vector<512x32xf32>
    tpu.vector_store %arg8[%c0_28, %c0_29], %27 {strides = array<i32>} : memref<512x32xf32, #tpu.memory_space<vmem>>, vector<512x32xf32>,
    %c0_30 = arith.constant 0 : index
    %c0_31 = arith.constant 0 : index
    %29 = tpu.strided_load %arg8[%c0_30, %c0_31] {strides = array<i32: 2, 1>} : memref<512x32xf32, #tpu.memory_space<vmem>>, vector<256x32xf32>
    %c1_32 = arith.constant 1 : index
    %c0_33 = arith.constant 0 : index
    %30 = tpu.strided_load %arg8[%c1_32, %c0_33] {strides = array<i32: 2, 1>} : memref<512x32xf32, #tpu.memory_space<vmem>>, vector<256x32xf32>
    %31 = arith.maximumf %29, %30 : vector<256x32xf32>
    %cst_34 = arith.constant 0.000000e+00 : f32
    %32 = vector.broadcast %cst_34 : f32 to vector<1x32xf32>
    %c0_35 = arith.constant 0 : index
    %c0_36 = arith.constant 0 : index
    %33 = vector.load %arg9[%c0_35, %c0_36] : memref<258x32xf32, #tpu.memory_space<vmem>>, vector<1x32xf32>
    tpu.vector_store %arg9[%c0_35, %c0_36], %32 {strides = array<i32>} : memref<258x32xf32, #tpu.memory_space<vmem>>, vector<1x32xf32>,
    %cst_37 = arith.constant 0.000000e+00 : f32
    %34 = vector.broadcast %cst_37 : f32 to vector<1x32xf32>
    %c257 = arith.constant 257 : index
    %c0_38 = arith.constant 0 : index
    %35 = vector.load %arg9[%c257, %c0_38] : memref<258x32xf32, #tpu.memory_space<vmem>>, vector<1x32xf32>
    tpu.vector_store %arg9[%c257, %c0_38], %34 {strides = array<i32>} : memref<258x32xf32, #tpu.memory_space<vmem>>, vector<1x32xf32>,
    %c1_39 = arith.constant 1 : index
    %c0_40 = arith.constant 0 : index
    %36 = vector.load %arg9[%c1_39, %c0_40] : memref<258x32xf32, #tpu.memory_space<vmem>>, vector<256x32xf32>
    tpu.vector_store %arg9[%c1_39, %c0_40], %31 {strides = array<i32>} : memref<258x32xf32, #tpu.memory_space<vmem>>, vector<256x32xf32>,
    %cst_41 = arith.constant 0.000000e+00 : f32
    %37 = vector.broadcast %cst_41 : f32 to vector<256x64xf32>
    %c0_42 = arith.constant 0 : index
    %c0_43 = arith.constant 0 : index
    %38 = vector.load %arg9[%c0_42, %c0_43] : memref<258x32xf32, #tpu.memory_space<vmem>>, vector<256x32xf32>
    %c0_44 = arith.constant 0 : index
    %c0_45 = arith.constant 0 : index
    %c0_46 = arith.constant 0 : index
    %39 = vector.load %arg4[%c0_44, %c0_45, %c0_46] : memref<3x32x64xf32, #tpu.memory_space<vmem>>, vector<1x32x64xf32>
    %40 = vector.shape_cast %39 : vector<1x32x64xf32> to vector<32x64xf32>
    %cst_47 = arith.constant dense<0.000000e+00> : vector<256x64xf32>
    %41 = tpu.matmul %38, %40, %cst_47 {dimension_numbers = #tpu.dot_dimension_numbers<[1], [0], [0], [1], [0, 0, 1, 1], [], []>} : vector<256x32xf32>, vector<32x64xf32>, vector<256x64xf32> -> vector<256x64xf32>
    %42 = arith.addf %37, %41 : vector<256x64xf32>
    %c1_48 = arith.constant 1 : index
    %c0_49 = arith.constant 0 : index
    %43 = vector.load %arg9[%c1_48, %c0_49] : memref<258x32xf32, #tpu.memory_space<vmem>>, vector<256x32xf32>
    %c1_50 = arith.constant 1 : index
    %c0_51 = arith.constant 0 : index
    %c0_52 = arith.constant 0 : index
    %44 = vector.load %arg4[%c1_50, %c0_51, %c0_52] : memref<3x32x64xf32, #tpu.memory_space<vmem>>, vector<1x32x64xf32>
    %45 = vector.shape_cast %44 : vector<1x32x64xf32> to vector<32x64xf32>
    %cst_53 = arith.constant dense<0.000000e+00> : vector<256x64xf32>
    %46 = tpu.matmul %43, %45, %cst_53 {dimension_numbers = #tpu.dot_dimension_numbers<[1], [0], [0], [1], [0, 0, 1, 1], [], []>} : vector<256x32xf32>, vector<32x64xf32>, vector<256x64xf32> -> vector<256x64xf32>
    %47 = arith.addf %42, %46 : vector<256x64xf32>
    %c2_54 = arith.constant 2 : index
    %c0_55 = arith.constant 0 : index
    %48 = vector.load %arg9[%c2_54, %c0_55] : memref<258x32xf32, #tpu.memory_space<vmem>>, vector<256x32xf32>
    %c2_56 = arith.constant 2 : index
    %c0_57 = arith.constant 0 : index
    %c0_58 = arith.constant 0 : index
    %49 = vector.load %arg4[%c2_56, %c0_57, %c0_58] : memref<3x32x64xf32, #tpu.memory_space<vmem>>, vector<1x32x64xf32>
    %50 = vector.shape_cast %49 : vector<1x32x64xf32> to vector<32x64xf32>
    %cst_59 = arith.constant dense<0.000000e+00> : vector<256x64xf32>
    %51 = tpu.matmul %48, %50, %cst_59 {dimension_numbers = #tpu.dot_dimension_numbers<[1], [0], [0], [1], [0, 0, 1, 1], [], []>} : vector<256x32xf32>, vector<32x64xf32>, vector<256x64xf32> -> vector<256x64xf32>
    %52 = arith.addf %47, %51 : vector<256x64xf32>
    %c0_60 = arith.constant 0 : index
    %c0_61 = arith.constant 0 : index
    %53 = vector.load %arg5[%c0_60, %c0_61] : memref<1x64xf32, #tpu.memory_space<vmem>>, vector<1x64xf32>
    %54 = vector.broadcast %53 : vector<1x64xf32> to vector<256x64xf32>
    %55 = arith.addf %52, %54 : vector<256x64xf32>
    %cst_62 = arith.constant 0.000000e+00 : f32
    %56 = vector.broadcast %cst_62 : f32 to vector<256x64xf32>
    %57 = arith.maximumf %55, %56 : vector<256x64xf32>
    %c0_63 = arith.constant 0 : index
    %c0_64 = arith.constant 0 : index
    %58 = vector.load %arg10[%c0_63, %c0_64] : memref<256x64xf32, #tpu.memory_space<vmem>>, vector<256x64xf32>
    tpu.vector_store %arg10[%c0_63, %c0_64], %57 {strides = array<i32>} : memref<256x64xf32, #tpu.memory_space<vmem>>, vector<256x64xf32>,
    %c0_65 = arith.constant 0 : index
    %c0_66 = arith.constant 0 : index
    %59 = tpu.strided_load %arg10[%c0_65, %c0_66] {strides = array<i32: 2, 1>} : memref<256x64xf32, #tpu.memory_space<vmem>>, vector<128x64xf32>
    %c1_67 = arith.constant 1 : index
    %c0_68 = arith.constant 0 : index
    %60 = tpu.strided_load %arg10[%c1_67, %c0_68] {strides = array<i32: 2, 1>} : memref<256x64xf32, #tpu.memory_space<vmem>>, vector<128x64xf32>
    %61 = arith.maximumf %59, %60 : vector<128x64xf32>
    %c0_69 = arith.constant 0 : index
    %c0_70 = arith.constant 0 : index
    %c0_71 = arith.constant 0 : index
    %62 = vector.load %arg6[%c0_69, %c0_70, %c0_71] : memref<1x128x64xf32, #tpu.memory_space<vmem>>, vector<1x128x64xf32>
    %63 = vector.shape_cast %62 : vector<1x128x64xf32> to vector<128x64xf32>
    %64 = vector.shape_cast %61 : vector<128x64xf32> to vector<1x128x64xf32>
    tpu.vector_store %arg6[%c0_69, %c0_70, %c0_71], %64 {strides = array<i32>} : memref<1x128x64xf32, #tpu.memory_space<vmem>>, vector<1x128x64xf32>,
    return
  }
  func.func @transform_0(%arg0: i32) -> (i32, i32, i32) {
    %c0_i32 = arith.constant 0 : i32
    %c0_i32_0 = arith.constant 0 : i32
    %c0_i32_1 = arith.constant 0 : i32
    return %arg0, %c0_i32, %c0_i32_0 : i32, i32, i32
  }
  func.func @transform_1(%arg0: i32) -> (i32, i32, i32) {
    %c0_i32 = arith.constant 0 : i32
    %c0_i32_0 = arith.constant 0 : i32
    %c0_i32_1 = arith.constant 0 : i32
    %c0_i32_2 = arith.constant 0 : i32
    return %c0_i32, %c0_i32_0, %c0_i32_1 : i32, i32, i32
  }
  func.func @transform_2(%arg0: i32) -> (i32, i32) {
    %c0_i32 = arith.constant 0 : i32
    %c0_i32_0 = arith.constant 0 : i32
    %c0_i32_1 = arith.constant 0 : i32
    return %c0_i32, %c0_i32_0 : i32, i32
  }
  func.func @transform_3(%arg0: i32) -> (i32, i32, i32) {
    %c0_i32 = arith.constant 0 : i32
    %c0_i32_0 = arith.constant 0 : i32
    %c0_i32_1 = arith.constant 0 : i32
    %c0_i32_2 = arith.constant 0 : i32
    return %c0_i32, %c0_i32_0, %c0_i32_1 : i32, i32, i32
  }
  func.func @transform_4(%arg0: i32) -> (i32, i32) {
    %c0_i32 = arith.constant 0 : i32
    %c0_i32_0 = arith.constant 0 : i32
    %c0_i32_1 = arith.constant 0 : i32
    return %c0_i32, %c0_i32_0 : i32, i32
  }
  func.func @transform_5(%arg0: i32) -> (i32, i32, i32) {
    %c0_i32 = arith.constant 0 : i32
    %c0_i32_0 = arith.constant 0 : i32
    %c0_i32_1 = arith.constant 0 : i32
    return %arg0, %c0_i32, %c0_i32_0 : i32, i32, i32
  }
}

module attributes {stable_mosaic.version = 11 : i64} {
  func.func @mlp_kernel(%arg0: i32, %arg1: memref<2x2048xf32, #tpu.memory_space<vmem>>, %arg2: memref<2048x128xf32, #tpu.memory_space<vmem>>, %arg3: memref<1x128xf32, #tpu.memory_space<vmem>>, %arg4: memref<128x1xf32, #tpu.memory_space<vmem>>, %arg5: memref<1x1xf32, #tpu.memory_space<vmem>>, %arg6: memref<2x1xf32, #tpu.memory_space<vmem>>, %arg7: memref<2x128xf32, #tpu.memory_space<vmem>>) attributes {dimension_semantics = [#tpu.dimension_semantics<arbitrary>], iteration_bounds = array<i64: 4>, scalar_prefetch = 0 : i64, scratch_operands = 1 : i64, tpu.core_type = #tpu.core_type<tc>, window_params = [{transform_indices = @transform_0, window_bounds = array<i64: 2, 2048>}, {transform_indices = @transform_1, window_bounds = array<i64: 2048, 128>}, {pipeline_mode = #tpu.pipeline_mode<synchronous>, transform_indices = @transform_2, window_bounds = array<i64: 1, 128>}, {pipeline_mode = #tpu.pipeline_mode<synchronous>, transform_indices = @transform_3, window_bounds = array<i64: 128, 1>}, {pipeline_mode = #tpu.pipeline_mode<synchronous>, transform_indices = @transform_4, window_bounds = array<i64: 1, 1>}, {pipeline_mode = #tpu.pipeline_mode<synchronous>, transform_indices = @transform_5, window_bounds = array<i64: 2, 1>}]} {
    %c0_i32 = arith.constant 0 : i32
    %0 = arith.cmpi eq, %arg0, %c0_i32 : i32
    %1 = arith.extui %0 : i1 to i32
    %c0_i32_0 = arith.constant 0 : i32
    %2 = arith.cmpi ne, %1, %c0_i32_0 : i32
    scf.if %2 {
      %cst_9 = arith.constant 0.000000e+00 : f32
      %12 = vector.broadcast %cst_9 : f32 to vector<2x128xf32>
      %c0_10 = arith.constant 0 : index
      %c0_11 = arith.constant 0 : index
      %13 = vector.load %arg7[%c0_10, %c0_11] : memref<2x128xf32, #tpu.memory_space<vmem>>, vector<2x128xf32>
      tpu.vector_store %arg7[%c0_10, %c0_11], %12 {strides = array<i32>} : memref<2x128xf32, #tpu.memory_space<vmem>>, vector<2x128xf32>,
    } else {
    }
    %c0 = arith.constant 0 : index
    %c0_1 = arith.constant 0 : index
    %3 = vector.load %arg7[%c0, %c0_1] : memref<2x128xf32, #tpu.memory_space<vmem>>, vector<2x128xf32>
    %c0_2 = arith.constant 0 : index
    %c0_3 = arith.constant 0 : index
    %4 = vector.load %arg1[%c0_2, %c0_3] : memref<2x2048xf32, #tpu.memory_space<vmem>>, vector<2x2048xf32>
    %c0_4 = arith.constant 0 : index
    %c0_5 = arith.constant 0 : index
    %5 = vector.load %arg2[%c0_4, %c0_5] : memref<2048x128xf32, #tpu.memory_space<vmem>>, vector<2048x128xf32>
    %cst = arith.constant dense<0.000000e+00> : vector<2x128xf32>
    %6 = tpu.matmul %4, %5, %cst {dimension_numbers = #tpu.dot_dimension_numbers<[1], [0], [0], [1], [0, 0, 1, 1], [], []>} : vector<2x2048xf32>, vector<2048x128xf32>, vector<2x128xf32> -> vector<2x128xf32>
    %7 = arith.addf %3, %6 : vector<2x128xf32>
    %c0_6 = arith.constant 0 : index
    %c0_7 = arith.constant 0 : index
    %8 = vector.load %arg7[%c0_6, %c0_7] : memref<2x128xf32, #tpu.memory_space<vmem>>, vector<2x128xf32>
    tpu.vector_store %arg7[%c0_6, %c0_7], %7 {strides = array<i32>} : memref<2x128xf32, #tpu.memory_space<vmem>>, vector<2x128xf32>,
    %c3_i32 = arith.constant 3 : i32
    %9 = arith.cmpi eq, %arg0, %c3_i32 : i32
    %10 = arith.extui %9 : i1 to i32
    %c0_i32_8 = arith.constant 0 : i32
    %11 = arith.cmpi ne, %10, %c0_i32_8 : i32
    scf.if %11 {
      %c0_9 = arith.constant 0 : index
      %c0_10 = arith.constant 0 : index
      %12 = vector.load %arg7[%c0_9, %c0_10] : memref<2x128xf32, #tpu.memory_space<vmem>>, vector<2x128xf32>
      %c0_11 = arith.constant 0 : index
      %c0_12 = arith.constant 0 : index
      %13 = vector.load %arg3[%c0_11, %c0_12] : memref<1x128xf32, #tpu.memory_space<vmem>>, vector<1x128xf32>
      %14 = vector.broadcast %13 : vector<1x128xf32> to vector<2x128xf32>
      %15 = arith.addf %12, %14 : vector<2x128xf32>
      %cst_13 = arith.constant 0.000000e+00 : f32
      %16 = vector.broadcast %cst_13 : f32 to vector<2x128xf32>
      %17 = arith.maximumf %15, %16 : vector<2x128xf32>
      %c0_14 = arith.constant 0 : index
      %c0_15 = arith.constant 0 : index
      %18 = vector.load %arg4[%c0_14, %c0_15] : memref<128x1xf32, #tpu.memory_space<vmem>>, vector<128x1xf32>
      %cst_16 = arith.constant dense<0.000000e+00> : vector<2x1xf32>
      %19 = tpu.matmul %17, %18, %cst_16 {dimension_numbers = #tpu.dot_dimension_numbers<[1], [0], [0], [1], [0, 0, 1, 1], [], []>} : vector<2x128xf32>, vector<128x1xf32>, vector<2x1xf32> -> vector<2x1xf32>
      %c0_17 = arith.constant 0 : index
      %c0_18 = arith.constant 0 : index
      %20 = vector.load %arg5[%c0_17, %c0_18] : memref<1x1xf32, #tpu.memory_space<vmem>>, vector<1x1xf32>
      %21 = vector.broadcast %20 : vector<1x1xf32> to vector<2x1xf32>
      %22 = arith.addf %19, %21 : vector<2x1xf32>
      %c0_19 = arith.constant 0 : index
      %c0_20 = arith.constant 0 : index
      %23 = vector.load %arg6[%c0_19, %c0_20] : memref<2x1xf32, #tpu.memory_space<vmem>>, vector<2x1xf32>
      tpu.vector_store %arg6[%c0_19, %c0_20], %22 {strides = array<i32>} : memref<2x1xf32, #tpu.memory_space<vmem>>, vector<2x1xf32>,
    } else {
    }
    return
  }
  func.func @transform_0(%arg0: i32) -> (i32, i32) {
    %c0_i32 = arith.constant 0 : i32
    %c0_i32_0 = arith.constant 0 : i32
    return %c0_i32, %arg0 : i32, i32
  }
  func.func @transform_1(%arg0: i32) -> (i32, i32) {
    %c0_i32 = arith.constant 0 : i32
    %c0_i32_0 = arith.constant 0 : i32
    return %arg0, %c0_i32 : i32, i32
  }
  func.func @transform_2(%arg0: i32) -> (i32, i32) {
    %c0_i32 = arith.constant 0 : i32
    %c0_i32_0 = arith.constant 0 : i32
    %c0_i32_1 = arith.constant 0 : i32
    return %c0_i32, %c0_i32_0 : i32, i32
  }
  func.func @transform_3(%arg0: i32) -> (i32, i32) {
    %c0_i32 = arith.constant 0 : i32
    %c0_i32_0 = arith.constant 0 : i32
    %c0_i32_1 = arith.constant 0 : i32
    return %c0_i32, %c0_i32_0 : i32, i32
  }
  func.func @transform_4(%arg0: i32) -> (i32, i32) {
    %c0_i32 = arith.constant 0 : i32
    %c0_i32_0 = arith.constant 0 : i32
    %c0_i32_1 = arith.constant 0 : i32
    return %c0_i32, %c0_i32_0 : i32, i32
  }
  func.func @transform_5(%arg0: i32) -> (i32, i32) {
    %c0_i32 = arith.constant 0 : i32
    %c0_i32_0 = arith.constant 0 : i32
    %c0_i32_1 = arith.constant 0 : i32
    return %c0_i32, %c0_i32_0 : i32, i32
  }
}

</mosaic_0001>

<llo_original>
// kernel: simple_cnn_forward.3
$region0: #{simple_cnn_forward.3}
  #allocation0 [shape = 'u32[]', space=smem, size = 0x4, offset = 0x4, fixed_abs, tag = 'smem constant byte address 0x4 - core index']
  #allocation1 [shape = 'u32[72,128]{1,0:T(1,128)}', space=vmem, size = 0x9000, scoped, tag = 'internal scratch']
  #allocation2 [shape = 'f32[2,128]{1,0:T(2,128)}', space=vmem, size = 0x400, scoped, tag = 'scratch operand']
  #allocation3 [shape = 'f32[1,1]{1,0:T(1,128)S(1)}', space=vmem, size = 0x200, scoped, tag = 'scoped memory for simple_cnn_forward.3']
  %s0 = inlined_call_operand.vmem [shape: f32[2,8192], index: 0, kind: input, shape index: {}]
  %s1 = inlined_call_operand.hbm [shape: f32[8192,128], index: 1, kind: input, shape index: {}]
  %s2 = inlined_call_operand.hbm [shape: f32[1,128], index: 2, kind: input, shape index: {}]
  %s3 = inlined_call_operand.vmem [shape: f32[128,1], index: 3, kind: input, shape index: {}]
  %s4 = inlined_call_operand.<no memory space> [shape: f32[1,1], index: 4, kind: input, shape index: {}]
  %s5 = inlined_call_operand.vmem [shape: f32[2,1], index: 5, kind: output, shape index: {}]
  %s6 = sld [smem:[#allocation0]]
  $region69: #{simple_cnn_forward.3} parent=0
    _
  %s8 = ssub.s32 1, %s6
  %s9 = scalar_select 0, %s8, %s6
  %v10 = vstv %s4
  %11 = vst [vmem:[#allocation3] sm:$0x1] %v10
  $region1: #{simple_cnn_forward.3} parent=0
    #allocation4 [shape = 'u8[2097152]{0}', space=vmem, size = 0x200000, scoped, tag = 'input window, operand 1']
    #allocation5 [shape = 's32[2]{0}', space=sflag, size = 0x8, scoped, tag = 'scoped memory for simple_cnn_forward.3']
    #allocation6 [shape = 'u8[512]{0}', space=vmem, size = 0x400, scoped, tag = 'input window, operand 2, single buffered']
    #allocation7 [shape = 's32[1]{0}', space=sflag, size = 0x4, scoped, tag = 'scoped memory for simple_cnn_forward.3']
    %12 = vsyncpa [#allocation5], 0
    %s13 = scalar_lea.sflag [#allocation5], 1
    %14 = vsyncpa %s13, 0
    %15 = vsyncpa [#allocation7], 0
    loop: start=0, step=1, limit=6
    $region2: #{simple_cnn_forward.3} parent=1 // loop_pre_header
      _
    $region3: #{simple_cnn_forward.3} parent=1 // loop_header
      %s17 = sphi 0, %s21
      %p18 = scmp.ge.s32.totalorder %s17, 6
      %s27 = sphi 0, %s29
      %s30 = sphi 0, %s27
      %s31 = sphi 0, %s30
      %s47 = sphi 0, %s31
      %s53 = sphi 0, %s55
      %s56 = sphi 0, %s53
      %s57 = sphi 0, %s56
      %s73 = sphi 0, %s57
      %s77 = sphi 0, %s77
      %s79 = sphi 0, %s77
      %s80 = sphi 0, %s79
      %s94 = sphi 0, %s80
      %s98 = sphi 0, %s98
      %s100 = sphi 0, %s98
      %s101 = sphi 0, %s100
      %s115 = sphi 0, %s101
      %s119 = sphi 0, %s119
      %s121 = sphi 0, %s119
      %s122 = sphi 0, %s121
      %s136 = sphi 0, %s122
      %s140 = sphi 0, %s140
      %s142 = sphi 0, %s140
      %s143 = sphi 0, %s142
      %s157 = sphi 0, %s143
    $region4: #{simple_cnn_forward.3} parent=1 // loop_header_branch
      %20 = sbr.rel (%p18) target = $region8
    $region5: #{simple_cnn_forward.3} parent=1 // loop_body
      %s22 = ssub.s32 %s17, 1
      %s23 = ssub.s32 %s17, 2
      %s24 = sadd.s32 %s17, 1
      %s25 = ssub.s32 %s17, %s24
      %p26 = scmp.eq.s32.totalorder %s25, 0
      %s28 = sadd.s32 %s27, 1
      %s29 = scalar_select %p26, %s27, %s28
      %p32 = pneg %p26
      %p33 = scmp.eq.s32.totalorder %s17, 3
      %p34 = por %p32, %p33
      %p35 = scmp.ne.s32.totalorder %s27, %s30
      %p36 = scmp.eq.s32.totalorder %s17, 0
      %p37 = por %p35, %p36
      %p38 = scmp.ne.s32.totalorder %s27, %s30
      %p39 = scmp.eq.s32.totalorder %s22, 3
      %p40 = por %p38, %p39
      %p41 = scmp.ne.s32.totalorder %s30, %s31
      %p42 = scmp.eq.s32.totalorder %s22, 0
      %p43 = por %p41, %p42
      %p44 = scmp.ne.s32.totalorder %s30, %s31
      %p45 = scmp.eq.s32.totalorder %s23, 3
      %p46 = por %p44, %p45
      %p48 = scmp.ne.s32.totalorder %s31, %s47
      %p49 = scmp.eq.s32.totalorder %s23, 0
      %p50 = por %p48, %p49
      %s51 = ssub.s32 %s17, %s24
      %p52 = scmp.eq.s32.totalorder %s51, 0
      %s54 = sadd.s32 %s53, 1
      %s55 = scalar_select %p52, %s53, %s54
      %p58 = pneg %p52
      %p59 = scmp.eq.s32.totalorder %s17, 3
      %p60 = por %p58, %p59
      %p61 = scmp.ne.s32.totalorder %s53, %s56
      %p62 = scmp.eq.s32.totalorder %s17, 0
      %p63 = por %p61, %p62
      %p64 = scmp.ne.s32.totalorder %s53, %s56
      %p65 = scmp.eq.s32.totalorder %s22, 3
      %p66 = por %p64, %p65
      %p67 = scmp.ne.s32.totalorder %s56, %s57
      %p68 = scmp.eq.s32.totalorder %s22, 0
      %p69 = por %p67, %p68
      %p70 = scmp.ne.s32.totalorder %s56, %s57
      %p71 = scmp.eq.s32.totalorder %s23, 3
      %p72 = por %p70, %p71
      %p74 = scmp.ne.s32.totalorder %s57, %s73
      %p75 = scmp.eq.s32.totalorder %s23, 0
      %p76 = por %p74, %p75
      %s78 = sadd.s32 %s77, 1
      %p81 = scmp.eq.s32.totalorder %s17, 3
      %p82 = scmp.ne.s32.totalorder %s77, %s79
      %p83 = scmp.eq.s32.totalorder %s17, 0
      %p84 = por %p82, %p83
      %p85 = scmp.ne.s32.totalorder %s77, %s79
      %p86 = scmp.eq.s32.totalorder %s22, 3
      %p87 = por %p85, %p86
      %p88 = scmp.ne.s32.totalorder %s79, %s80
      %p89 = scmp.eq.s32.totalorder %s22, 0
      %p90 = por %p88, %p89
      %p91 = scmp.ne.s32.totalorder %s79, %s80
      %p92 = scmp.eq.s32.totalorder %s23, 3
      %p93 = por %p91, %p92
      %p95 = scmp.ne.s32.totalorder %s80, %s94
      %p96 = scmp.eq.s32.totalorder %s23, 0
      %p97 = por %p95, %p96
      %s99 = sadd.s32 %s98, 1
      %p102 = scmp.eq.s32.totalorder %s17, 3
      %p103 = scmp.ne.s32.totalorder %s98, %s100
      %p104 = scmp.eq.s32.totalorder %s17, 0
      %p105 = por %p103, %p104
      %p106 = scmp.ne.s32.totalorder %s98, %s100
      %p107 = scmp.eq.s32.totalorder %s22, 3
      %p108 = por %p106, %p107
      %p109 = scmp.ne.s32.totalorder %s100, %s101
      %p110 = scmp.eq.s32.totalorder %s22, 0
      %p111 = por %p109, %p110
      %p112 = scmp.ne.s32.totalorder %s100, %s101
      %p113 = scmp.eq.s32.totalorder %s23, 3
      %p114 = por %p112, %p113
      %p116 = scmp.ne.s32.totalorder %s101, %s115
      %p117 = scmp.eq.s32.totalorder %s23, 0
      %p118 = por %p116, %p117
      %s120 = sadd.s32 %s119, 1
      %p123 = scmp.eq.s32.totalorder %s17, 3
      %p124 = scmp.ne.s32.totalorder %s119, %s121
      %p125 = scmp.eq.s32.totalorder %s17, 0
      %p126 = por %p124, %p125
      %p127 = scmp.ne.s32.totalorder %s119, %s121
      %p128 = scmp.eq.s32.totalorder %s22, 3
      %p129 = por %p127, %p128
      %p130 = scmp.ne.s32.totalorder %s121, %s122
      %p131 = scmp.eq.s32.totalorder %s22, 0
      %p132 = por %p130, %p131
      %p133 = scmp.ne.s32.totalorder %s121, %s122
      %p134 = scmp.eq.s32.totalorder %s23, 3
      %p135 = por %p133, %p134
      %p137 = scmp.ne.s32.totalorder %s122, %s136
      %p138 = scmp.eq.s32.totalorder %s23, 0
      %p139 = por %p137, %p138
      %s141 = sadd.s32 %s140, 1
      %p144 = scmp.eq.s32.totalorder %s17, 3
      %p145 = scmp.ne.s32.totalorder %s140, %s142
      %p146 = scmp.eq.s32.totalorder %s17, 0
      %p147 = por %p145, %p146
      %p148 = scmp.ne.s32.totalorder %s140, %s142
      %p149 = scmp.eq.s32.totalorder %s22, 3
      %p150 = por %p148, %p149
      %p151 = scmp.ne.s32.totalorder %s142, %s143
      %p152 = scmp.eq.s32.totalorder %s22, 0
      %p153 = por %p151, %p152
      %p154 = scmp.ne.s32.totalorder %s142, %s143
      %p155 = scmp.eq.s32.totalorder %s23, 3
      %p156 = por %p154, %p155
      %p158 = scmp.ne.s32.totalorder %s143, %s157
      %p159 = scmp.eq.s32.totalorder %s23, 0
      %p160 = por %p158, %p159
      %p161 = scmp.le.s32.totalorder 1, %s17
      %p162 = scmp.lt.s32.totalorder %s17, 5
      %p163 = pnand %p161, %p162
      %p164 = pneg %p163
      // Predicated region
      $region9: #{simple_cnn_forward.3} parent=5 // pred_check
        _
      $region10: #{simple_cnn_forward.3} parent=5 // pred_check_branch
        %166 = sbr.rel (%p163) target = $region12
      $region11: #{simple_cnn_forward.3} parent=5 // pred_region
        %s167 = ssub.s32 %s17, 1
        // Predicated region
        $region13: #{simple_cnn_forward.3} parent=11 // pred_check
          %p168 = pneg %p90
        $region14: #{simple_cnn_forward.3} parent=11 // pred_check_branch
          %170 = sbr.rel (%p168) target = $region16
        $region15: #{simple_cnn_forward.3} parent=11 // pred_region
          %172 = vsyncadd [#allocation7], 0
          %s174 = sshll.u32 %s2, 4
          %s175 = int_to_ptr.hbm [resolvable:$true] %s174
          %s176 = sshll.u32 [#allocation6], 4
          %s177 = int_to_ptr.vmem [resolvable:$true] %s176
          %179 = dma.hbm_to_vmem [thread:$0]  %s175, 16, %s177, [#allocation7]
        $region16: #{simple_cnn_forward.3} parent=11 // pred_fallthru
          _
        // Predicated region
        $region17: #{simple_cnn_forward.3} parent=11 // pred_check
          %p180 = pneg %p111
        $region18: #{simple_cnn_forward.3} parent=11 // pred_check_branch
          %182 = sbr.rel (%p180) target = $region20
        $region19: #{simple_cnn_forward.3} parent=11 // pred_region
          _
        $region20: #{simple_cnn_forward.3} parent=11 // pred_fallthru
          _
        // Predicated region
        $region21: #{simple_cnn_forward.3} parent=11 // pred_check
          %p183 = pneg %p132
        $region22: #{simple_cnn_forward.3} parent=11 // pred_check_branch
          %185 = sbr.rel (%p183) target = $region24
        $region23: #{simple_cnn_forward.3} parent=11 // pred_region
          _
        $region24: #{simple_cnn_forward.3} parent=11 // pred_fallthru
          _
      $region12: #{simple_cnn_forward.3} parent=5 // pred_fallthru
        _
      %p186 = scmp.lt.s32.totalorder %s17, 4
      // Predicated region
      $region25: #{simple_cnn_forward.3} parent=5 // pred_check
        %p187 = pneg %p186
      $region26: #{simple_cnn_forward.3} parent=5 // pred_check_branch
        %189 = sbr.rel (%p187) target = $region28
      $region27: #{simple_cnn_forward.3} parent=5 // pred_region
        // Predicated region
        $region29: #{simple_cnn_forward.3} parent=27 // pred_check
          %p190 = pneg %p37
        $region30: #{simple_cnn_forward.3} parent=27 // pred_check_branch
          %192 = sbr.rel (%p190) target = $region32
        $region31: #{simple_cnn_forward.3} parent=27 // pred_region
          %s193 = smul.u32 16, %s17
          %p194 = scmp.lt.s32.totalorder %s193, 63
          %s195 = scalar_select %p194, %s193, 63
          %s196 = smul.addr %s195, 2
          %s197 = scalar_lea.vmem %s0, %s196
          %s198 = smul.u32 16, %s17
        $region32: #{simple_cnn_forward.3} parent=27 // pred_fallthru
          _
        // Predicated region
        $region33: #{simple_cnn_forward.3} parent=27 // pred_check
          %p199 = pneg %p63
        $region34: #{simple_cnn_forward.3} parent=27 // pred_check_branch
          %201 = sbr.rel (%p199) target = $region36
        $region35: #{simple_cnn_forward.3} parent=27 // pred_region
          %s202 = sand.u32 %s53, 1
          %s203 = scalar_lea.sflag [#allocation5], %s202
          %s204 = sand.u32 %s53, 1
          %s205 = smul.addr %s204, 2048
          %s206 = scalar_lea.vmem [#allocation4], %s205
          %s207 = smul.u32 256, %s17
          %209 = vsyncadd %s203, 0
          %s210 = smul.addr %s207, 8
          %s211 = scalar_lea.hbm %s1, %s210
          %s212 = sshll.u32 %s211, 4
          %s213 = int_to_ptr.hbm [resolvable:$true] %s212
          %s214 = sshll.u32 %s206, 4
          %s215 = int_to_ptr.vmem [resolvable:$true] %s214
          %220 = dma.hbm_to_vmem [thread:$0]  %s213, 32768, %s215, %s203, 128, 128, 8
        $region36: #{simple_cnn_forward.3} parent=27 // pred_fallthru
          _
      $region28: #{simple_cnn_forward.3} parent=5 // pred_fallthru
        _
      %p221 = scmp.le.s32.totalorder 1, %s17
      %p222 = scmp.lt.s32.totalorder %s17, 5
      %p223 = pnand %p221, %p222
      %p224 = pneg %p223
      // Predicated region
      $region37: #{simple_cnn_forward.3} parent=5 // pred_check
        _
      $region38: #{simple_cnn_forward.3} parent=5 // pred_check_branch
        %226 = sbr.rel (%p223) target = $region40
      $region39: #{simple_cnn_forward.3} parent=5 // pred_region
        %s227 = ssub.s32 %s17, 1
        %s228 = sand.u32 %s56, 1
        %s229 = scalar_lea.sflag [#allocation5], %s228
        %s230 = sand.u32 %s56, 1
        %s231 = smul.addr %s230, 2048
        %s232 = scalar_lea.vmem [#allocation4], %s231
        // Predicated region
        $region41: #{simple_cnn_forward.3} parent=39 // pred_check
          %p233 = pneg %p69
        $region42: #{simple_cnn_forward.3} parent=39 // pred_check_branch
          %235 = sbr.rel (%p233) target = $region44
        $region43: #{simple_cnn_forward.3} parent=39 // pred_region
          %237 = dma.done %s229, 32768
        $region44: #{simple_cnn_forward.3} parent=39 // pred_fallthru
          _
        // Predicated region
        $region45: #{simple_cnn_forward.3} parent=39 // pred_check
          %p238 = pneg %p90
        $region46: #{simple_cnn_forward.3} parent=39 // pred_check_branch
          %240 = sbr.rel (%p238) target = $region48
        $region47: #{simple_cnn_forward.3} parent=39 // pred_region
          %242 = dma.done [#allocation7], 16
        $region48: #{simple_cnn_forward.3} parent=39 // pred_fallthru
          _
        %s243 = smul.u32 16, %s22
        %p244 = scmp.lt.s32.totalorder %s243, 63
        %s245 = scalar_select %p244, %s243, 63
        %s246 = smul.addr %s245, 2
        %s247 = scalar_lea.vmem %s0, %s246
        %p248 = pneg %p43
        %p249 = pneg %p40
        %s250 = sand.u32 %s56, 1
        %s251 = scalar_lea.sflag [#allocation5], %s250
        %s252 = sand.u32 %s56, 1
        %s253 = smul.addr %s252, 2048
        %s254 = scalar_lea.vmem [#allocation4], %s253
        %p255 = pneg %p69
        %p256 = pneg %p66
        %p257 = pneg %p90
        %p258 = pneg %p87
        %p259 = pneg %p111
        %p260 = pneg %p108
        %p261 = pneg %p132
        %p262 = pneg %p129
        %p263 = pneg %p153
        %p264 = pneg %p150
        %s265 = smul.u32 16, %s22
        %p266 = scmp.lt.s32.totalorder %s265, 63
        %s267 = scalar_select %p266, %s265, 63
        %s268 = smul.addr %s267, 2
        %s269 = scalar_lea.vmem %s0, %s268
        %s270 = smul.u32 16, %s22
        %s271 = smul.u32 256, %s22
        %p272 = scmp.eq.s32.totalorder %s22, 0
        // Predicated region
        $region49: #{simple_cnn_forward.3} parent=39 // pred_check
          %p273 = pneg %p272
        $region50: #{simple_cnn_forward.3} parent=39 // pred_check_branch
          %275 = sbr.rel (%p273) target = $region52
        $region51: #{simple_cnn_forward.3} parent=39 // pred_region
          %276 = vst [vmem:[#allocation2] sm:$0x3] 0.0
        $region52: #{simple_cnn_forward.3} parent=39 // pred_fallthru
          _
        %v277 = vld [vmem:[#allocation2] sm:$0x3]
        %v278 = vld [vmem:[%s269] sm:$0xff]
        %v279 = vld [vmem:[%s269 + $0x8] sm:$0xff]
        %v280 = vld [vmem:[%s269 + $0x10] sm:$0xff]
        %v281 = vld [vmem:[%s269 + $0x18] sm:$0xff]
        %v282 = vld [vmem:[%s232] sm:$0xff]
        %v283 = vld [vmem:[%s232 + $0x8] sm:$0xff]
        %v284 = vld [vmem:[%s232 + $0x10] sm:$0xff]
        %v285 = vld [vmem:[%s232 + $0x18] sm:$0xff]
        %v286 = vld [vmem:[%s232 + $0x20] sm:$0xff]
        %v287 = vld [vmem:[%s232 + $0x28] sm:$0xff]
        %v288 = vld [vmem:[%s232 + $0x30] sm:$0xff]
        %v289 = vld [vmem:[%s232 + $0x38] sm:$0xff]
        %v290 = vld [vmem:[%s232 + $0x40] sm:$0xff]
        %v291 = vld [vmem:[%s232 + $0x48] sm:$0xff]
        %v292 = vld [vmem:[%s232 + $0x50] sm:$0xff]
        %v293 = vld [vmem:[%s232 + $0x58] sm:$0xff]
        %v294 = vld [vmem:[%s232 + $0x60] sm:$0xff]
        %v295 = vld [vmem:[%s232 + $0x68] sm:$0xff]
        %v296 = vld [vmem:[%s232 + $0x70] sm:$0xff]
        %v297 = vld [vmem:[%s232 + $0x78] sm:$0xff]
        %v298 = vld [vmem:[%s232 + $0x80] sm:$0xff]
        %v299 = vld [vmem:[%s232 + $0x88] sm:$0xff]
        %v300 = vld [vmem:[%s232 + $0x90] sm:$0xff]
        %v301 = vld [vmem:[%s232 + $0x98] sm:$0xff]
        %v302 = vld [vmem:[%s232 + $0xa0] sm:$0xff]
        %v303 = vld [vmem:[%s232 + $0xa8] sm:$0xff]
        %v304 = vld [vmem:[%s232 + $0xb0] sm:$0xff]
        %v305 = vld [vmem:[%s232 + $0xb8] sm:$0xff]
        %v306 = vld [vmem:[%s232 + $0xc0] sm:$0xff]
        %v307 = vld [vmem:[%s232 + $0xc8] sm:$0xff]
        %v308 = vld [vmem:[%s232 + $0xd0] sm:$0xff]
        %v309 = vld [vmem:[%s232 + $0xd8] sm:$0xff]
        %v310 = vld [vmem:[%s232 + $0xe0] sm:$0xff]
        %v311 = vld [vmem:[%s232 + $0xe8] sm:$0xff]
        %v312 = vld [vmem:[%s232 + $0xf0] sm:$0xff]
        %v313 = vld [vmem:[%s232 + $0xf8] sm:$0xff]
        %v314 = vld [vmem:[%s232 + $0x100] sm:$0xff]
        %v315 = vld [vmem:[%s232 + $0x108] sm:$0xff]
        %v316 = vld [vmem:[%s232 + $0x110] sm:$0xff]
        %v317 = vld [vmem:[%s232 + $0x118] sm:$0xff]
        %v318 = vld [vmem:[%s232 + $0x120] sm:$0xff]
        %v319 = vld [vmem:[%s232 + $0x128] sm:$0xff]
        %v320 = vld [vmem:[%s232 + $0x130] sm:$0xff]
        %v321 = vld [vmem:[%s232 + $0x138] sm:$0xff]
        %v322 = vld [vmem:[%s232 + $0x140] sm:$0xff]
        %v323 = vld [vmem:[%s232 + $0x148] sm:$0xff]
        %v324 = vld [vmem:[%s232 + $0x150] sm:$0xff]
        %v325 = vld [vmem:[%s232 + $0x158] sm:$0xff]
        %v326 = vld [vmem:[%s232 + $0x160] sm:$0xff]
        %v327 = vld [vmem:[%s232 + $0x168] sm:$0xff]
        %v328 = vld [vmem:[%s232 + $0x170] sm:$0xff]
        %v329 = vld [vmem:[%s232 + $0x178] sm:$0xff]
        %v330 = vld [vmem:[%s232 + $0x180] sm:$0xff]
        %v331 = vld [vmem:[%s232 + $0x188] sm:$0xff]
        %v332 = vld [vmem:[%s232 + $0x190] sm:$0xff]
        %v333 = vld [vmem:[%s232 + $0x198] sm:$0xff]
        %v334 = vld [vmem:[%s232 + $0x1a0] sm:$0xff]
        %v335 = vld [vmem:[%s232 + $0x1a8] sm:$0xff]
        %v336 = vld [vmem:[%s232 + $0x1b0] sm:$0xff]
        %v337 = vld [vmem:[%s232 + $0x1b8] sm:$0xff]
        %v338 = vld [vmem:[%s232 + $0x1c0] sm:$0xff]
        %v339 = vld [vmem:[%s232 + $0x1c8] sm:$0xff]
        %v340 = vld [vmem:[%s232 + $0x1d0] sm:$0xff]
        %v341 = vld [vmem:[%s232 + $0x1d8] sm:$0xff]
        %v342 = vld [vmem:[%s232 + $0x1e0] sm:$0xff]
        %v343 = vld [vmem:[%s232 + $0x1e8] sm:$0xff]
        %v344 = vld [vmem:[%s232 + $0x1f0] sm:$0xff]
        %v345 = vld [vmem:[%s232 + $0x1f8] sm:$0xff]
        %v346 = vld [vmem:[%s232 + $0x200] sm:$0xff]
        %v347 = vld [vmem:[%s232 + $0x208] sm:$0xff]
        %v348 = vld [vmem:[%s232 + $0x210] sm:$0xff]
        %v349 = vld [vmem:[%s232 + $0x218] sm:$0xff]
        %v350 = vld [vmem:[%s232 + $0x220] sm:$0xff]
        %v351 = vld [vmem:[%s232 + $0x228] sm:$0xff]
        %v352 = vld [vmem:[%s232 + $0x230] sm:$0xff]
        %v353 = vld [vmem:[%s232 + $0x238] sm:$0xff]
        %v354 = vld [vmem:[%s232 + $0x240] sm:$0xff]
        %v355 = vld [vmem:[%s232 + $0x248] sm:$0xff]
        %v356 = vld [vmem:[%s232 + $0x250] sm:$0xff]
        %v357 = vld [vmem:[%s232 + $0x258] sm:$0xff]
        %v358 = vld [vmem:[%s232 + $0x260] sm:$0xff]
        %v359 = vld [vmem:[%s232 + $0x268] sm:$0xff]
        %v360 = vld [vmem:[%s232 + $0x270] sm:$0xff]
        %v361 = vld [vmem:[%s232 + $0x278] sm:$0xff]
        %v362 = vld [vmem:[%s232 + $0x280] sm:$0xff]
        %v363 = vld [vmem:[%s232 + $0x288] sm:$0xff]
        %v364 = vld [vmem:[%s232 + $0x290] sm:$0xff]
        %v365 = vld [vmem:[%s232 + $0x298] sm:$0xff]
        %v366 = vld [vmem:[%s232 + $0x2a0] sm:$0xff]
        %v367 = vld [vmem:[%s232 + $0x2a8] sm:$0xff]
        %v368 = vld [vmem:[%s232 + $0x2b0] sm:$0xff]
        %v369 = vld [vmem:[%s232 + $0x2b8] sm:$0xff]
        %v370 = vld [vmem:[%s232 + $0x2c0] sm:$0xff]
        %v371 = vld [vmem:[%s232 + $0x2c8] sm:$0xff]
        %v372 = vld [vmem:[%s232 + $0x2d0] sm:$0xff]
        %v373 = vld [vmem:[%s232 + $0x2d8] sm:$0xff]
        %v374 = vld [vmem:[%s232 + $0x2e0] sm:$0xff]
        %v375 = vld [vmem:[%s232 + $0x2e8] sm:$0xff]
        %v376 = vld [vmem:[%s232 + $0x2f0] sm:$0xff]
        %v377 = vld [vmem:[%s232 + $0x2f8] sm:$0xff]
        %v378 = vld [vmem:[%s232 + $0x300] sm:$0xff]
        %v379 = vld [vmem:[%s232 + $0x308] sm:$0xff]
        %v380 = vld [vmem:[%s232 + $0x310] sm:$0xff]
        %v381 = vld [vmem:[%s232 + $0x318] sm:$0xff]
        %v382 = vld [vmem:[%s232 + $0x320] sm:$0xff]
        %v383 = vld [vmem:[%s232 + $0x328] sm:$0xff]
        %v384 = vld [vmem:[%s232 + $0x330] sm:$0xff]
        %v385 = vld [vmem:[%s232 + $0x338] sm:$0xff]
        %v386 = vld [vmem:[%s232 + $0x340] sm:$0xff]
        %v387 = vld [vmem:[%s232 + $0x348] sm:$0xff]
        %v388 = vld [vmem:[%s232 + $0x350] sm:$0xff]
        %v389 = vld [vmem:[%s232 + $0x358] sm:$0xff]
        %v390 = vld [vmem:[%s232 + $0x360] sm:$0xff]
        %v391 = vld [vmem:[%s232 + $0x368] sm:$0xff]
        %v392 = vld [vmem:[%s232 + $0x370] sm:$0xff]
        %v393 = vld [vmem:[%s232 + $0x378] sm:$0xff]
        %v394 = vld [vmem:[%s232 + $0x380] sm:$0xff]
        %v395 = vld [vmem:[%s232 + $0x388] sm:$0xff]
        %v396 = vld [vmem:[%s232 + $0x390] sm:$0xff]
        %v397 = vld [vmem:[%s232 + $0x398] sm:$0xff]
        %v398 = vld [vmem:[%s232 + $0x3a0] sm:$0xff]
        %v399 = vld [vmem:[%s232 + $0x3a8] sm:$0xff]
        %v400 = vld [vmem:[%s232 + $0x3b0] sm:$0xff]
        %v401 = vld [vmem:[%s232 + $0x3b8] sm:$0xff]
        %v402 = vld [vmem:[%s232 + $0x3c0] sm:$0xff]
        %v403 = vld [vmem:[%s232 + $0x3c8] sm:$0xff]
        %v404 = vld [vmem:[%s232 + $0x3d0] sm:$0xff]
        %v405 = vld [vmem:[%s232 + $0x3d8] sm:$0xff]
        %v406 = vld [vmem:[%s232 + $0x3e0] sm:$0xff]
        %v407 = vld [vmem:[%s232 + $0x3e8] sm:$0xff]
        %v408 = vld [vmem:[%s232 + $0x3f0] sm:$0xff]
        %v409 = vld [vmem:[%s232 + $0x3f8] sm:$0xff]
        %v410 = vld [vmem:[%s232 + $0x400] sm:$0xff]
        %v411 = vld [vmem:[%s232 + $0x408] sm:$0xff]
        %v412 = vld [vmem:[%s232 + $0x410] sm:$0xff]
        %v413 = vld [vmem:[%s232 + $0x418] sm:$0xff]
        %v414 = vld [vmem:[%s232 + $0x420] sm:$0xff]
        %v415 = vld [vmem:[%s232 + $0x428] sm:$0xff]
        %v416 = vld [vmem:[%s232 + $0x430] sm:$0xff]
        %v417 = vld [vmem:[%s232 + $0x438] sm:$0xff]
        %v418 = vld [vmem:[%s232 + $0x440] sm:$0xff]
        %v419 = vld [vmem:[%s232 + $0x448] sm:$0xff]
        %v420 = vld [vmem:[%s232 + $0x450] sm:$0xff]
        %v421 = vld [vmem:[%s232 + $0x458] sm:$0xff]
        %v422 = vld [vmem:[%s232 + $0x460] sm:$0xff]
        %v423 = vld [vmem:[%s232 + $0x468] sm:$0xff]
        %v424 = vld [vmem:[%s232 + $0x470] sm:$0xff]
        %v425 = vld [vmem:[%s232 + $0x478] sm:$0xff]
        %v426 = vld [vmem:[%s232 + $0x480] sm:$0xff]
        %v427 = vld [vmem:[%s232 + $0x488] sm:$0xff]
        %v428 = vld [vmem:[%s232 + $0x490] sm:$0xff]
        %v429 = vld [vmem:[%s232 + $0x498] sm:$0xff]
        %v430 = vld [vmem:[%s232 + $0x4a0] sm:$0xff]
        %v431 = vld [vmem:[%s232 + $0x4a8] sm:$0xff]
        %v432 = vld [vmem:[%s232 + $0x4b0] sm:$0xff]
        %v433 = vld [vmem:[%s232 + $0x4b8] sm:$0xff]
        %v434 = vld [vmem:[%s232 + $0x4c0] sm:$0xff]
        %v435 = vld [vmem:[%s232 + $0x4c8] sm:$0xff]
        %v436 = vld [vmem:[%s232 + $0x4d0] sm:$0xff]
        %v437 = vld [vmem:[%s232 + $0x4d8] sm:$0xff]
        %v438 = vld [vmem:[%s232 + $0x4e0] sm:$0xff]
        %v439 = vld [vmem:[%s232 + $0x4e8] sm:$0xff]
        %v440 = vld [vmem:[%s232 + $0x4f0] sm:$0xff]
        %v441 = vld [vmem:[%s232 + $0x4f8] sm:$0xff]
        %v442 = vld [vmem:[%s232 + $0x500] sm:$0xff]
        %v443 = vld [vmem:[%s232 + $0x508] sm:$0xff]
        %v444 = vld [vmem:[%s232 + $0x510] sm:$0xff]
        %v445 = vld [vmem:[%s232 + $0x518] sm:$0xff]
        %v446 = vld [vmem:[%s232 + $0x520] sm:$0xff]
        %v447 = vld [vmem:[%s232 + $0x528] sm:$0xff]
        %v448 = vld [vmem:[%s232 + $0x530] sm:$0xff]
        %v449 = vld [vmem:[%s232 + $0x538] sm:$0xff]
        %v450 = vld [vmem:[%s232 + $0x540] sm:$0xff]
        %v451 = vld [vmem:[%s232 + $0x548] sm:$0xff]
        %v452 = vld [vmem:[%s232 + $0x550] sm:$0xff]
        %v453 = vld [vmem:[%s232 + $0x558] sm:$0xff]
        %v454 = vld [vmem:[%s232 + $0x560] sm:$0xff]
        %v455 = vld [vmem:[%s232 + $0x568] sm:$0xff]
        %v456 = vld [vmem:[%s232 + $0x570] sm:$0xff]
        %v457 = vld [vmem:[%s232 + $0x578] sm:$0xff]
        %v458 = vld [vmem:[%s232 + $0x580] sm:$0xff]
        %v459 = vld [vmem:[%s232 + $0x588] sm:$0xff]
        %v460 = vld [vmem:[%s232 + $0x590] sm:$0xff]
        %v461 = vld [vmem:[%s232 + $0x598] sm:$0xff]
        %v462 = vld [vmem:[%s232 + $0x5a0] sm:$0xff]
        %v463 = vld [vmem:[%s232 + $0x5a8] sm:$0xff]
        %v464 = vld [vmem:[%s232 + $0x5b0] sm:$0xff]
        %v465 = vld [vmem:[%s232 + $0x5b8] sm:$0xff]
        %v466 = vld [vmem:[%s232 + $0x5c0] sm:$0xff]
        %v467 = vld [vmem:[%s232 + $0x5c8] sm:$0xff]
        %v468 = vld [vmem:[%s232 + $0x5d0] sm:$0xff]
        %v469 = vld [vmem:[%s232 + $0x5d8] sm:$0xff]
        %v470 = vld [vmem:[%s232 + $0x5e0] sm:$0xff]
        %v471 = vld [vmem:[%s232 + $0x5e8] sm:$0xff]
        %v472 = vld [vmem:[%s232 + $0x5f0] sm:$0xff]
        %v473 = vld [vmem:[%s232 + $0x5f8] sm:$0xff]
        %v474 = vld [vmem:[%s232 + $0x600] sm:$0xff]
        %v475 = vld [vmem:[%s232 + $0x608] sm:$0xff]
        %v476 = vld [vmem:[%s232 + $0x610] sm:$0xff]
        %v477 = vld [vmem:[%s232 + $0x618] sm:$0xff]
        %v478 = vld [vmem:[%s232 + $0x620] sm:$0xff]
        %v479 = vld [vmem:[%s232 + $0x628] sm:$0xff]
        %v480 = vld [vmem:[%s232 + $0x630] sm:$0xff]
        %v481 = vld [vmem:[%s232 + $0x638] sm:$0xff]
        %v482 = vld [vmem:[%s232 + $0x640] sm:$0xff]
        %v483 = vld [vmem:[%s232 + $0x648] sm:$0xff]
        %v484 = vld [vmem:[%s232 + $0x650] sm:$0xff]
        %v485 = vld [vmem:[%s232 + $0x658] sm:$0xff]
        %v486 = vld [vmem:[%s232 + $0x660] sm:$0xff]
        %v487 = vld [vmem:[%s232 + $0x668] sm:$0xff]
        %v488 = vld [vmem:[%s232 + $0x670] sm:$0xff]
        %v489 = vld [vmem:[%s232 + $0x678] sm:$0xff]
        %v490 = vld [vmem:[%s232 + $0x680] sm:$0xff]
        %v491 = vld [vmem:[%s232 + $0x688] sm:$0xff]
        %v492 = vld [vmem:[%s232 + $0x690] sm:$0xff]
        %v493 = vld [vmem:[%s232 + $0x698] sm:$0xff]
        %v494 = vld [vmem:[%s232 + $0x6a0] sm:$0xff]
        %v495 = vld [vmem:[%s232 + $0x6a8] sm:$0xff]
        %v496 = vld [vmem:[%s232 + $0x6b0] sm:$0xff]
        %v497 = vld [vmem:[%s232 + $0x6b8] sm:$0xff]
        %v498 = vld [vmem:[%s232 + $0x6c0] sm:$0xff]
        %v499 = vld [vmem:[%s232 + $0x6c8] sm:$0xff]
        %v500 = vld [vmem:[%s232 + $0x6d0] sm:$0xff]
        %v501 = vld [vmem:[%s232 + $0x6d8] sm:$0xff]
        %v502 = vld [vmem:[%s232 + $0x6e0] sm:$0xff]
        %v503 = vld [vmem:[%s232 + $0x6e8] sm:$0xff]
        %v504 = vld [vmem:[%s232 + $0x6f0] sm:$0xff]
        %v505 = vld [vmem:[%s232 + $0x6f8] sm:$0xff]
        %v506 = vld [vmem:[%s232 + $0x700] sm:$0xff]
        %v507 = vld [vmem:[%s232 + $0x708] sm:$0xff]
        %v508 = vld [vmem:[%s232 + $0x710] sm:$0xff]
        %v509 = vld [vmem:[%s232 + $0x718] sm:$0xff]
        %v510 = vld [vmem:[%s232 + $0x720] sm:$0xff]
        %v511 = vld [vmem:[%s232 + $0x728] sm:$0xff]
        %v512 = vld [vmem:[%s232 + $0x730] sm:$0xff]
        %v513 = vld [vmem:[%s232 + $0x738] sm:$0xff]
        %v514 = vld [vmem:[%s232 + $0x740] sm:$0xff]
        %v515 = vld [vmem:[%s232 + $0x748] sm:$0xff]
        %v516 = vld [vmem:[%s232 + $0x750] sm:$0xff]
        %v517 = vld [vmem:[%s232 + $0x758] sm:$0xff]
        %v518 = vld [vmem:[%s232 + $0x760] sm:$0xff]
        %v519 = vld [vmem:[%s232 + $0x768] sm:$0xff]
        %v520 = vld [vmem:[%s232 + $0x770] sm:$0xff]
        %v521 = vld [vmem:[%s232 + $0x778] sm:$0xff]
        %v522 = vld [vmem:[%s232 + $0x780] sm:$0xff]
        %v523 = vld [vmem:[%s232 + $0x788] sm:$0xff]
        %v524 = vld [vmem:[%s232 + $0x790] sm:$0xff]
        %v525 = vld [vmem:[%s232 + $0x798] sm:$0xff]
        %v526 = vld [vmem:[%s232 + $0x7a0] sm:$0xff]
        %v527 = vld [vmem:[%s232 + $0x7a8] sm:$0xff]
        %v528 = vld [vmem:[%s232 + $0x7b0] sm:$0xff]
        %v529 = vld [vmem:[%s232 + $0x7b8] sm:$0xff]
        %v530 = vld [vmem:[%s232 + $0x7c0] sm:$0xff]
        %v531 = vld [vmem:[%s232 + $0x7c8] sm:$0xff]
        %v532 = vld [vmem:[%s232 + $0x7d0] sm:$0xff]
        %v533 = vld [vmem:[%s232 + $0x7d8] sm:$0xff]
        %v534 = vld [vmem:[%s232 + $0x7e0] sm:$0xff]
        %v535 = vld [vmem:[%s232 + $0x7e8] sm:$0xff]
        %v536 = vld [vmem:[%s232 + $0x7f0] sm:$0xff]
        %v537 = vld [vmem:[%s232 + $0x7f8] sm:$0xff]
        %542 = vst [vmem:[#allocation1] ss:$4 sm:$0xff] %v278
        %s543 = scalar_lea.vmem [#allocation1], 32
        %544 = vst [vmem:[%s543] ss:$4 sm:$0xff] %v279
        %v545 = vld.sshfl [vmem:[#allocation1] sm:$0xff pattern:$0x73625140]
        %v546 = vld.sshfl [vmem:[#allocation1 + $0x8] sm:$0xff pattern:$0x73625140]
        %v547 = vld.sshfl [vmem:[#allocation1 + $0x10] sm:$0xff pattern:$0x73625140]
        %v548 = vld.sshfl [vmem:[#allocation1 + $0x18] sm:$0xff pattern:$0x73625140]
        %v549 = vld.sshfl [vmem:[#allocation1 + $0x20] sm:$0xff pattern:$0x73625140]
        %v550 = vld.sshfl [vmem:[#allocation1 + $0x28] sm:$0xff pattern:$0x73625140]
        %v551 = vld.sshfl [vmem:[#allocation1 + $0x30] sm:$0xff pattern:$0x73625140]
        %v552 = vld.sshfl [vmem:[#allocation1 + $0x38] sm:$0xff pattern:$0x73625140]
        %553 = vst [vmem:[#allocation1] ss:$4 sm:$0xff] %v280
        %554 = vst [vmem:[%s543] ss:$4 sm:$0xff] %v281
        %v555 = vld.sshfl [vmem:[#allocation1] sm:$0xff pattern:$0x73625140]
        %v556 = vld.sshfl [vmem:[#allocation1 + $0x8] sm:$0xff pattern:$0x73625140]
        %v557 = vld.sshfl [vmem:[#allocation1 + $0x10] sm:$0xff pattern:$0x73625140]
        %v558 = vld.sshfl [vmem:[#allocation1 + $0x18] sm:$0xff pattern:$0x73625140]
        %v559 = vld.sshfl [vmem:[#allocation1 + $0x20] sm:$0xff pattern:$0x73625140]
        %v560 = vld.sshfl [vmem:[#allocation1 + $0x28] sm:$0xff pattern:$0x73625140]
        %v561 = vld.sshfl [vmem:[#allocation1 + $0x30] sm:$0xff pattern:$0x73625140]
        %v562 = vld.sshfl [vmem:[#allocation1 + $0x38] sm:$0xff pattern:$0x73625140]
        %579 = vmatpush.msra.mxu0 %v297
        %580 = vmatpush.msra.mxu0 %v296
        %581 = vmatpush.msra.mxu0 %v295
        %582 = vmatpush.msra.mxu0 %v294
        %583 = vmatpush.msra.mxu0 %v293
        %584 = vmatpush.msra.mxu0 %v292
        %585 = vmatpush.msra.mxu0 %v291
        %586 = vmatpush.msra.mxu0 %v290
        %587 = vmatpush.msra.mxu0 %v289
        %588 = vmatpush.msra.mxu0 %v288
        %589 = vmatpush.msra.mxu0 %v287
        %590 = vmatpush.msra.mxu0 %v286
        %591 = vmatpush.msra.mxu0 %v285
        %592 = vmatpush.msra.mxu0 %v284
        %593 = vmatpush.msra.mxu0 %v283
        %594 = vmatpush.msra.mxu0 %v282
        %595 = vmatmul.f32.gmra.mxu0 %v545
        %v596 = vpop.f32.mrf.mxu0
        %v597 = vadd.f32 0.0, %v596
        %598 = vdwg.mxu0
        %599 = vmatpush.msra.mxu0 %v313
        %600 = vmatpush.msra.mxu0 %v312
        %601 = vmatpush.msra.mxu0 %v311
        %602 = vmatpush.msra.mxu0 %v310
        %603 = vmatpush.msra.mxu0 %v309
        %604 = vmatpush.msra.mxu0 %v308
        %605 = vmatpush.msra.mxu0 %v307
        %606 = vmatpush.msra.mxu0 %v306
        %607 = vmatpush.msra.mxu0 %v305
        %608 = vmatpush.msra.mxu0 %v304
        %609 = vmatpush.msra.mxu0 %v303
        %610 = vmatpush.msra.mxu0 %v302
        %611 = vmatpush.msra.mxu0 %v301
        %612 = vmatpush.msra.mxu0 %v300
        %613 = vmatpush.msra.mxu0 %v299
        %614 = vmatpush.msra.mxu0 %v298
        %615 = vmatmul.f32.gmra.mxu0 %v546
        %v616 = vpop.f32.mrf.mxu0
        %v617 = vadd.f32 %v597, %v616
        %618 = vdwg.mxu0
        %619 = vmatpush.msra.mxu0 %v329
        %620 = vmatpush.msra.mxu0 %v328
        %621 = vmatpush.msra.mxu0 %v327
        %622 = vmatpush.msra.mxu0 %v326
        %623 = vmatpush.msra.mxu0 %v325
        %624 = vmatpush.msra.mxu0 %v324
        %625 = vmatpush.msra.mxu0 %v323
        %626 = vmatpush.msra.mxu0 %v322
        %627 = vmatpush.msra.mxu0 %v321
        %628 = vmatpush.msra.mxu0 %v320
        %629 = vmatpush.msra.mxu0 %v319
        %630 = vmatpush.msra.mxu0 %v318
        %631 = vmatpush.msra.mxu0 %v317
        %632 = vmatpush.msra.mxu0 %v316
        %633 = vmatpush.msra.mxu0 %v315
        %634 = vmatpush.msra.mxu0 %v314
        %635 = vmatmul.f32.gmra.mxu0 %v547
        %v636 = vpop.f32.mrf.mxu0
        %v637 = vadd.f32 %v617, %v636
        %638 = vdwg.mxu0
        %639 = vmatpush.msra.mxu0 %v345
        %640 = vmatpush.msra.mxu0 %v344
        %641 = vmatpush.msra.mxu0 %v343
        %642 = vmatpush.msra.mxu0 %v342
        %643 = vmatpush.msra.mxu0 %v341
        %644 = vmatpush.msra.mxu0 %v340
        %645 = vmatpush.msra.mxu0 %v339
        %646 = vmatpush.msra.mxu0 %v338
        %647 = vmatpush.msra.mxu0 %v337
        %648 = vmatpush.msra.mxu0 %v336
        %649 = vmatpush.msra.mxu0 %v335
        %650 = vmatpush.msra.mxu0 %v334
        %651 = vmatpush.msra.mxu0 %v333
        %652 = vmatpush.msra.mxu0 %v332
        %653 = vmatpush.msra.mxu0 %v331
        %654 = vmatpush.msra.mxu0 %v330
        %655 = vmatmul.f32.gmra.mxu0 %v548
        %v656 = vpop.f32.mrf.mxu0
        %v657 = vadd.f32 %v637, %v656
        %658 = vdwg.mxu0
        %659 = vmatpush.msra.mxu0 %v361
        %660 = vmatpush.msra.mxu0 %v360
        %661 = vmatpush.msra.mxu0 %v359
        %662 = vmatpush.msra.mxu0 %v358
        %663 = vmatpush.msra.mxu0 %v357
        %664 = vmatpush.msra.mxu0 %v356
        %665 = vmatpush.msra.mxu0 %v355
        %666 = vmatpush.msra.mxu0 %v354
        %667 = vmatpush.msra.mxu0 %v353
        %668 = vmatpush.msra.mxu0 %v352
        %669 = vmatpush.msra.mxu0 %v351
        %670 = vmatpush.msra.mxu0 %v350
        %671 = vmatpush.msra.mxu0 %v349
        %672 = vmatpush.msra.mxu0 %v348
        %673 = vmatpush.msra.mxu0 %v347
        %674 = vmatpush.msra.mxu0 %v346
        %675 = vmatmul.f32.gmra.mxu0 %v549
        %v676 = vpop.f32.mrf.mxu0
        %v677 = vadd.f32 %v657, %v676
        %678 = vdwg.mxu0
        %679 = vmatpush.msra.mxu0 %v377
        %680 = vmatpush.msra.mxu0 %v376
        %681 = vmatpush.msra.mxu0 %v375
        %682 = vmatpush.msra.mxu0 %v374
        %683 = vmatpush.msra.mxu0 %v373
        %684 = vmatpush.msra.mxu0 %v372
        %685 = vmatpush.msra.mxu0 %v371
        %686 = vmatpush.msra.mxu0 %v370
        %687 = vmatpush.msra.mxu0 %v369
        %688 = vmatpush.msra.mxu0 %v368
        %689 = vmatpush.msra.mxu0 %v367
        %690 = vmatpush.msra.mxu0 %v366
        %691 = vmatpush.msra.mxu0 %v365
        %692 = vmatpush.msra.mxu0 %v364
        %693 = vmatpush.msra.mxu0 %v363
        %694 = vmatpush.msra.mxu0 %v362
        %695 = vmatmul.f32.gmra.mxu0 %v550
        %v696 = vpop.f32.mrf.mxu0
        %v697 = vadd.f32 %v677, %v696
        %698 = vdwg.mxu0
        %699 = vmatpush.msra.mxu0 %v393
        %700 = vmatpush.msra.mxu0 %v392
        %701 = vmatpush.msra.mxu0 %v391
        %702 = vmatpush.msra.mxu0 %v390
        %703 = vmatpush.msra.mxu0 %v389
        %704 = vmatpush.msra.mxu0 %v388
        %705 = vmatpush.msra.mxu0 %v387
        %706 = vmatpush.msra.mxu0 %v386
        %707 = vmatpush.msra.mxu0 %v385
        %708 = vmatpush.msra.mxu0 %v384
        %709 = vmatpush.msra.mxu0 %v383
        %710 = vmatpush.msra.mxu0 %v382
        %711 = vmatpush.msra.mxu0 %v381
        %712 = vmatpush.msra.mxu0 %v380
        %713 = vmatpush.msra.mxu0 %v379
        %714 = vmatpush.msra.mxu0 %v378
        %715 = vmatmul.f32.gmra.mxu0 %v551
        %v716 = vpop.f32.mrf.mxu0
        %v717 = vadd.f32 %v697, %v716
        %718 = vdwg.mxu0
        %719 = vmatpush.msra.mxu0 %v409
        %720 = vmatpush.msra.mxu0 %v408
        %721 = vmatpush.msra.mxu0 %v407
        %722 = vmatpush.msra.mxu0 %v406
        %723 = vmatpush.msra.mxu0 %v405
        %724 = vmatpush.msra.mxu0 %v404
        %725 = vmatpush.msra.mxu0 %v403
        %726 = vmatpush.msra.mxu0 %v402
        %727 = vmatpush.msra.mxu0 %v401
        %728 = vmatpush.msra.mxu0 %v400
        %729 = vmatpush.msra.mxu0 %v399
        %730 = vmatpush.msra.mxu0 %v398
        %731 = vmatpush.msra.mxu0 %v397
        %732 = vmatpush.msra.mxu0 %v396
        %733 = vmatpush.msra.mxu0 %v395
        %734 = vmatpush.msra.mxu0 %v394
        %735 = vmatmul.f32.gmra.mxu0 %v552
        %v736 = vpop.f32.mrf.mxu0
        %v737 = vadd.f32 %v717, %v736
        %738 = vdwg.mxu0
        %739 = vmatpush.msra.mxu0 %v425
        %740 = vmatpush.msra.mxu0 %v424
        %741 = vmatpush.msra.mxu0 %v423
        %742 = vmatpush.msra.mxu0 %v422
        %743 = vmatpush.msra.mxu0 %v421
        %744 = vmatpush.msra.mxu0 %v420
        %745 = vmatpush.msra.mxu0 %v419
        %746 = vmatpush.msra.mxu0 %v418
        %747 = vmatpush.msra.mxu0 %v417
        %748 = vmatpush.msra.mxu0 %v416
        %749 = vmatpush.msra.mxu0 %v415
        %750 = vmatpush.msra.mxu0 %v414
        %751 = vmatpush.msra.mxu0 %v413
        %752 = vmatpush.msra.mxu0 %v412
        %753 = vmatpush.msra.mxu0 %v411
        %754 = vmatpush.msra.mxu0 %v410
        %755 = vmatmul.f32.gmra.mxu0 %v555
        %v756 = vpop.f32.mrf.mxu0
        %v757 = vadd.f32 %v737, %v756
        %758 = vdwg.mxu0
        %759 = vmatpush.msra.mxu0 %v441
        %760 = vmatpush.msra.mxu0 %v440
        %761 = vmatpush.msra.mxu0 %v439
        %762 = vmatpush.msra.mxu0 %v438
        %763 = vmatpush.msra.mxu0 %v437
        %764 = vmatpush.msra.mxu0 %v436
        %765 = vmatpush.msra.mxu0 %v435
        %766 = vmatpush.msra.mxu0 %v434
        %767 = vmatpush.msra.mxu0 %v433
        %768 = vmatpush.msra.mxu0 %v432
        %769 = vmatpush.msra.mxu0 %v431
        %770 = vmatpush.msra.mxu0 %v430
        %771 = vmatpush.msra.mxu0 %v429
        %772 = vmatpush.msra.mxu0 %v428
        %773 = vmatpush.msra.mxu0 %v427
        %774 = vmatpush.msra.mxu0 %v426
        %775 = vmatmul.f32.gmra.mxu0 %v556
        %v776 = vpop.f32.mrf.mxu0
        %v777 = vadd.f32 %v757, %v776
        %778 = vdwg.mxu0
        %779 = vmatpush.msra.mxu0 %v457
        %780 = vmatpush.msra.mxu0 %v456
        %781 = vmatpush.msra.mxu0 %v455
        %782 = vmatpush.msra.mxu0 %v454
        %783 = vmatpush.msra.mxu0 %v453
        %784 = vmatpush.msra.mxu0 %v452
        %785 = vmatpush.msra.mxu0 %v451
        %786 = vmatpush.msra.mxu0 %v450
        %787 = vmatpush.msra.mxu0 %v449
        %788 = vmatpush.msra.mxu0 %v448
        %789 = vmatpush.msra.mxu0 %v447
        %790 = vmatpush.msra.mxu0 %v446
        %791 = vmatpush.msra.mxu0 %v445
        %792 = vmatpush.msra.mxu0 %v444
        %793 = vmatpush.msra.mxu0 %v443
        %794 = vmatpush.msra.mxu0 %v442
        %795 = vmatmul.f32.gmra.mxu0 %v557
        %v796 = vpop.f32.mrf.mxu0
        %v797 = vadd.f32 %v777, %v796
        %798 = vdwg.mxu0
        %799 = vmatpush.msra.mxu0 %v473
        %800 = vmatpush.msra.mxu0 %v472
        %801 = vmatpush.msra.mxu0 %v471
        %802 = vmatpush.msra.mxu0 %v470
        %803 = vmatpush.msra.mxu0 %v469
        %804 = vmatpush.msra.mxu0 %v468
        %805 = vmatpush.msra.mxu0 %v467
        %806 = vmatpush.msra.mxu0 %v466
        %807 = vmatpush.msra.mxu0 %v465
        %808 = vmatpush.msra.mxu0 %v464
        %809 = vmatpush.msra.mxu0 %v463
        %810 = vmatpush.msra.mxu0 %v462
        %811 = vmatpush.msra.mxu0 %v461
        %812 = vmatpush.msra.mxu0 %v460
        %813 = vmatpush.msra.mxu0 %v459
        %814 = vmatpush.msra.mxu0 %v458
        %815 = vmatmul.f32.gmra.mxu0 %v558
        %v816 = vpop.f32.mrf.mxu0
        %v817 = vadd.f32 %v797, %v816
        %818 = vdwg.mxu0
        %819 = vmatpush.msra.mxu0 %v489
        %820 = vmatpush.msra.mxu0 %v488
        %821 = vmatpush.msra.mxu0 %v487
        %822 = vmatpush.msra.mxu0 %v486
        %823 = vmatpush.msra.mxu0 %v485
        %824 = vmatpush.msra.mxu0 %v484
        %825 = vmatpush.msra.mxu0 %v483
        %826 = vmatpush.msra.mxu0 %v482
        %827 = vmatpush.msra.mxu0 %v481
        %828 = vmatpush.msra.mxu0 %v480
        %829 = vmatpush.msra.mxu0 %v479
        %830 = vmatpush.msra.mxu0 %v478
        %831 = vmatpush.msra.mxu0 %v477
        %832 = vmatpush.msra.mxu0 %v476
        %833 = vmatpush.msra.mxu0 %v475
        %834 = vmatpush.msra.mxu0 %v474
        %835 = vmatmul.f32.gmra.mxu0 %v559
        %v836 = vpop.f32.mrf.mxu0
        %v837 = vadd.f32 %v817, %v836
        %838 = vdwg.mxu0
        %839 = vmatpush.msra.mxu0 %v505
        %840 = vmatpush.msra.mxu0 %v504
        %841 = vmatpush.msra.mxu0 %v503
        %842 = vmatpush.msra.mxu0 %v502
        %843 = vmatpush.msra.mxu0 %v501
        %844 = vmatpush.msra.mxu0 %v500
        %845 = vmatpush.msra.mxu0 %v499
        %846 = vmatpush.msra.mxu0 %v498
        %847 = vmatpush.msra.mxu0 %v497
        %848 = vmatpush.msra.mxu0 %v496
        %849 = vmatpush.msra.mxu0 %v495
        %850 = vmatpush.msra.mxu0 %v494
        %851 = vmatpush.msra.mxu0 %v493
        %852 = vmatpush.msra.mxu0 %v492
        %853 = vmatpush.msra.mxu0 %v491
        %854 = vmatpush.msra.mxu0 %v490
        %855 = vmatmul.f32.gmra.mxu0 %v560
        %v856 = vpop.f32.mrf.mxu0
        %v857 = vadd.f32 %v837, %v856
        %858 = vdwg.mxu0
        %859 = vmatpush.msra.mxu0 %v521
        %860 = vmatpush.msra.mxu0 %v520
        %861 = vmatpush.msra.mxu0 %v519
        %862 = vmatpush.msra.mxu0 %v518
        %863 = vmatpush.msra.mxu0 %v517
        %864 = vmatpush.msra.mxu0 %v516
        %865 = vmatpush.msra.mxu0 %v515
        %866 = vmatpush.msra.mxu0 %v514
        %867 = vmatpush.msra.mxu0 %v513
        %868 = vmatpush.msra.mxu0 %v512
        %869 = vmatpush.msra.mxu0 %v511
        %870 = vmatpush.msra.mxu0 %v510
        %871 = vmatpush.msra.mxu0 %v509
        %872 = vmatpush.msra.mxu0 %v508
        %873 = vmatpush.msra.mxu0 %v507
        %874 = vmatpush.msra.mxu0 %v506
        %875 = vmatmul.f32.gmra.mxu0 %v561
        %v876 = vpop.f32.mrf.mxu0
        %v877 = vadd.f32 %v857, %v876
        %878 = vdwg.mxu0
        %879 = vmatpush.msra.mxu0 %v537
        %880 = vmatpush.msra.mxu0 %v536
        %881 = vmatpush.msra.mxu0 %v535
        %882 = vmatpush.msra.mxu0 %v534
        %883 = vmatpush.msra.mxu0 %v533
        %884 = vmatpush.msra.mxu0 %v532
        %885 = vmatpush.msra.mxu0 %v531
        %886 = vmatpush.msra.mxu0 %v530
        %887 = vmatpush.msra.mxu0 %v529
        %888 = vmatpush.msra.mxu0 %v528
        %889 = vmatpush.msra.mxu0 %v527
        %890 = vmatpush.msra.mxu0 %v526
        %891 = vmatpush.msra.mxu0 %v525
        %892 = vmatpush.msra.mxu0 %v524
        %893 = vmatpush.msra.mxu0 %v523
        %894 = vmatpush.msra.mxu0 %v522
        %895 = vmatmul.f32.gmra.mxu0 %v562
        %v896 = vpop.f32.mrf.mxu0
        %v897 = vadd.f32 %v877, %v896
        %898 = vdwg.mxu0
        %v899 = vadd.f32 %v277, %v897
        %900 = vst [vmem:[#allocation2] sm:$0x3] %v899
        %p901 = scmp.eq.s32.totalorder %s22, 3
        // Predicated region
        $region53: #{simple_cnn_forward.3} parent=39 // pred_check
          %p902 = pneg %p901
        $region54: #{simple_cnn_forward.3} parent=39 // pred_check_branch
          %904 = sbr.rel (%p902) target = $region56
        $region55: #{simple_cnn_forward.3} parent=39 // pred_region
          %v905 = vld [vmem:[#allocation2] sm:$0x3]
          %v906 = vld [vmem:[#allocation6] sm:$0x1]
          %v908 = vperm.slane %v906, 0
          %v910 = vadd.f32 %v905, %v908
          %v911 = vmax.f32 %v910, 0.0
          %v912 = vld [vmem:[%s3] sm:$0xff]
          %v913 = vld [vmem:[%s3 + $0x8] sm:$0xff]
          %v914 = vld [vmem:[%s3 + $0x10] sm:$0xff]
          %v915 = vld [vmem:[%s3 + $0x18] sm:$0xff]
          %v916 = vld [vmem:[%s3 + $0x20] sm:$0xff]
          %v917 = vld [vmem:[%s3 + $0x28] sm:$0xff]
          %v918 = vld [vmem:[%s3 + $0x30] sm:$0xff]
          %v919 = vld [vmem:[%s3 + $0x38] sm:$0xff]
          %v920 = vld [vmem:[%s3 + $0x40] sm:$0xff]
          %v921 = vld [vmem:[%s3 + $0x48] sm:$0xff]
          %v922 = vld [vmem:[%s3 + $0x50] sm:$0xff]
          %v923 = vld [vmem:[%s3 + $0x58] sm:$0xff]
          %v924 = vld [vmem:[%s3 + $0x60] sm:$0xff]
          %v925 = vld [vmem:[%s3 + $0x68] sm:$0xff]
          %v926 = vld [vmem:[%s3 + $0x70] sm:$0xff]
          %v927 = vld [vmem:[%s3 + $0x78] sm:$0xff]
          %v928 = vld [vmem:[#allocation3] sm:$0x1]
          %v930 = vperm.slane %v928, 0
          %932 = vmatpush.msra.mxu0 %v927
          %933 = vmatpush.msra.mxu0 %v926
          %934 = vmatpush.msra.mxu0 %v925
          %935 = vmatpush.msra.mxu0 %v924
          %936 = vmatpush.msra.mxu0 %v923
          %937 = vmatpush.msra.mxu0 %v922
          %938 = vmatpush.msra.mxu0 %v921
          %939 = vmatpush.msra.mxu0 %v920
          %940 = vmatpush.msra.mxu0 %v919
          %941 = vmatpush.msra.mxu0 %v918
          %942 = vmatpush.msra.mxu0 %v917
          %943 = vmatpush.msra.mxu0 %v916
          %944 = vmatpush.msra.mxu0 %v915
          %945 = vmatpush.msra.mxu0 %v914
          %946 = vmatpush.msra.mxu0 %v913
          %947 = vmatpush.msra.mxu0 %v912
          %948 = vmatmul.f32.gmra.mxu0 %v911
          %v949 = vpop.f32.mrf.mxu0
          %v950 = vadd.f32 %v930, %v949
          %951 = vdwg.mxu0
          %vm952 = vcmask 1024
          %953 = vst.msk [vmem:[%s5] sm:$0x3] %vm952, %v950
        $region56: #{simple_cnn_forward.3} parent=39 // pred_fallthru
          _
        // Predicated region
        $region57: #{simple_cnn_forward.3} parent=39 // pred_check
          %p954 = pneg %p150
        $region58: #{simple_cnn_forward.3} parent=39 // pred_check_branch
          %956 = sbr.rel (%p954) target = $region60
        $region59: #{simple_cnn_forward.3} parent=39 // pred_region
          _
        $region60: #{simple_cnn_forward.3} parent=39 // pred_fallthru
          _
        // Predicated region
        $region61: #{simple_cnn_forward.3} parent=39 // pred_check
          %p957 = pneg %p150
        $region62: #{simple_cnn_forward.3} parent=39 // pred_check_branch
          %959 = sbr.rel (%p957) target = $region64
        $region63: #{simple_cnn_forward.3} parent=39 // pred_region
          _
        $region64: #{simple_cnn_forward.3} parent=39 // pred_fallthru
          _
      $region40: #{simple_cnn_forward.3} parent=5 // pred_fallthru
        _
      %p960 = scmp.le.s32.totalorder 2, %s17
      // Predicated region
      $region65: #{simple_cnn_forward.3} parent=5 // pred_check
        %p961 = pneg %p960
      $region66: #{simple_cnn_forward.3} parent=5 // pred_check_branch
        %963 = sbr.rel (%p961) target = $region68
      $region67: #{simple_cnn_forward.3} parent=5 // pred_region
        %s964 = ssub.s32 %s17, 2
      $region68: #{simple_cnn_forward.3} parent=5 // pred_fallthru
        _
    $region6: #{simple_cnn_forward.3} parent=1 // loop_footer
      %s21 = sadd.s32 1, %s17
    $region7: #{simple_cnn_forward.3} parent=1 // loop_footer_branch
      %16 = sbr.rel target = $region3
    $region8: #{simple_cnn_forward.3} parent=1 // loop_exit
      _
    %965 = vsyncpa [#allocation5], 1
    %s966 = scalar_lea.sflag [#allocation5], 1
    %967 = vsyncpa %s966, 1
    %968 = vsyncpa [#allocation7], 1

// kernel: simple_cnn_forward.2
$region0: #{simple_cnn_forward.2}
  #allocation0 [shape = 'u32[]', space=smem, size = 0x4, offset = 0x4, fixed_abs, tag = 'smem constant byte address 0x4 - core index']
  #allocation1 [shape = 'u32[72,128]{1,0:T(1,128)}', space=vmem, size = 0x9000, scoped, tag = 'internal scratch']
  #allocation2 [shape = 'f32[514,3]{1,0:T(8,128)}', space=vmem, size = 0x41000, scoped, tag = 'scratch operand']
  #allocation3 [shape = 'f32[512,32]{1,0:T(8,128)}', space=vmem, size = 0x40000, scoped, tag = 'scratch operand']
  #allocation4 [shape = 'f32[258,32]{1,0:T(8,128)}', space=vmem, size = 0x21000, scoped, tag = 'scratch operand']
  #allocation5 [shape = 'f32[256,64]{1,0:T(8,128)}', space=vmem, size = 0x20000, scoped, tag = 'scratch operand']
  %s0 = inlined_call_operand.vmem [shape: f32[2,512,3], index: 0, kind: input, shape index: {}]
  %s1 = inlined_call_operand.hbm [shape: f32[3,3,32], index: 1, kind: input, shape index: {}]
  %s2 = inlined_call_operand.hbm [shape: f32[1,32], index: 2, kind: input, shape index: {}]
  %s3 = inlined_call_operand.hbm [shape: f32[3,32,64], index: 3, kind: input, shape index: {}]
  %s4 = inlined_call_operand.hbm [shape: f32[1,64], index: 4, kind: input, shape index: {}]
  %s5 = inlined_call_operand.vmem [shape: f32[2,128,64], index: 5, kind: output, shape index: {}]
  %s6 = sld [smem:[#allocation0]]
  $region69: #{simple_cnn_forward.2} parent=0
    _
  %s8 = ssub.s32 1, %s6
  %s9 = scalar_select 0, %s8, %s6
  $region1: #{simple_cnn_forward.2} parent=0
    #allocation6 [shape = 'u8[6144]{0}', space=vmem, size = 0x1800, scoped, tag = 'input window, operand 1, single buffered']
    #allocation7 [shape = 's32[2]{0}', space=sflag, size = 0x8, scoped, tag = 'scoped memory for simple_cnn_forward.2']
    #allocation8 [shape = 'u8[512]{0}', space=vmem, size = 0x400, scoped, tag = 'input window, operand 2, single buffered']
    #allocation9 [shape = 's32[1]{0}', space=sflag, size = 0x4, scoped, tag = 'scoped memory for simple_cnn_forward.2']
    #allocation10 [shape = 'u8[49152]{0}', space=vmem, size = 0xc000, scoped, tag = 'input window, operand 3, single buffered']
    #allocation11 [shape = 'u8[512]{0}', space=vmem, size = 0x400, scoped, tag = 'input window, operand 4, single buffered']
    #allocation12 [shape = 's32[1]{0}', space=sflag, size = 0x4, scoped, tag = 'scoped memory for simple_cnn_forward.2']
    %10 = vsyncpa [#allocation7], 0
    %11 = vsyncpa [#allocation9], 0
    %12 = vsyncpa [#allocation12], 0
    loop: start=0, step=1, limit=4
    $region2: #{simple_cnn_forward.2} parent=1 // loop_pre_header
      _
    $region3: #{simple_cnn_forward.2} parent=1 // loop_header
      %s14 = sphi 0, %s18
      %p15 = scmp.ge.s32.totalorder %s14, 4
      %s24 = sphi 0, %s26
      %s27 = sphi 0, %s24
      %s28 = sphi 0, %s27
      %s44 = sphi 0, %s28
      %s48 = sphi 0, %s48
      %s50 = sphi 0, %s48
      %s51 = sphi 0, %s50
      %s65 = sphi 0, %s51
      %s69 = sphi 0, %s69
      %s71 = sphi 0, %s69
      %s72 = sphi 0, %s71
      %s86 = sphi 0, %s72
      %s90 = sphi 0, %s90
      %s92 = sphi 0, %s90
      %s93 = sphi 0, %s92
      %s107 = sphi 0, %s93
      %s111 = sphi 0, %s111
      %s113 = sphi 0, %s111
      %s114 = sphi 0, %s113
      %s128 = sphi 0, %s114
      %s134 = sphi 0, %s136
      %s137 = sphi 0, %s134
      %s138 = sphi 0, %s137
      %s154 = sphi 0, %s138
    $region4: #{simple_cnn_forward.2} parent=1 // loop_header_branch
      %17 = sbr.rel (%p15) target = $region8
    $region5: #{simple_cnn_forward.2} parent=1 // loop_body
      %s19 = ssub.s32 %s14, 1
      %s20 = ssub.s32 %s14, 2
      %s21 = sadd.s32 %s14, 1
      %s22 = ssub.s32 %s14, %s21
      %p23 = scmp.eq.s32.totalorder %s22, 0
      %s25 = sadd.s32 %s24, 1
      %s26 = scalar_select %p23, %s24, %s25
      %p29 = pneg %p23
      %p30 = scmp.eq.s32.totalorder %s14, 1
      %p31 = por %p29, %p30
      %p32 = scmp.ne.s32.totalorder %s24, %s27
      %p33 = scmp.eq.s32.totalorder %s14, 0
      %p34 = por %p32, %p33
      %p35 = scmp.ne.s32.totalorder %s24, %s27
      %p36 = scmp.eq.s32.totalorder %s19, 1
      %p37 = por %p35, %p36
      %p38 = scmp.ne.s32.totalorder %s27, %s28
      %p39 = scmp.eq.s32.totalorder %s19, 0
      %p40 = por %p38, %p39
      %p41 = scmp.ne.s32.totalorder %s27, %s28
      %p42 = scmp.eq.s32.totalorder %s20, 1
      %p43 = por %p41, %p42
      %p45 = scmp.ne.s32.totalorder %s28, %s44
      %p46 = scmp.eq.s32.totalorder %s20, 0
      %p47 = por %p45, %p46
      %s49 = sadd.s32 %s48, 1
      %p52 = scmp.eq.s32.totalorder %s14, 1
      %p53 = scmp.ne.s32.totalorder %s48, %s50
      %p54 = scmp.eq.s32.totalorder %s14, 0
      %p55 = por %p53, %p54
      %p56 = scmp.ne.s32.totalorder %s48, %s50
      %p57 = scmp.eq.s32.totalorder %s19, 1
      %p58 = por %p56, %p57
      %p59 = scmp.ne.s32.totalorder %s50, %s51
      %p60 = scmp.eq.s32.totalorder %s19, 0
      %p61 = por %p59, %p60
      %p62 = scmp.ne.s32.totalorder %s50, %s51
      %p63 = scmp.eq.s32.totalorder %s20, 1
      %p64 = por %p62, %p63
      %p66 = scmp.ne.s32.totalorder %s51, %s65
      %p67 = scmp.eq.s32.totalorder %s20, 0
      %p68 = por %p66, %p67
      %s70 = sadd.s32 %s69, 1
      %p73 = scmp.eq.s32.totalorder %s14, 1
      %p74 = scmp.ne.s32.totalorder %s69, %s71
      %p75 = scmp.eq.s32.totalorder %s14, 0
      %p76 = por %p74, %p75
      %p77 = scmp.ne.s32.totalorder %s69, %s71
      %p78 = scmp.eq.s32.totalorder %s19, 1
      %p79 = por %p77, %p78
      %p80 = scmp.ne.s32.totalorder %s71, %s72
      %p81 = scmp.eq.s32.totalorder %s19, 0
      %p82 = por %p80, %p81
      %p83 = scmp.ne.s32.totalorder %s71, %s72
      %p84 = scmp.eq.s32.totalorder %s20, 1
      %p85 = por %p83, %p84
      %p87 = scmp.ne.s32.totalorder %s72, %s86
      %p88 = scmp.eq.s32.totalorder %s20, 0
      %p89 = por %p87, %p88
      %s91 = sadd.s32 %s90, 1
      %p94 = scmp.eq.s32.totalorder %s14, 1
      %p95 = scmp.ne.s32.totalorder %s90, %s92
      %p96 = scmp.eq.s32.totalorder %s14, 0
      %p97 = por %p95, %p96
      %p98 = scmp.ne.s32.totalorder %s90, %s92
      %p99 = scmp.eq.s32.totalorder %s19, 1
      %p100 = por %p98, %p99
      %p101 = scmp.ne.s32.totalorder %s92, %s93
      %p102 = scmp.eq.s32.totalorder %s19, 0
      %p103 = por %p101, %p102
      %p104 = scmp.ne.s32.totalorder %s92, %s93
      %p105 = scmp.eq.s32.totalorder %s20, 1
      %p106 = por %p104, %p105
      %p108 = scmp.ne.s32.totalorder %s93, %s107
      %p109 = scmp.eq.s32.totalorder %s20, 0
      %p110 = por %p108, %p109
      %s112 = sadd.s32 %s111, 1
      %p115 = scmp.eq.s32.totalorder %s14, 1
      %p116 = scmp.ne.s32.totalorder %s111, %s113
      %p117 = scmp.eq.s32.totalorder %s14, 0
      %p118 = por %p116, %p117
      %p119 = scmp.ne.s32.totalorder %s111, %s113
      %p120 = scmp.eq.s32.totalorder %s19, 1
      %p121 = por %p119, %p120
      %p122 = scmp.ne.s32.totalorder %s113, %s114
      %p123 = scmp.eq.s32.totalorder %s19, 0
      %p124 = por %p122, %p123
      %p125 = scmp.ne.s32.totalorder %s113, %s114
      %p126 = scmp.eq.s32.totalorder %s20, 1
      %p127 = por %p125, %p126
      %p129 = scmp.ne.s32.totalorder %s114, %s128
      %p130 = scmp.eq.s32.totalorder %s20, 0
      %p131 = por %p129, %p130
      %s132 = ssub.s32 %s14, %s21
      %p133 = scmp.eq.s32.totalorder %s132, 0
      %s135 = sadd.s32 %s134, 1
      %s136 = scalar_select %p133, %s134, %s135
      %p139 = pneg %p133
      %p140 = scmp.eq.s32.totalorder %s14, 1
      %p141 = por %p139, %p140
      %p142 = scmp.ne.s32.totalorder %s134, %s137
      %p143 = scmp.eq.s32.totalorder %s14, 0
      %p144 = por %p142, %p143
      %p145 = scmp.ne.s32.totalorder %s134, %s137
      %p146 = scmp.eq.s32.totalorder %s19, 1
      %p147 = por %p145, %p146
      %p148 = scmp.ne.s32.totalorder %s137, %s138
      %p149 = scmp.eq.s32.totalorder %s19, 0
      %p150 = por %p148, %p149
      %p151 = scmp.ne.s32.totalorder %s137, %s138
      %p152 = scmp.eq.s32.totalorder %s20, 1
      %p153 = por %p151, %p152
      %p155 = scmp.ne.s32.totalorder %s138, %s154
      %p156 = scmp.eq.s32.totalorder %s20, 0
      %p157 = por %p155, %p156
      %p158 = scmp.le.s32.totalorder 1, %s14
      %p159 = scmp.lt.s32.totalorder %s14, 3
      %p160 = pnand %p158, %p159
      %p161 = pneg %p160
      // Predicated region
      $region9: #{simple_cnn_forward.2} parent=5 // pred_check
        _
      $region10: #{simple_cnn_forward.2} parent=5 // pred_check_branch
        %163 = sbr.rel (%p160) target = $region12
      $region11: #{simple_cnn_forward.2} parent=5 // pred_region
        %s164 = ssub.s32 %s14, 1
        // Predicated region
        $region13: #{simple_cnn_forward.2} parent=11 // pred_check
          %p165 = pneg %p61
        $region14: #{simple_cnn_forward.2} parent=11 // pred_check_branch
          %167 = sbr.rel (%p165) target = $region16
        $region15: #{simple_cnn_forward.2} parent=11 // pred_region
          %169 = vsyncadd [#allocation7], 0
          %s170 = sshll.u32 %s1, 4
          %s171 = int_to_ptr.hbm [resolvable:$true] %s170
          %s172 = sshll.u32 [#allocation6], 4
          %s173 = int_to_ptr.vmem [resolvable:$true] %s172
          %178 = dma.hbm_to_vmem [thread:$0]  %s171, 192, %s173, [#allocation7], 64, 64, 4
        $region16: #{simple_cnn_forward.2} parent=11 // pred_fallthru
          _
        // Predicated region
        $region17: #{simple_cnn_forward.2} parent=11 // pred_check
          %p179 = pneg %p82
        $region18: #{simple_cnn_forward.2} parent=11 // pred_check_branch
          %181 = sbr.rel (%p179) target = $region20
        $region19: #{simple_cnn_forward.2} parent=11 // pred_region
          %183 = vsyncadd [#allocation9], 0
          %s185 = sshll.u32 %s2, 4
          %s186 = int_to_ptr.hbm [resolvable:$true] %s185
          %s187 = sshll.u32 [#allocation8], 4
          %s188 = int_to_ptr.vmem [resolvable:$true] %s187
          %190 = dma.hbm_to_vmem [thread:$0]  %s186, 16, %s188, [#allocation9]
        $region20: #{simple_cnn_forward.2} parent=11 // pred_fallthru
          _
        // Predicated region
        $region21: #{simple_cnn_forward.2} parent=11 // pred_check
          %p191 = pneg %p103
        $region22: #{simple_cnn_forward.2} parent=11 // pred_check_branch
          %193 = sbr.rel (%p191) target = $region24
        $region23: #{simple_cnn_forward.2} parent=11 // pred_region
          %195 = vsyncadd [#allocation9], 0
          %s196 = sshll.u32 %s3, 4
          %s197 = int_to_ptr.hbm [resolvable:$true] %s196
          %s198 = sshll.u32 [#allocation10], 4
          %s199 = int_to_ptr.vmem [resolvable:$true] %s198
          %204 = dma.hbm_to_vmem [thread:$0]  %s197, 1536, %s199, [#allocation9], 128, 128, 8
        $region24: #{simple_cnn_forward.2} parent=11 // pred_fallthru
          _
        // Predicated region
        $region25: #{simple_cnn_forward.2} parent=11 // pred_check
          %p205 = pneg %p124
        $region26: #{simple_cnn_forward.2} parent=11 // pred_check_branch
          %207 = sbr.rel (%p205) target = $region28
        $region27: #{simple_cnn_forward.2} parent=11 // pred_region
          %209 = vsyncadd [#allocation12], 0
          %s211 = sshll.u32 %s4, 4
          %s212 = int_to_ptr.hbm [resolvable:$true] %s211
          %s213 = sshll.u32 [#allocation11], 4
          %s214 = int_to_ptr.vmem [resolvable:$true] %s213
          %216 = dma.hbm_to_vmem [thread:$0]  %s212, 16, %s214, [#allocation12]
        $region28: #{simple_cnn_forward.2} parent=11 // pred_fallthru
          _
      $region12: #{simple_cnn_forward.2} parent=5 // pred_fallthru
        _
      %p217 = scmp.lt.s32.totalorder %s14, 2
      // Predicated region
      $region29: #{simple_cnn_forward.2} parent=5 // pred_check
        %p218 = pneg %p217
      $region30: #{simple_cnn_forward.2} parent=5 // pred_check_branch
        %220 = sbr.rel (%p218) target = $region32
      $region31: #{simple_cnn_forward.2} parent=5 // pred_region
        // Predicated region
        $region33: #{simple_cnn_forward.2} parent=31 // pred_check
          %p221 = pneg %p34
        $region34: #{simple_cnn_forward.2} parent=31 // pred_check_branch
          %223 = sbr.rel (%p221) target = $region36
        $region35: #{simple_cnn_forward.2} parent=31 // pred_region
          %p224 = scmp.lt.s32.totalorder %s14, 1
          %s225 = scalar_select %p224, %s14, 1
          %s226 = smul.addr %s225, 64
          %s227 = smul.addr %s226, 8
          %s228 = scalar_lea.vmem %s0, %s227
        $region36: #{simple_cnn_forward.2} parent=31 // pred_fallthru
          _
      $region32: #{simple_cnn_forward.2} parent=5 // pred_fallthru
        _
      %p229 = scmp.le.s32.totalorder 1, %s14
      %p230 = scmp.lt.s32.totalorder %s14, 3
      %p231 = pnand %p229, %p230
      %p232 = pneg %p231
      // Predicated region
      $region37: #{simple_cnn_forward.2} parent=5 // pred_check
        _
      $region38: #{simple_cnn_forward.2} parent=5 // pred_check_branch
        %234 = sbr.rel (%p231) target = $region40
      $region39: #{simple_cnn_forward.2} parent=5 // pred_region
        %s235 = ssub.s32 %s14, 1
        // Predicated region
        $region41: #{simple_cnn_forward.2} parent=39 // pred_check
          %p236 = pneg %p61
        $region42: #{simple_cnn_forward.2} parent=39 // pred_check_branch
          %238 = sbr.rel (%p236) target = $region44
        $region43: #{simple_cnn_forward.2} parent=39 // pred_region
          %240 = dma.done [#allocation7], 192
        $region44: #{simple_cnn_forward.2} parent=39 // pred_fallthru
          _
        // Predicated region
        $region45: #{simple_cnn_forward.2} parent=39 // pred_check
          %p241 = pneg %p82
        $region46: #{simple_cnn_forward.2} parent=39 // pred_check_branch
          %243 = sbr.rel (%p241) target = $region48
        $region47: #{simple_cnn_forward.2} parent=39 // pred_region
          %245 = dma.done [#allocation9], 16
        $region48: #{simple_cnn_forward.2} parent=39 // pred_fallthru
          _
        // Predicated region
        $region49: #{simple_cnn_forward.2} parent=39 // pred_check
          %p246 = pneg %p103
        $region50: #{simple_cnn_forward.2} parent=39 // pred_check_branch
          %248 = sbr.rel (%p246) target = $region52
        $region51: #{simple_cnn_forward.2} parent=39 // pred_region
          %250 = dma.done [#allocation9], 1536
        $region52: #{simple_cnn_forward.2} parent=39 // pred_fallthru
          _
        // Predicated region
        $region53: #{simple_cnn_forward.2} parent=39 // pred_check
          %p251 = pneg %p124
        $region54: #{simple_cnn_forward.2} parent=39 // pred_check_branch
          %253 = sbr.rel (%p251) target = $region56
        $region55: #{simple_cnn_forward.2} parent=39 // pred_region
          %255 = dma.done [#allocation12], 16
        $region56: #{simple_cnn_forward.2} parent=39 // pred_fallthru
          _
        %p256 = scmp.lt.s32.totalorder %s19, 1
        %s257 = scalar_select %p256, %s19, 1
        %s258 = smul.addr %s257, 64
        %s259 = smul.addr %s258, 8
        %s260 = scalar_lea.vmem %s0, %s259
        %p261 = pneg %p40
        %p262 = pneg %p37
        %p263 = pneg %p61
        %p264 = pneg %p58
        %p265 = pneg %p82
        %p266 = pneg %p79
        %p267 = pneg %p103
        %p268 = pneg %p100
        %p269 = pneg %p124
        %p270 = pneg %p121
        %p271 = pneg %p150
        %p272 = pneg %p147
        %p273 = scmp.lt.s32.totalorder %s19, 1
        %s274 = scalar_select %p273, %s19, 1
        %s275 = smul.addr %s274, 16
        %s276 = smul.addr %s275, 8
        %s277 = scalar_lea.vmem %s5, %s276
        %p278 = scmp.lt.s32.totalorder %s19, 1
        %s279 = scalar_select %p278, %s19, 1
        %s280 = smul.addr %s279, 64
        %s281 = smul.addr %s280, 8
        %s282 = scalar_lea.vmem %s0, %s281
        %p283 = scmp.lt.s32.totalorder %s19, 1
        %s284 = scalar_select %p283, %s19, 1
        %s285 = smul.addr %s284, 16
        %s286 = smul.addr %s285, 8
        %s287 = scalar_lea.vmem %s5, %s286
        %vm288 = vcmask 16384
        %289 = vst.msk [vmem:[#allocation2] sm:$0x1] %vm288, 0.0
        %290 = vst.msk [vmem:[#allocation2 + $0x201] sm:$0x1] %vm288, 0.0
        %v291 = vld [vmem:[%s282] sm:$0xff]
        %v292 = vld [vmem:[%s282 + $0x8] sm:$0xff]
        %v293 = vld [vmem:[%s282 + $0x10] sm:$0xff]
        %v294 = vld [vmem:[%s282 + $0x18] sm:$0xff]
        %v295 = vld [vmem:[%s282 + $0x20] sm:$0xff]
        %v296 = vld [vmem:[%s282 + $0x28] sm:$0xff]
        %v297 = vld [vmem:[%s282 + $0x30] sm:$0xff]
        %v298 = vld [vmem:[%s282 + $0x38] sm:$0xff]
        %v299 = vld [vmem:[%s282 + $0x40] sm:$0xff]
        %v300 = vld [vmem:[%s282 + $0x48] sm:$0xff]
        %v301 = vld [vmem:[%s282 + $0x50] sm:$0xff]
        %v302 = vld [vmem:[%s282 + $0x58] sm:$0xff]
        %v303 = vld [vmem:[%s282 + $0x60] sm:$0xff]
        %v304 = vld [vmem:[%s282 + $0x68] sm:$0xff]
        %v305 = vld [vmem:[%s282 + $0x70] sm:$0xff]
        %v306 = vld [vmem:[%s282 + $0x78] sm:$0xff]
        %v307 = vld [vmem:[%s282 + $0x80] sm:$0xff]
        %v308 = vld [vmem:[%s282 + $0x88] sm:$0xff]
        %v309 = vld [vmem:[%s282 + $0x90] sm:$0xff]
        %v310 = vld [vmem:[%s282 + $0x98] sm:$0xff]
        %v311 = vld [vmem:[%s282 + $0xa0] sm:$0xff]
        %v312 = vld [vmem:[%s282 + $0xa8] sm:$0xff]
        %v313 = vld [vmem:[%s282 + $0xb0] sm:$0xff]
        %v314 = vld [vmem:[%s282 + $0xb8] sm:$0xff]
        %v315 = vld [vmem:[%s282 + $0xc0] sm:$0xff]
        %v316 = vld [vmem:[%s282 + $0xc8] sm:$0xff]
        %v317 = vld [vmem:[%s282 + $0xd0] sm:$0xff]
        %v318 = vld [vmem:[%s282 + $0xd8] sm:$0xff]
        %v319 = vld [vmem:[%s282 + $0xe0] sm:$0xff]
        %v320 = vld [vmem:[%s282 + $0xe8] sm:$0xff]
        %v321 = vld [vmem:[%s282 + $0xf0] sm:$0xff]
        %v322 = vld [vmem:[%s282 + $0xf8] sm:$0xff]
        %v323 = vld [vmem:[%s282 + $0x100] sm:$0xff]
        %v324 = vld [vmem:[%s282 + $0x108] sm:$0xff]
        %v325 = vld [vmem:[%s282 + $0x110] sm:$0xff]
        %v326 = vld [vmem:[%s282 + $0x118] sm:$0xff]
        %v327 = vld [vmem:[%s282 + $0x120] sm:$0xff]
        %v328 = vld [vmem:[%s282 + $0x128] sm:$0xff]
        %v329 = vld [vmem:[%s282 + $0x130] sm:$0xff]
        %v330 = vld [vmem:[%s282 + $0x138] sm:$0xff]
        %v331 = vld [vmem:[%s282 + $0x140] sm:$0xff]
        %v332 = vld [vmem:[%s282 + $0x148] sm:$0xff]
        %v333 = vld [vmem:[%s282 + $0x150] sm:$0xff]
        %v334 = vld [vmem:[%s282 + $0x158] sm:$0xff]
        %v335 = vld [vmem:[%s282 + $0x160] sm:$0xff]
        %v336 = vld [vmem:[%s282 + $0x168] sm:$0xff]
        %v337 = vld [vmem:[%s282 + $0x170] sm:$0xff]
        %v338 = vld [vmem:[%s282 + $0x178] sm:$0xff]
        %v339 = vld [vmem:[%s282 + $0x180] sm:$0xff]
        %v340 = vld [vmem:[%s282 + $0x188] sm:$0xff]
        %v341 = vld [vmem:[%s282 + $0x190] sm:$0xff]
        %v342 = vld [vmem:[%s282 + $0x198] sm:$0xff]
        %v343 = vld [vmem:[%s282 + $0x1a0] sm:$0xff]
        %v344 = vld [vmem:[%s282 + $0x1a8] sm:$0xff]
        %v345 = vld [vmem:[%s282 + $0x1b0] sm:$0xff]
        %v346 = vld [vmem:[%s282 + $0x1b8] sm:$0xff]
        %v347 = vld [vmem:[%s282 + $0x1c0] sm:$0xff]
        %v348 = vld [vmem:[%s282 + $0x1c8] sm:$0xff]
        %v349 = vld [vmem:[%s282 + $0x1d0] sm:$0xff]
        %v350 = vld [vmem:[%s282 + $0x1d8] sm:$0xff]
        %v351 = vld [vmem:[%s282 + $0x1e0] sm:$0xff]
        %v352 = vld [vmem:[%s282 + $0x1e8] sm:$0xff]
        %v353 = vld [vmem:[%s282 + $0x1f0] sm:$0xff]
        %v354 = vld [vmem:[%s282 + $0x1f8] sm:$0xff]
        %vm355 = vcmask 23552
        %356 = vst.msk [vmem:[#allocation2 + $0x1] sm:$0xff] %vm355, %v291
        %357 = vst.msk [vmem:[#allocation2 + $0x9] sm:$0xff] %vm355, %v292
        %358 = vst.msk [vmem:[#allocation2 + $0x11] sm:$0xff] %vm355, %v293
        %359 = vst.msk [vmem:[#allocation2 + $0x19] sm:$0xff] %vm355, %v294
        %360 = vst.msk [vmem:[#allocation2 + $0x21] sm:$0xff] %vm355, %v295
        %361 = vst.msk [vmem:[#allocation2 + $0x29] sm:$0xff] %vm355, %v296
        %362 = vst.msk [vmem:[#allocation2 + $0x31] sm:$0xff] %vm355, %v297
        %363 = vst.msk [vmem:[#allocation2 + $0x39] sm:$0xff] %vm355, %v298
        %364 = vst.msk [vmem:[#allocation2 + $0x41] sm:$0xff] %vm355, %v299
        %365 = vst.msk [vmem:[#allocation2 + $0x49] sm:$0xff] %vm355, %v300
        %366 = vst.msk [vmem:[#allocation2 + $0x51] sm:$0xff] %vm355, %v301
        %367 = vst.msk [vmem:[#allocation2 + $0x59] sm:$0xff] %vm355, %v302
        %368 = vst.msk [vmem:[#allocation2 + $0x61] sm:$0xff] %vm355, %v303
        %369 = vst.msk [vmem:[#allocation2 + $0x69] sm:$0xff] %vm355, %v304
        %370 = vst.msk [vmem:[#allocation2 + $0x71] sm:$0xff] %vm355, %v305
        %371 = vst.msk [vmem:[#allocation2 + $0x79] sm:$0xff] %vm355, %v306
        %372 = vst.msk [vmem:[#allocation2 + $0x81] sm:$0xff] %vm355, %v307
        %373 = vst.msk [vmem:[#allocation2 + $0x89] sm:$0xff] %vm355, %v308
        %374 = vst.msk [vmem:[#allocation2 + $0x91] sm:$0xff] %vm355, %v309
        %375 = vst.msk [vmem:[#allocation2 + $0x99] sm:$0xff] %vm355, %v310
        %376 = vst.msk [vmem:[#allocation2 + $0xa1] sm:$0xff] %vm355, %v311
        %377 = vst.msk [vmem:[#allocation2 + $0xa9] sm:$0xff] %vm355, %v312
        %378 = vst.msk [vmem:[#allocation2 + $0xb1] sm:$0xff] %vm355, %v313
        %379 = vst.msk [vmem:[#allocation2 + $0xb9] sm:$0xff] %vm355, %v314
        %380 = vst.msk [vmem:[#allocation2 + $0xc1] sm:$0xff] %vm355, %v315
        %381 = vst.msk [vmem:[#allocation2 + $0xc9] sm:$0xff] %vm355, %v316
        %382 = vst.msk [vmem:[#allocation2 + $0xd1] sm:$0xff] %vm355, %v317
        %383 = vst.msk [vmem:[#allocation2 + $0xd9] sm:$0xff] %vm355, %v318
        %384 = vst.msk [vmem:[#allocation2 + $0xe1] sm:$0xff] %vm355, %v319
        %385 = vst.msk [vmem:[#allocation2 + $0xe9] sm:$0xff] %vm355, %v320
        %386 = vst.msk [vmem:[#allocation2 + $0xf1] sm:$0xff] %vm355, %v321
        %387 = vst.msk [vmem:[#allocation2 + $0xf9] sm:$0xff] %vm355, %v322
        %388 = vst.msk [vmem:[#allocation2 + $0x101] sm:$0xff] %vm355, %v323
        %389 = vst.msk [vmem:[#allocation2 + $0x109] sm:$0xff] %vm355, %v324
        %390 = vst.msk [vmem:[#allocation2 + $0x111] sm:$0xff] %vm355, %v325
        %391 = vst.msk [vmem:[#allocation2 + $0x119] sm:$0xff] %vm355, %v326
        %392 = vst.msk [vmem:[#allocation2 + $0x121] sm:$0xff] %vm355, %v327
        %393 = vst.msk [vmem:[#allocation2 + $0x129] sm:$0xff] %vm355, %v328
        %394 = vst.msk [vmem:[#allocation2 + $0x131] sm:$0xff] %vm355, %v329
        %395 = vst.msk [vmem:[#allocation2 + $0x139] sm:$0xff] %vm355, %v330
        %396 = vst.msk [vmem:[#allocation2 + $0x141] sm:$0xff] %vm355, %v331
        %397 = vst.msk [vmem:[#allocation2 + $0x149] sm:$0xff] %vm355, %v332
        %398 = vst.msk [vmem:[#allocation2 + $0x151] sm:$0xff] %vm355, %v333
        %399 = vst.msk [vmem:[#allocation2 + $0x159] sm:$0xff] %vm355, %v334
        %400 = vst.msk [vmem:[#allocation2 + $0x161] sm:$0xff] %vm355, %v335
        %401 = vst.msk [vmem:[#allocation2 + $0x169] sm:$0xff] %vm355, %v336
        %402 = vst.msk [vmem:[#allocation2 + $0x171] sm:$0xff] %vm355, %v337
        %403 = vst.msk [vmem:[#allocation2 + $0x179] sm:$0xff] %vm355, %v338
        %404 = vst.msk [vmem:[#allocation2 + $0x181] sm:$0xff] %vm355, %v339
        %405 = vst.msk [vmem:[#allocation2 + $0x189] sm:$0xff] %vm355, %v340
        %406 = vst.msk [vmem:[#allocation2 + $0x191] sm:$0xff] %vm355, %v341
        %407 = vst.msk [vmem:[#allocation2 + $0x199] sm:$0xff] %vm355, %v342
        %408 = vst.msk [vmem:[#allocation2 + $0x1a1] sm:$0xff] %vm355, %v343
        %409 = vst.msk [vmem:[#allocation2 + $0x1a9] sm:$0xff] %vm355, %v344
        %410 = vst.msk [vmem:[#allocation2 + $0x1b1] sm:$0xff] %vm355, %v345
        %411 = vst.msk [vmem:[#allocation2 + $0x1b9] sm:$0xff] %vm355, %v346
        %412 = vst.msk [vmem:[#allocation2 + $0x1c1] sm:$0xff] %vm355, %v347
        %413 = vst.msk [vmem:[#allocation2 + $0x1c9] sm:$0xff] %vm355, %v348
        %414 = vst.msk [vmem:[#allocation2 + $0x1d1] sm:$0xff] %vm355, %v349
        %415 = vst.msk [vmem:[#allocation2 + $0x1d9] sm:$0xff] %vm355, %v350
        %416 = vst.msk [vmem:[#allocation2 + $0x1e1] sm:$0xff] %vm355, %v351
        %417 = vst.msk [vmem:[#allocation2 + $0x1e9] sm:$0xff] %vm355, %v352
        %418 = vst.msk [vmem:[#allocation2 + $0x1f1] sm:$0xff] %vm355, %v353
        %419 = vst.msk [vmem:[#allocation2 + $0x1f9] sm:$0xff] %vm355, %v354
        %v420 = vld [vmem:[#allocation2] sm:$0xff]
        %v421 = vld [vmem:[#allocation2 + $0x8] sm:$0xff]
        %v422 = vld [vmem:[#allocation2 + $0x10] sm:$0xff]
        %v423 = vld [vmem:[#allocation2 + $0x18] sm:$0xff]
        %v424 = vld [vmem:[#allocation2 + $0x20] sm:$0xff]
        %v425 = vld [vmem:[#allocation2 + $0x28] sm:$0xff]
        %v426 = vld [vmem:[#allocation2 + $0x30] sm:$0xff]
        %v427 = vld [vmem:[#allocation2 + $0x38] sm:$0xff]
        %v428 = vld [vmem:[#allocation2 + $0x40] sm:$0xff]
        %v429 = vld [vmem:[#allocation2 + $0x48] sm:$0xff]
        %v430 = vld [vmem:[#allocation2 + $0x50] sm:$0xff]
        %v431 = vld [vmem:[#allocation2 + $0x58] sm:$0xff]
        %v432 = vld [vmem:[#allocation2 + $0x60] sm:$0xff]
        %v433 = vld [vmem:[#allocation2 + $0x68] sm:$0xff]
        %v434 = vld [vmem:[#allocation2 + $0x70] sm:$0xff]
        %v435 = vld [vmem:[#allocation2 + $0x78] sm:$0xff]
        %v436 = vld [vmem:[#allocation2 + $0x80] sm:$0xff]
        %v437 = vld [vmem:[#allocation2 + $0x88] sm:$0xff]
        %v438 = vld [vmem:[#allocation2 + $0x90] sm:$0xff]
        %v439 = vld [vmem:[#allocation2 + $0x98] sm:$0xff]
        %v440 = vld [vmem:[#allocation2 + $0xa0] sm:$0xff]
        %v441 = vld [vmem:[#allocation2 + $0xa8] sm:$0xff]
        %v442 = vld [vmem:[#allocation2 + $0xb0] sm:$0xff]
        %v443 = vld [vmem:[#allocation2 + $0xb8] sm:$0xff]
        %v444 = vld [vmem:[#allocation2 + $0xc0] sm:$0xff]
        %v445 = vld [vmem:[#allocation2 + $0xc8] sm:$0xff]
        %v446 = vld [vmem:[#allocation2 + $0xd0] sm:$0xff]
        %v447 = vld [vmem:[#allocation2 + $0xd8] sm:$0xff]
        %v448 = vld [vmem:[#allocation2 + $0xe0] sm:$0xff]
        %v449 = vld [vmem:[#allocation2 + $0xe8] sm:$0xff]
        %v450 = vld [vmem:[#allocation2 + $0xf0] sm:$0xff]
        %v451 = vld [vmem:[#allocation2 + $0xf8] sm:$0xff]
        %v452 = vld [vmem:[#allocation2 + $0x100] sm:$0xff]
        %v453 = vld [vmem:[#allocation2 + $0x108] sm:$0xff]
        %v454 = vld [vmem:[#allocation2 + $0x110] sm:$0xff]
        %v455 = vld [vmem:[#allocation2 + $0x118] sm:$0xff]
        %v456 = vld [vmem:[#allocation2 + $0x120] sm:$0xff]
        %v457 = vld [vmem:[#allocation2 + $0x128] sm:$0xff]
        %v458 = vld [vmem:[#allocation2 + $0x130] sm:$0xff]
        %v459 = vld [vmem:[#allocation2 + $0x138] sm:$0xff]
        %v460 = vld [vmem:[#allocation2 + $0x140] sm:$0xff]
        %v461 = vld [vmem:[#allocation2 + $0x148] sm:$0xff]
        %v462 = vld [vmem:[#allocation2 + $0x150] sm:$0xff]
        %v463 = vld [vmem:[#allocation2 + $0x158] sm:$0xff]
        %v464 = vld [vmem:[#allocation2 + $0x160] sm:$0xff]
        %v465 = vld [vmem:[#allocation2 + $0x168] sm:$0xff]
        %v466 = vld [vmem:[#allocation2 + $0x170] sm:$0xff]
        %v467 = vld [vmem:[#allocation2 + $0x178] sm:$0xff]
        %v468 = vld [vmem:[#allocation2 + $0x180] sm:$0xff]
        %v469 = vld [vmem:[#allocation2 + $0x188] sm:$0xff]
        %v470 = vld [vmem:[#allocation2 + $0x190] sm:$0xff]
        %v471 = vld [vmem:[#allocation2 + $0x198] sm:$0xff]
        %v472 = vld [vmem:[#allocation2 + $0x1a0] sm:$0xff]
        %v473 = vld [vmem:[#allocation2 + $0x1a8] sm:$0xff]
        %v474 = vld [vmem:[#allocation2 + $0x1b0] sm:$0xff]
        %v475 = vld [vmem:[#allocation2 + $0x1b8] sm:$0xff]
        %v476 = vld [vmem:[#allocation2 + $0x1c0] sm:$0xff]
        %v477 = vld [vmem:[#allocation2 + $0x1c8] sm:$0xff]
        %v478 = vld [vmem:[#allocation2 + $0x1d0] sm:$0xff]
        %v479 = vld [vmem:[#allocation2 + $0x1d8] sm:$0xff]
        %v480 = vld [vmem:[#allocation2 + $0x1e0] sm:$0xff]
        %v481 = vld [vmem:[#allocation2 + $0x1e8] sm:$0xff]
        %v482 = vld [vmem:[#allocation2 + $0x1f0] sm:$0xff]
        %v483 = vld [vmem:[#allocation2 + $0x1f8] sm:$0xff]
        %v484 = vld [vmem:[#allocation6] sm:$0x7]
        %v485 = vld [vmem:[#allocation2 + $0x1] sm:$0xff]
        %v486 = vld [vmem:[#allocation2 + $0x9] sm:$0xff]
        %v487 = vld [vmem:[#allocation2 + $0x11] sm:$0xff]
        %v488 = vld [vmem:[#allocation2 + $0x19] sm:$0xff]
        %v489 = vld [vmem:[#allocation2 + $0x21] sm:$0xff]
        %v490 = vld [vmem:[#allocation2 + $0x29] sm:$0xff]
        %v491 = vld [vmem:[#allocation2 + $0x31] sm:$0xff]
        %v492 = vld [vmem:[#allocation2 + $0x39] sm:$0xff]
        %v493 = vld [vmem:[#allocation2 + $0x41] sm:$0xff]
        %v494 = vld [vmem:[#allocation2 + $0x49] sm:$0xff]
        %v495 = vld [vmem:[#allocation2 + $0x51] sm:$0xff]
        %v496 = vld [vmem:[#allocation2 + $0x59] sm:$0xff]
        %v497 = vld [vmem:[#allocation2 + $0x61] sm:$0xff]
        %v498 = vld [vmem:[#allocation2 + $0x69] sm:$0xff]
        %v499 = vld [vmem:[#allocation2 + $0x71] sm:$0xff]
        %v500 = vld [vmem:[#allocation2 + $0x79] sm:$0xff]
        %v501 = vld [vmem:[#allocation2 + $0x81] sm:$0xff]
        %v502 = vld [vmem:[#allocation2 + $0x89] sm:$0xff]
        %v503 = vld [vmem:[#allocation2 + $0x91] sm:$0xff]
        %v504 = vld [vmem:[#allocation2 + $0x99] sm:$0xff]
        %v505 = vld [vmem:[#allocation2 + $0xa1] sm:$0xff]
        %v506 = vld [vmem:[#allocation2 + $0xa9] sm:$0xff]
        %v507 = vld [vmem:[#allocation2 + $0xb1] sm:$0xff]
        %v508 = vld [vmem:[#allocation2 + $0xb9] sm:$0xff]
        %v509 = vld [vmem:[#allocation2 + $0xc1] sm:$0xff]
        %v510 = vld [vmem:[#allocation2 + $0xc9] sm:$0xff]
        %v511 = vld [vmem:[#allocation2 + $0xd1] sm:$0xff]
        %v512 = vld [vmem:[#allocation2 + $0xd9] sm:$0xff]
        %v513 = vld [vmem:[#allocation2 + $0xe1] sm:$0xff]
        %v514 = vld [vmem:[#allocation2 + $0xe9] sm:$0xff]
        %v515 = vld [vmem:[#allocation2 + $0xf1] sm:$0xff]
        %v516 = vld [vmem:[#allocation2 + $0xf9] sm:$0xff]
        %v517 = vld [vmem:[#allocation2 + $0x101] sm:$0xff]
        %v518 = vld [vmem:[#allocation2 + $0x109] sm:$0xff]
        %v519 = vld [vmem:[#allocation2 + $0x111] sm:$0xff]
        %v520 = vld [vmem:[#allocation2 + $0x119] sm:$0xff]
        %v521 = vld [vmem:[#allocation2 + $0x121] sm:$0xff]
        %v522 = vld [vmem:[#allocation2 + $0x129] sm:$0xff]
        %v523 = vld [vmem:[#allocation2 + $0x131] sm:$0xff]
        %v524 = vld [vmem:[#allocation2 + $0x139] sm:$0xff]
        %v525 = vld [vmem:[#allocation2 + $0x141] sm:$0xff]
        %v526 = vld [vmem:[#allocation2 + $0x149] sm:$0xff]
        %v527 = vld [vmem:[#allocation2 + $0x151] sm:$0xff]
        %v528 = vld [vmem:[#allocation2 + $0x159] sm:$0xff]
        %v529 = vld [vmem:[#allocation2 + $0x161] sm:$0xff]
        %v530 = vld [vmem:[#allocation2 + $0x169] sm:$0xff]
        %v531 = vld [vmem:[#allocation2 + $0x171] sm:$0xff]
        %v532 = vld [vmem:[#allocation2 + $0x179] sm:$0xff]
        %v533 = vld [vmem:[#allocation2 + $0x181] sm:$0xff]
        %v534 = vld [vmem:[#allocation2 + $0x189] sm:$0xff]
        %v535 = vld [vmem:[#allocation2 + $0x191] sm:$0xff]
        %v536 = vld [vmem:[#allocation2 + $0x199] sm:$0xff]
        %v537 = vld [vmem:[#allocation2 + $0x1a1] sm:$0xff]
        %v538 = vld [vmem:[#allocation2 + $0x1a9] sm:$0xff]
        %v539 = vld [vmem:[#allocation2 + $0x1b1] sm:$0xff]
        %v540 = vld [vmem:[#allocation2 + $0x1b9] sm:$0xff]
        %v541 = vld [vmem:[#allocation2 + $0x1c1] sm:$0xff]
        %v542 = vld [vmem:[#allocation2 + $0x1c9] sm:$0xff]
        %v543 = vld [vmem:[#allocation2 + $0x1d1] sm:$0xff]
        %v544 = vld [vmem:[#allocation2 + $0x1d9] sm:$0xff]
        %v545 = vld [vmem:[#allocation2 + $0x1e1] sm:$0xff]
        %v546 = vld [vmem:[#allocation2 + $0x1e9] sm:$0xff]
        %v547 = vld [vmem:[#allocation2 + $0x1f1] sm:$0xff]
        %v548 = vld [vmem:[#allocation2 + $0x1f9] sm:$0xff]
        %s549 = scalar_lea.vmem [#allocation6], 4
        %v550 = vld [vmem:[%s549] sm:$0x7]
        %v552 = vsel %vm355, %v485, 0
        %v555 = vsel %vm355, %v486, 0
        %v558 = vsel %vm355, %v487, 0
        %v561 = vsel %vm355, %v488, 0
        %v564 = vsel %vm355, %v489, 0
        %v567 = vsel %vm355, %v490, 0
        %v570 = vsel %vm355, %v491, 0
        %v573 = vsel %vm355, %v492, 0
        %v576 = vsel %vm355, %v493, 0
        %v579 = vsel %vm355, %v494, 0
        %v582 = vsel %vm355, %v495, 0
        %v585 = vsel %vm355, %v496, 0
        %v588 = vsel %vm355, %v497, 0
        %v591 = vsel %vm355, %v498, 0
        %v594 = vsel %vm355, %v499, 0
        %v597 = vsel %vm355, %v500, 0
        %v600 = vsel %vm355, %v501, 0
        %v603 = vsel %vm355, %v502, 0
        %v606 = vsel %vm355, %v503, 0
        %v609 = vsel %vm355, %v504, 0
        %v612 = vsel %vm355, %v505, 0
        %v615 = vsel %vm355, %v506, 0
        %v618 = vsel %vm355, %v507, 0
        %v621 = vsel %vm355, %v508, 0
        %v624 = vsel %vm355, %v509, 0
        %v627 = vsel %vm355, %v510, 0
        %v630 = vsel %vm355, %v511, 0
        %v633 = vsel %vm355, %v512, 0
        %v636 = vsel %vm355, %v513, 0
        %v639 = vsel %vm355, %v514, 0
        %v642 = vsel %vm355, %v515, 0
        %v645 = vsel %vm355, %v516, 0
        %v648 = vsel %vm355, %v517, 0
        %v651 = vsel %vm355, %v518, 0
        %v654 = vsel %vm355, %v519, 0
        %v657 = vsel %vm355, %v520, 0
        %v660 = vsel %vm355, %v521, 0
        %v663 = vsel %vm355, %v522, 0
        %v666 = vsel %vm355, %v523, 0
        %v669 = vsel %vm355, %v524, 0
        %v672 = vsel %vm355, %v525, 0
        %v675 = vsel %vm355, %v526, 0
        %v678 = vsel %vm355, %v527, 0
        %v681 = vsel %vm355, %v528, 0
        %v684 = vsel %vm355, %v529, 0
        %v687 = vsel %vm355, %v530, 0
        %v690 = vsel %vm355, %v531, 0
        %v693 = vsel %vm355, %v532, 0
        %v696 = vsel %vm355, %v533, 0
        %v699 = vsel %vm355, %v534, 0
        %v702 = vsel %vm355, %v535, 0
        %v705 = vsel %vm355, %v536, 0
        %v708 = vsel %vm355, %v537, 0
        %v711 = vsel %vm355, %v538, 0
        %v714 = vsel %vm355, %v539, 0
        %v717 = vsel %vm355, %v540, 0
        %v720 = vsel %vm355, %v541, 0
        %v723 = vsel %vm355, %v542, 0
        %v726 = vsel %vm355, %v543, 0
        %v729 = vsel %vm355, %v544, 0
        %v732 = vsel %vm355, %v545, 0
        %v735 = vsel %vm355, %v546, 0
        %v738 = vsel %vm355, %v547, 0
        %v741 = vsel %vm355, %v548, 0
        %vm743 = vcmask 1042432
        %v745 = vsel %vm743, %v550, 0
        %747 = vmatpush.msra.mxu0 0.0
        %748 = vmatpush.msra.mxu0 0.0
        %749 = vmatpush.msra.mxu0 0.0
        %750 = vmatpush.msra.mxu0 0.0
        %751 = vmatpush.msra.mxu0 0.0
        %752 = vmatpush.msra.mxu0 0.0
        %753 = vmatpush.msra.mxu0 0.0
        %754 = vmatpush.msra.mxu0 0.0
        %755 = vmatpush.msra.mxu0 0.0
        %756 = vmatpush.msra.mxu0 0.0
        %757 = vmatpush.msra.mxu0 0.0
        %758 = vmatpush.msra.mxu0 0.0
        %759 = vmatpush.msra.mxu0 0.0
        %760 = vmatpush.msra.mxu0 0.0
        %761 = vmatpush.msra.mxu0 0.0
        %762 = vmatpush.msra.mxu0 %v745
        %763 = vmatmul.f32.gmra.mxu0 %v552
        %v764 = vpop.f32.mrf.mxu0
        %v765 = vadd.f32 0.0, %v764
        %766 = vmatmul.f32.gmra.mxu0 %v555
        %v767 = vpop.f32.mrf.mxu0
        %v768 = vadd.f32 0.0, %v767
        %769 = vmatmul.f32.gmra.mxu0 %v558
        %v770 = vpop.f32.mrf.mxu0
        %v771 = vadd.f32 0.0, %v770
        %772 = vmatmul.f32.gmra.mxu0 %v561
        %v773 = vpop.f32.mrf.mxu0
        %v774 = vadd.f32 0.0, %v773
        %775 = vmatmul.f32.gmra.mxu0 %v564
        %v776 = vpop.f32.mrf.mxu0
        %v777 = vadd.f32 0.0, %v776
        %778 = vmatmul.f32.gmra.mxu0 %v567
        %v779 = vpop.f32.mrf.mxu0
        %v780 = vadd.f32 0.0, %v779
        %781 = vmatmul.f32.gmra.mxu0 %v570
        %v782 = vpop.f32.mrf.mxu0
        %v783 = vadd.f32 0.0, %v782
        %784 = vmatmul.f32.gmra.mxu0 %v573
        %v785 = vpop.f32.mrf.mxu0
        %v786 = vadd.f32 0.0, %v785
        %787 = vmatmul.f32.gmra.mxu0 %v576
        %v788 = vpop.f32.mrf.mxu0
        %v789 = vadd.f32 0.0, %v788
        %790 = vmatmul.f32.gmra.mxu0 %v579
        %v791 = vpop.f32.mrf.mxu0
        %v792 = vadd.f32 0.0, %v791
        %793 = vmatmul.f32.gmra.mxu0 %v582
        %v794 = vpop.f32.mrf.mxu0
        %v795 = vadd.f32 0.0, %v794
        %796 = vmatmul.f32.gmra.mxu0 %v585
        %v797 = vpop.f32.mrf.mxu0
        %v798 = vadd.f32 0.0, %v797
        %799 = vmatmul.f32.gmra.mxu0 %v588
        %v800 = vpop.f32.mrf.mxu0
        %v801 = vadd.f32 0.0, %v800
        %802 = vmatmul.f32.gmra.mxu0 %v591
        %v803 = vpop.f32.mrf.mxu0
        %v804 = vadd.f32 0.0, %v803
        %805 = vmatmul.f32.gmra.mxu0 %v594
        %v806 = vpop.f32.mrf.mxu0
        %v807 = vadd.f32 0.0, %v806
        %808 = vmatmul.f32.gmra.mxu0 %v597
        %v809 = vpop.f32.mrf.mxu0
        %v810 = vadd.f32 0.0, %v809
        %811 = vmatmul.f32.gmra.mxu0 %v600
        %v812 = vpop.f32.mrf.mxu0
        %v813 = vadd.f32 0.0, %v812
        %814 = vmatmul.f32.gmra.mxu0 %v603
        %v815 = vpop.f32.mrf.mxu0
        %v816 = vadd.f32 0.0, %v815
        %817 = vmatmul.f32.gmra.mxu0 %v606
        %v818 = vpop.f32.mrf.mxu0
        %v819 = vadd.f32 0.0, %v818
        %820 = vmatmul.f32.gmra.mxu0 %v609
        %v821 = vpop.f32.mrf.mxu0
        %v822 = vadd.f32 0.0, %v821
        %823 = vmatmul.f32.gmra.mxu0 %v612
        %v824 = vpop.f32.mrf.mxu0
        %v825 = vadd.f32 0.0, %v824
        %826 = vmatmul.f32.gmra.mxu0 %v615
        %v827 = vpop.f32.mrf.mxu0
        %v828 = vadd.f32 0.0, %v827
        %829 = vmatmul.f32.gmra.mxu0 %v618
        %v830 = vpop.f32.mrf.mxu0
        %v831 = vadd.f32 0.0, %v830
        %832 = vmatmul.f32.gmra.mxu0 %v621
        %v833 = vpop.f32.mrf.mxu0
        %v834 = vadd.f32 0.0, %v833
        %835 = vmatmul.f32.gmra.mxu0 %v624
        %v836 = vpop.f32.mrf.mxu0
        %v837 = vadd.f32 0.0, %v836
        %838 = vmatmul.f32.gmra.mxu0 %v627
        %v839 = vpop.f32.mrf.mxu0
        %v840 = vadd.f32 0.0, %v839
        %841 = vmatmul.f32.gmra.mxu0 %v630
        %v842 = vpop.f32.mrf.mxu0
        %v843 = vadd.f32 0.0, %v842
        %844 = vmatmul.f32.gmra.mxu0 %v633
        %v845 = vpop.f32.mrf.mxu0
        %v846 = vadd.f32 0.0, %v845
        %847 = vmatmul.f32.gmra.mxu0 %v636
        %v848 = vpop.f32.mrf.mxu0
        %v849 = vadd.f32 0.0, %v848
        %850 = vmatmul.f32.gmra.mxu0 %v639
        %v851 = vpop.f32.mrf.mxu0
        %v852 = vadd.f32 0.0, %v851
        %853 = vmatmul.f32.gmra.mxu0 %v642
        %v854 = vpop.f32.mrf.mxu0
        %v855 = vadd.f32 0.0, %v854
        %856 = vmatmul.f32.gmra.mxu0 %v645
        %v857 = vpop.f32.mrf.mxu0
        %v858 = vadd.f32 0.0, %v857
        %859 = vmatmul.f32.gmra.mxu0 %v648
        %v860 = vpop.f32.mrf.mxu0
        %v861 = vadd.f32 0.0, %v860
        %862 = vmatmul.f32.gmra.mxu0 %v651
        %v863 = vpop.f32.mrf.mxu0
        %v864 = vadd.f32 0.0, %v863
        %865 = vmatmul.f32.gmra.mxu0 %v654
        %v866 = vpop.f32.mrf.mxu0
        %v867 = vadd.f32 0.0, %v866
        %868 = vmatmul.f32.gmra.mxu0 %v657
        %v869 = vpop.f32.mrf.mxu0
        %v870 = vadd.f32 0.0, %v869
        %871 = vmatmul.f32.gmra.mxu0 %v660
        %v872 = vpop.f32.mrf.mxu0
        %v873 = vadd.f32 0.0, %v872
        %874 = vmatmul.f32.gmra.mxu0 %v663
        %v875 = vpop.f32.mrf.mxu0
        %v876 = vadd.f32 0.0, %v875
        %877 = vmatmul.f32.gmra.mxu0 %v666
        %v878 = vpop.f32.mrf.mxu0
        %v879 = vadd.f32 0.0, %v878
        %880 = vmatmul.f32.gmra.mxu0 %v669
        %v881 = vpop.f32.mrf.mxu0
        %v882 = vadd.f32 0.0, %v881
        %883 = vmatmul.f32.gmra.mxu0 %v672
        %v884 = vpop.f32.mrf.mxu0
        %v885 = vadd.f32 0.0, %v884
        %886 = vmatmul.f32.gmra.mxu0 %v675
        %v887 = vpop.f32.mrf.mxu0
        %v888 = vadd.f32 0.0, %v887
        %889 = vmatmul.f32.gmra.mxu0 %v678
        %v890 = vpop.f32.mrf.mxu0
        %v891 = vadd.f32 0.0, %v890
        %892 = vmatmul.f32.gmra.mxu0 %v681
        %v893 = vpop.f32.mrf.mxu0
        %v894 = vadd.f32 0.0, %v893
        %895 = vmatmul.f32.gmra.mxu0 %v684
        %v896 = vpop.f32.mrf.mxu0
        %v897 = vadd.f32 0.0, %v896
        %898 = vmatmul.f32.gmra.mxu0 %v687
        %v899 = vpop.f32.mrf.mxu0
        %v900 = vadd.f32 0.0, %v899
        %901 = vmatmul.f32.gmra.mxu0 %v690
        %v902 = vpop.f32.mrf.mxu0
        %v903 = vadd.f32 0.0, %v902
        %904 = vmatmul.f32.gmra.mxu0 %v693
        %v905 = vpop.f32.mrf.mxu0
        %v906 = vadd.f32 0.0, %v905
        %907 = vmatmul.f32.gmra.mxu0 %v696
        %v908 = vpop.f32.mrf.mxu0
        %v909 = vadd.f32 0.0, %v908
        %910 = vmatmul.f32.gmra.mxu0 %v699
        %v911 = vpop.f32.mrf.mxu0
        %v912 = vadd.f32 0.0, %v911
        %913 = vmatmul.f32.gmra.mxu0 %v702
        %v914 = vpop.f32.mrf.mxu0
        %v915 = vadd.f32 0.0, %v914
        %916 = vmatmul.f32.gmra.mxu0 %v705
        %v917 = vpop.f32.mrf.mxu0
        %v918 = vadd.f32 0.0, %v917
        %919 = vmatmul.f32.gmra.mxu0 %v708
        %v920 = vpop.f32.mrf.mxu0
        %v921 = vadd.f32 0.0, %v920
        %922 = vmatmul.f32.gmra.mxu0 %v711
        %v923 = vpop.f32.mrf.mxu0
        %v924 = vadd.f32 0.0, %v923
        %925 = vmatmul.f32.gmra.mxu0 %v714
        %v926 = vpop.f32.mrf.mxu0
        %v927 = vadd.f32 0.0, %v926
        %928 = vmatmul.f32.gmra.mxu0 %v717
        %v929 = vpop.f32.mrf.mxu0
        %v930 = vadd.f32 0.0, %v929
        %931 = vmatmul.f32.gmra.mxu0 %v720
        %v932 = vpop.f32.mrf.mxu0
        %v933 = vadd.f32 0.0, %v932
        %934 = vmatmul.f32.gmra.mxu0 %v723
        %v935 = vpop.f32.mrf.mxu0
        %v936 = vadd.f32 0.0, %v935
        %937 = vmatmul.f32.gmra.mxu0 %v726
        %v938 = vpop.f32.mrf.mxu0
        %v939 = vadd.f32 0.0, %v938
        %940 = vmatmul.f32.gmra.mxu0 %v729
        %v941 = vpop.f32.mrf.mxu0
        %v942 = vadd.f32 0.0, %v941
        %943 = vmatmul.f32.gmra.mxu0 %v732
        %v944 = vpop.f32.mrf.mxu0
        %v945 = vadd.f32 0.0, %v944
        %946 = vmatmul.f32.gmra.mxu0 %v735
        %v947 = vpop.f32.mrf.mxu0
        %v948 = vadd.f32 0.0, %v947
        %949 = vmatmul.f32.gmra.mxu0 %v738
        %v950 = vpop.f32.mrf.mxu0
        %v951 = vadd.f32 0.0, %v950
        %952 = vmatmul.f32.gmra.mxu0 %v741
        %v953 = vpop.f32.mrf.mxu0
        %v954 = vadd.f32 0.0, %v953
        %955 = vdwg.mxu0
        %v957 = vsel %vm355, %v420, 0
        %v960 = vsel %vm355, %v421, 0
        %v963 = vsel %vm355, %v422, 0
        %v966 = vsel %vm355, %v423, 0
        %v969 = vsel %vm355, %v424, 0
        %v972 = vsel %vm355, %v425, 0
        %v975 = vsel %vm355, %v426, 0
        %v978 = vsel %vm355, %v427, 0
        %v981 = vsel %vm355, %v428, 0
        %v984 = vsel %vm355, %v429, 0
        %v987 = vsel %vm355, %v430, 0
        %v990 = vsel %vm355, %v431, 0
        %v993 = vsel %vm355, %v432, 0
        %v996 = vsel %vm355, %v433, 0
        %v999 = vsel %vm355, %v434, 0
        %v1002 = vsel %vm355, %v435, 0
        %v1005 = vsel %vm355, %v436, 0
        %v1008 = vsel %vm355, %v437, 0
        %v1011 = vsel %vm355, %v438, 0
        %v1014 = vsel %vm355, %v439, 0
        %v1017 = vsel %vm355, %v440, 0
        %v1020 = vsel %vm355, %v441, 0
        %v1023 = vsel %vm355, %v442, 0
        %v1026 = vsel %vm355, %v443, 0
        %v1029 = vsel %vm355, %v444, 0
        %v1032 = vsel %vm355, %v445, 0
        %v1035 = vsel %vm355, %v446, 0
        %v1038 = vsel %vm355, %v447, 0
        %v1041 = vsel %vm355, %v448, 0
        %v1044 = vsel %vm355, %v449, 0
        %v1047 = vsel %vm355, %v450, 0
        %v1050 = vsel %vm355, %v451, 0
        %v1053 = vsel %vm355, %v452, 0
        %v1056 = vsel %vm355, %v453, 0
        %v1059 = vsel %vm355, %v454, 0
        %v1062 = vsel %vm355, %v455, 0
        %v1065 = vsel %vm355, %v456, 0
        %v1068 = vsel %vm355, %v457, 0
        %v1071 = vsel %vm355, %v458, 0
        %v1074 = vsel %vm355, %v459, 0
        %v1077 = vsel %vm355, %v460, 0
        %v1080 = vsel %vm355, %v461, 0
        %v1083 = vsel %vm355, %v462, 0
        %v1086 = vsel %vm355, %v463, 0
        %v1089 = vsel %vm355, %v464, 0
        %v1092 = vsel %vm355, %v465, 0
        %v1095 = vsel %vm355, %v466, 0
        %v1098 = vsel %vm355, %v467, 0
        %v1101 = vsel %vm355, %v468, 0
        %v1104 = vsel %vm355, %v469, 0
        %v1107 = vsel %vm355, %v470, 0
        %v1110 = vsel %vm355, %v471, 0
        %v1113 = vsel %vm355, %v472, 0
        %v1116 = vsel %vm355, %v473, 0
        %v1119 = vsel %vm355, %v474, 0
        %v1122 = vsel %vm355, %v475, 0
        %v1125 = vsel %vm355, %v476, 0
        %v1128 = vsel %vm355, %v477, 0
        %v1131 = vsel %vm355, %v478, 0
        %v1134 = vsel %vm355, %v479, 0
        %v1137 = vsel %vm355, %v480, 0
        %v1140 = vsel %vm355, %v481, 0
        %v1143 = vsel %vm355, %v482, 0
        %v1146 = vsel %vm355, %v483, 0
        %v1149 = vsel %vm743, %v484, 0
        %1151 = vmatpush.msra.mxu0 0.0
        %1152 = vmatpush.msra.mxu0 0.0
        %1153 = vmatpush.msra.mxu0 0.0
        %1154 = vmatpush.msra.mxu0 0.0
        %1155 = vmatpush.msra.mxu0 0.0
        %1156 = vmatpush.msra.mxu0 0.0
        %1157 = vmatpush.msra.mxu0 0.0
        %1158 = vmatpush.msra.mxu0 0.0
        %1159 = vmatpush.msra.mxu0 0.0
        %1160 = vmatpush.msra.mxu0 0.0
        %1161 = vmatpush.msra.mxu0 0.0
        %1162 = vmatpush.msra.mxu0 0.0
        %1163 = vmatpush.msra.mxu0 0.0
        %1164 = vmatpush.msra.mxu0 0.0
        %1165 = vmatpush.msra.mxu0 0.0
        %1166 = vmatpush.msra.mxu0 %v1149
        %1167 = vmatmul.f32.gmra.mxu0 %v957
        %v1168 = vpop.f32.mrf.mxu0
        %v1169 = vadd.f32 %v765, %v1168
        %1170 = vmatmul.f32.gmra.mxu0 %v960
        %v1171 = vpop.f32.mrf.mxu0
        %v1172 = vadd.f32 %v768, %v1171
        %1173 = vmatmul.f32.gmra.mxu0 %v963
        %v1174 = vpop.f32.mrf.mxu0
        %v1175 = vadd.f32 %v771, %v1174
        %1176 = vmatmul.f32.gmra.mxu0 %v966
        %v1177 = vpop.f32.mrf.mxu0
        %v1178 = vadd.f32 %v774, %v1177
        %1179 = vmatmul.f32.gmra.mxu0 %v969
        %v1180 = vpop.f32.mrf.mxu0
        %v1181 = vadd.f32 %v777, %v1180
        %1182 = vmatmul.f32.gmra.mxu0 %v972
        %v1183 = vpop.f32.mrf.mxu0
        %v1184 = vadd.f32 %v780, %v1183
        %1185 = vmatmul.f32.gmra.mxu0 %v975
        %v1186 = vpop.f32.mrf.mxu0
        %v1187 = vadd.f32 %v783, %v1186
        %1188 = vmatmul.f32.gmra.mxu0 %v978
        %v1189 = vpop.f32.mrf.mxu0
        %v1190 = vadd.f32 %v786, %v1189
        %1191 = vmatmul.f32.gmra.mxu0 %v981
        %v1192 = vpop.f32.mrf.mxu0
        %v1193 = vadd.f32 %v789, %v1192
        %1194 = vmatmul.f32.gmra.mxu0 %v984
        %v1195 = vpop.f32.mrf.mxu0
        %v1196 = vadd.f32 %v792, %v1195
        %1197 = vmatmul.f32.gmra.mxu0 %v987
        %v1198 = vpop.f32.mrf.mxu0
        %v1199 = vadd.f32 %v795, %v1198
        %1200 = vmatmul.f32.gmra.mxu0 %v990
        %v1201 = vpop.f32.mrf.mxu0
        %v1202 = vadd.f32 %v798, %v1201
        %1203 = vmatmul.f32.gmra.mxu0 %v993
        %v1204 = vpop.f32.mrf.mxu0
        %v1205 = vadd.f32 %v801, %v1204
        %1206 = vmatmul.f32.gmra.mxu0 %v996
        %v1207 = vpop.f32.mrf.mxu0
        %v1208 = vadd.f32 %v804, %v1207
        %1209 = vmatmul.f32.gmra.mxu0 %v999
        %v1210 = vpop.f32.mrf.mxu0
        %v1211 = vadd.f32 %v807, %v1210
        %1212 = vmatmul.f32.gmra.mxu0 %v1002
        %v1213 = vpop.f32.mrf.mxu0
        %v1214 = vadd.f32 %v810, %v1213
        %1215 = vmatmul.f32.gmra.mxu0 %v1005
        %v1216 = vpop.f32.mrf.mxu0
        %v1217 = vadd.f32 %v813, %v1216
        %1218 = vmatmul.f32.gmra.mxu0 %v1008
        %v1219 = vpop.f32.mrf.mxu0
        %v1220 = vadd.f32 %v816, %v1219
        %1221 = vmatmul.f32.gmra.mxu0 %v1011
        %v1222 = vpop.f32.mrf.mxu0
        %v1223 = vadd.f32 %v819, %v1222
        %1224 = vmatmul.f32.gmra.mxu0 %v1014
        %v1225 = vpop.f32.mrf.mxu0
        %v1226 = vadd.f32 %v822, %v1225
        %1227 = vmatmul.f32.gmra.mxu0 %v1017
        %v1228 = vpop.f32.mrf.mxu0
        %v1229 = vadd.f32 %v825, %v1228
        %1230 = vmatmul.f32.gmra.mxu0 %v1020
        %v1231 = vpop.f32.mrf.mxu0
        %v1232 = vadd.f32 %v828, %v1231
        %1233 = vmatmul.f32.gmra.mxu0 %v1023
        %v1234 = vpop.f32.mrf.mxu0
        %v1235 = vadd.f32 %v831, %v1234
        %1236 = vmatmul.f32.gmra.mxu0 %v1026
        %v1237 = vpop.f32.mrf.mxu0
        %v1238 = vadd.f32 %v834, %v1237
        %1239 = vmatmul.f32.gmra.mxu0 %v1029
        %v1240 = vpop.f32.mrf.mxu0
        %v1241 = vadd.f32 %v837, %v1240
        %1242 = vmatmul.f32.gmra.mxu0 %v1032
        %v1243 = vpop.f32.mrf.mxu0
        %v1244 = vadd.f32 %v840, %v1243
        %1245 = vmatmul.f32.gmra.mxu0 %v1035
        %v1246 = vpop.f32.mrf.mxu0
        %v1247 = vadd.f32 %v843, %v1246
        %1248 = vmatmul.f32.gmra.mxu0 %v1038
        %v1249 = vpop.f32.mrf.mxu0
        %v1250 = vadd.f32 %v846, %v1249
        %1251 = vmatmul.f32.gmra.mxu0 %v1041
        %v1252 = vpop.f32.mrf.mxu0
        %v1253 = vadd.f32 %v849, %v1252
        %1254 = vmatmul.f32.gmra.mxu0 %v1044
        %v1255 = vpop.f32.mrf.mxu0
        %v1256 = vadd.f32 %v852, %v1255
        %1257 = vmatmul.f32.gmra.mxu0 %v1047
        %v1258 = vpop.f32.mrf.mxu0
        %v1259 = vadd.f32 %v855, %v1258
        %1260 = vmatmul.f32.gmra.mxu0 %v1050
        %v1261 = vpop.f32.mrf.mxu0
        %v1262 = vadd.f32 %v858, %v1261
        %1263 = vmatmul.f32.gmra.mxu0 %v1053
        %v1264 = vpop.f32.mrf.mxu0
        %v1265 = vadd.f32 %v861, %v1264
        %1266 = vmatmul.f32.gmra.mxu0 %v1056
        %v1267 = vpop.f32.mrf.mxu0
        %v1268 = vadd.f32 %v864, %v1267
        %1269 = vmatmul.f32.gmra.mxu0 %v1059
        %v1270 = vpop.f32.mrf.mxu0
        %v1271 = vadd.f32 %v867, %v1270
        %1272 = vmatmul.f32.gmra.mxu0 %v1062
        %v1273 = vpop.f32.mrf.mxu0
        %v1274 = vadd.f32 %v870, %v1273
        %1275 = vmatmul.f32.gmra.mxu0 %v1065
        %v1276 = vpop.f32.mrf.mxu0
        %v1277 = vadd.f32 %v873, %v1276
        %1278 = vmatmul.f32.gmra.mxu0 %v1068
        %v1279 = vpop.f32.mrf.mxu0
        %v1280 = vadd.f32 %v876, %v1279
        %1281 = vmatmul.f32.gmra.mxu0 %v1071
        %v1282 = vpop.f32.mrf.mxu0
        %v1283 = vadd.f32 %v879, %v1282
        %1284 = vmatmul.f32.gmra.mxu0 %v1074
        %v1285 = vpop.f32.mrf.mxu0
        %v1286 = vadd.f32 %v882, %v1285
        %1287 = vmatmul.f32.gmra.mxu0 %v1077
        %v1288 = vpop.f32.mrf.mxu0
        %v1289 = vadd.f32 %v885, %v1288
        %1290 = vmatmul.f32.gmra.mxu0 %v1080
        %v1291 = vpop.f32.mrf.mxu0
        %v1292 = vadd.f32 %v888, %v1291
        %1293 = vmatmul.f32.gmra.mxu0 %v1083
        %v1294 = vpop.f32.mrf.mxu0
        %v1295 = vadd.f32 %v891, %v1294
        %1296 = vmatmul.f32.gmra.mxu0 %v1086
        %v1297 = vpop.f32.mrf.mxu0
        %v1298 = vadd.f32 %v894, %v1297
        %1299 = vmatmul.f32.gmra.mxu0 %v1089
        %v1300 = vpop.f32.mrf.mxu0
        %v1301 = vadd.f32 %v897, %v1300
        %1302 = vmatmul.f32.gmra.mxu0 %v1092
        %v1303 = vpop.f32.mrf.mxu0
        %v1304 = vadd.f32 %v900, %v1303
        %1305 = vmatmul.f32.gmra.mxu0 %v1095
        %v1306 = vpop.f32.mrf.mxu0
        %v1307 = vadd.f32 %v903, %v1306
        %1308 = vmatmul.f32.gmra.mxu0 %v1098
        %v1309 = vpop.f32.mrf.mxu0
        %v1310 = vadd.f32 %v906, %v1309
        %1311 = vmatmul.f32.gmra.mxu0 %v1101
        %v1312 = vpop.f32.mrf.mxu0
        %v1313 = vadd.f32 %v909, %v1312
        %1314 = vmatmul.f32.gmra.mxu0 %v1104
        %v1315 = vpop.f32.mrf.mxu0
        %v1316 = vadd.f32 %v912, %v1315
        %1317 = vmatmul.f32.gmra.mxu0 %v1107
        %v1318 = vpop.f32.mrf.mxu0
        %v1319 = vadd.f32 %v915, %v1318
        %1320 = vmatmul.f32.gmra.mxu0 %v1110
        %v1321 = vpop.f32.mrf.mxu0
        %v1322 = vadd.f32 %v918, %v1321
        %1323 = vmatmul.f32.gmra.mxu0 %v1113
        %v1324 = vpop.f32.mrf.mxu0
        %v1325 = vadd.f32 %v921, %v1324
        %1326 = vmatmul.f32.gmra.mxu0 %v1116
        %v1327 = vpop.f32.mrf.mxu0
        %v1328 = vadd.f32 %v924, %v1327
        %1329 = vmatmul.f32.gmra.mxu0 %v1119
        %v1330 = vpop.f32.mrf.mxu0
        %v1331 = vadd.f32 %v927, %v1330
        %1332 = vmatmul.f32.gmra.mxu0 %v1122
        %v1333 = vpop.f32.mrf.mxu0
        %v1334 = vadd.f32 %v930, %v1333
        %1335 = vmatmul.f32.gmra.mxu0 %v1125
        %v1336 = vpop.f32.mrf.mxu0
        %v1337 = vadd.f32 %v933, %v1336
        %1338 = vmatmul.f32.gmra.mxu0 %v1128
        %v1339 = vpop.f32.mrf.mxu0
        %v1340 = vadd.f32 %v936, %v1339
        %1341 = vmatmul.f32.gmra.mxu0 %v1131
        %v1342 = vpop.f32.mrf.mxu0
        %v1343 = vadd.f32 %v939, %v1342
        %1344 = vmatmul.f32.gmra.mxu0 %v1134
        %v1345 = vpop.f32.mrf.mxu0
        %v1346 = vadd.f32 %v942, %v1345
        %1347 = vmatmul.f32.gmra.mxu0 %v1137
        %v1348 = vpop.f32.mrf.mxu0
        %v1349 = vadd.f32 %v945, %v1348
        %1350 = vmatmul.f32.gmra.mxu0 %v1140
        %v1351 = vpop.f32.mrf.mxu0
        %v1352 = vadd.f32 %v948, %v1351
        %1353 = vmatmul.f32.gmra.mxu0 %v1143
        %v1354 = vpop.f32.mrf.mxu0
        %v1355 = vadd.f32 %v951, %v1354
        %1356 = vmatmul.f32.gmra.mxu0 %v1146
        %v1357 = vpop.f32.mrf.mxu0
        %v1358 = vadd.f32 %v954, %v1357
        %1359 = vdwg.mxu0
        %v1360 = vld [vmem:[#allocation2 + $0x2] sm:$0xff]
        %v1361 = vld [vmem:[#allocation2 + $0xa] sm:$0xff]
        %v1362 = vld [vmem:[#allocation2 + $0x12] sm:$0xff]
        %v1363 = vld [vmem:[#allocation2 + $0x1a] sm:$0xff]
        %v1364 = vld [vmem:[#allocation2 + $0x22] sm:$0xff]
        %v1365 = vld [vmem:[#allocation2 + $0x2a] sm:$0xff]
        %v1366 = vld [vmem:[#allocation2 + $0x32] sm:$0xff]
        %v1367 = vld [vmem:[#allocation2 + $0x3a] sm:$0xff]
        %v1368 = vld [vmem:[#allocation2 + $0x42] sm:$0xff]
        %v1369 = vld [vmem:[#allocation2 + $0x4a] sm:$0xff]
        %v1370 = vld [vmem:[#allocation2 + $0x52] sm:$0xff]
        %v1371 = vld [vmem:[#allocation2 + $0x5a] sm:$0xff]
        %v1372 = vld [vmem:[#allocation2 + $0x62] sm:$0xff]
        %v1373 = vld [vmem:[#allocation2 + $0x6a] sm:$0xff]
        %v1374 = vld [vmem:[#allocation2 + $0x72] sm:$0xff]
        %v1375 = vld [vmem:[#allocation2 + $0x7a] sm:$0xff]
        %v1376 = vld [vmem:[#allocation2 + $0x82] sm:$0xff]
        %v1377 = vld [vmem:[#allocation2 + $0x8a] sm:$0xff]
        %v1378 = vld [vmem:[#allocation2 + $0x92] sm:$0xff]
        %v1379 = vld [vmem:[#allocation2 + $0x9a] sm:$0xff]
        %v1380 = vld [vmem:[#allocation2 + $0xa2] sm:$0xff]
        %v1381 = vld [vmem:[#allocation2 + $0xaa] sm:$0xff]
        %v1382 = vld [vmem:[#allocation2 + $0xb2] sm:$0xff]
        %v1383 = vld [vmem:[#allocation2 + $0xba] sm:$0xff]
        %v1384 = vld [vmem:[#allocation2 + $0xc2] sm:$0xff]
        %v1385 = vld [vmem:[#allocation2 + $0xca] sm:$0xff]
        %v1386 = vld [vmem:[#allocation2 + $0xd2] sm:$0xff]
        %v1387 = vld [vmem:[#allocation2 + $0xda] sm:$0xff]
        %v1388 = vld [vmem:[#allocation2 + $0xe2] sm:$0xff]
        %v1389 = vld [vmem:[#allocation2 + $0xea] sm:$0xff]
        %v1390 = vld [vmem:[#allocation2 + $0xf2] sm:$0xff]
        %v1391 = vld [vmem:[#allocation2 + $0xfa] sm:$0xff]
        %v1392 = vld [vmem:[#allocation2 + $0x102] sm:$0xff]
        %v1393 = vld [vmem:[#allocation2 + $0x10a] sm:$0xff]
        %v1394 = vld [vmem:[#allocation2 + $0x112] sm:$0xff]
        %v1395 = vld [vmem:[#allocation2 + $0x11a] sm:$0xff]
        %v1396 = vld [vmem:[#allocation2 + $0x122] sm:$0xff]
        %v1397 = vld [vmem:[#allocation2 + $0x12a] sm:$0xff]
        %v1398 = vld [vmem:[#allocation2 + $0x132] sm:$0xff]
        %v1399 = vld [vmem:[#allocation2 + $0x13a] sm:$0xff]
        %v1400 = vld [vmem:[#allocation2 + $0x142] sm:$0xff]
        %v1401 = vld [vmem:[#allocation2 + $0x14a] sm:$0xff]
        %v1402 = vld [vmem:[#allocation2 + $0x152] sm:$0xff]
        %v1403 = vld [vmem:[#allocation2 + $0x15a] sm:$0xff]
        %v1404 = vld [vmem:[#allocation2 + $0x162] sm:$0xff]
        %v1405 = vld [vmem:[#allocation2 + $0x16a] sm:$0xff]
        %v1406 = vld [vmem:[#allocation2 + $0x172] sm:$0xff]
        %v1407 = vld [vmem:[#allocation2 + $0x17a] sm:$0xff]
        %v1408 = vld [vmem:[#allocation2 + $0x182] sm:$0xff]
        %v1409 = vld [vmem:[#allocation2 + $0x18a] sm:$0xff]
        %v1410 = vld [vmem:[#allocation2 + $0x192] sm:$0xff]
        %v1411 = vld [vmem:[#allocation2 + $0x19a] sm:$0xff]
        %v1412 = vld [vmem:[#allocation2 + $0x1a2] sm:$0xff]
        %v1413 = vld [vmem:[#allocation2 + $0x1aa] sm:$0xff]
        %v1414 = vld [vmem:[#allocation2 + $0x1b2] sm:$0xff]
        %v1415 = vld [vmem:[#allocation2 + $0x1ba] sm:$0xff]
        %v1416 = vld [vmem:[#allocation2 + $0x1c2] sm:$0xff]
        %v1417 = vld [vmem:[#allocation2 + $0x1ca] sm:$0xff]
        %v1418 = vld [vmem:[#allocation2 + $0x1d2] sm:$0xff]
        %v1419 = vld [vmem:[#allocation2 + $0x1da] sm:$0xff]
        %v1420 = vld [vmem:[#allocation2 + $0x1e2] sm:$0xff]
        %v1421 = vld [vmem:[#allocation2 + $0x1ea] sm:$0xff]
        %v1422 = vld [vmem:[#allocation2 + $0x1f2] sm:$0xff]
        %v1423 = vld [vmem:[#allocation2 + $0x1fa] sm:$0xff]
        %s1424 = scalar_lea.vmem [#allocation6], 8
        %v1425 = vld [vmem:[%s1424] sm:$0x7]
        %v1427 = vsel %vm355, %v1360, 0
        %v1430 = vsel %vm355, %v1361, 0
        %v1433 = vsel %vm355, %v1362, 0
        %v1436 = vsel %vm355, %v1363, 0
        %v1439 = vsel %vm355, %v1364, 0
        %v1442 = vsel %vm355, %v1365, 0
        %v1445 = vsel %vm355, %v1366, 0
        %v1448 = vsel %vm355, %v1367, 0
        %v1451 = vsel %vm355, %v1368, 0
        %v1454 = vsel %vm355, %v1369, 0
        %v1457 = vsel %vm355, %v1370, 0
        %v1460 = vsel %vm355, %v1371, 0
        %v1463 = vsel %vm355, %v1372, 0
        %v1466 = vsel %vm355, %v1373, 0
        %v1469 = vsel %vm355, %v1374, 0
        %v1472 = vsel %vm355, %v1375, 0
        %v1475 = vsel %vm355, %v1376, 0
        %v1478 = vsel %vm355, %v1377, 0
        %v1481 = vsel %vm355, %v1378, 0
        %v1484 = vsel %vm355, %v1379, 0
        %v1487 = vsel %vm355, %v1380, 0
        %v1490 = vsel %vm355, %v1381, 0
        %v1493 = vsel %vm355, %v1382, 0
        %v1496 = vsel %vm355, %v1383, 0
        %v1499 = vsel %vm355, %v1384, 0
        %v1502 = vsel %vm355, %v1385, 0
        %v1505 = vsel %vm355, %v1386, 0
        %v1508 = vsel %vm355, %v1387, 0
        %v1511 = vsel %vm355, %v1388, 0
        %v1514 = vsel %vm355, %v1389, 0
        %v1517 = vsel %vm355, %v1390, 0
        %v1520 = vsel %vm355, %v1391, 0
        %v1523 = vsel %vm355, %v1392, 0
        %v1526 = vsel %vm355, %v1393, 0
        %v1529 = vsel %vm355, %v1394, 0
        %v1532 = vsel %vm355, %v1395, 0
        %v1535 = vsel %vm355, %v1396, 0
        %v1538 = vsel %vm355, %v1397, 0
        %v1541 = vsel %vm355, %v1398, 0
        %v1544 = vsel %vm355, %v1399, 0
        %v1547 = vsel %vm355, %v1400, 0
        %v1550 = vsel %vm355, %v1401, 0
        %v1553 = vsel %vm355, %v1402, 0
        %v1556 = vsel %vm355, %v1403, 0
        %v1559 = vsel %vm355, %v1404, 0
        %v1562 = vsel %vm355, %v1405, 0
        %v1565 = vsel %vm355, %v1406, 0
        %v1568 = vsel %vm355, %v1407, 0
        %v1571 = vsel %vm355, %v1408, 0
        %v1574 = vsel %vm355, %v1409, 0
        %v1577 = vsel %vm355, %v1410, 0
        %v1580 = vsel %vm355, %v1411, 0
        %v1583 = vsel %vm355, %v1412, 0
        %v1586 = vsel %vm355, %v1413, 0
        %v1589 = vsel %vm355, %v1414, 0
        %v1592 = vsel %vm355, %v1415, 0
        %v1595 = vsel %vm355, %v1416, 0
        %v1598 = vsel %vm355, %v1417, 0
        %v1601 = vsel %vm355, %v1418, 0
        %v1604 = vsel %vm355, %v1419, 0
        %v1607 = vsel %vm355, %v1420, 0
        %v1610 = vsel %vm355, %v1421, 0
        %v1613 = vsel %vm355, %v1422, 0
        %v1616 = vsel %vm355, %v1423, 0
        %v1619 = vsel %vm743, %v1425, 0
        %1621 = vmatpush.msra.mxu0 0.0
        %1622 = vmatpush.msra.mxu0 0.0
        %1623 = vmatpush.msra.mxu0 0.0
        %1624 = vmatpush.msra.mxu0 0.0
        %1625 = vmatpush.msra.mxu0 0.0
        %1626 = vmatpush.msra.mxu0 0.0
        %1627 = vmatpush.msra.mxu0 0.0
        %1628 = vmatpush.msra.mxu0 0.0
        %1629 = vmatpush.msra.mxu0 0.0
        %1630 = vmatpush.msra.mxu0 0.0
        %1631 = vmatpush.msra.mxu0 0.0
        %1632 = vmatpush.msra.mxu0 0.0
        %1633 = vmatpush.msra.mxu0 0.0
        %1634 = vmatpush.msra.mxu0 0.0
        %1635 = vmatpush.msra.mxu0 0.0
        %1636 = vmatpush.msra.mxu0 %v1619
        %1637 = vmatmul.f32.gmra.mxu0 %v1427
        %v1638 = vpop.f32.mrf.mxu0
        %v1639 = vadd.f32 0.0, %v1638
        %1640 = vmatmul.f32.gmra.mxu0 %v1430
        %v1641 = vpop.f32.mrf.mxu0
        %v1642 = vadd.f32 0.0, %v1641
        %1643 = vmatmul.f32.gmra.mxu0 %v1433
        %v1644 = vpop.f32.mrf.mxu0
        %v1645 = vadd.f32 0.0, %v1644
        %1646 = vmatmul.f32.gmra.mxu0 %v1436
        %v1647 = vpop.f32.mrf.mxu0
        %v1648 = vadd.f32 0.0, %v1647
        %1649 = vmatmul.f32.gmra.mxu0 %v1439
        %v1650 = vpop.f32.mrf.mxu0
        %v1651 = vadd.f32 0.0, %v1650
        %1652 = vmatmul.f32.gmra.mxu0 %v1442
        %v1653 = vpop.f32.mrf.mxu0
        %v1654 = vadd.f32 0.0, %v1653
        %1655 = vmatmul.f32.gmra.mxu0 %v1445
        %v1656 = vpop.f32.mrf.mxu0
        %v1657 = vadd.f32 0.0, %v1656
        %1658 = vmatmul.f32.gmra.mxu0 %v1448
        %v1659 = vpop.f32.mrf.mxu0
        %v1660 = vadd.f32 0.0, %v1659
        %1661 = vmatmul.f32.gmra.mxu0 %v1451
        %v1662 = vpop.f32.mrf.mxu0
        %v1663 = vadd.f32 0.0, %v1662
        %1664 = vmatmul.f32.gmra.mxu0 %v1454
        %v1665 = vpop.f32.mrf.mxu0
        %v1666 = vadd.f32 0.0, %v1665
        %1667 = vmatmul.f32.gmra.mxu0 %v1457
        %v1668 = vpop.f32.mrf.mxu0
        %v1669 = vadd.f32 0.0, %v1668
        %1670 = vmatmul.f32.gmra.mxu0 %v1460
        %v1671 = vpop.f32.mrf.mxu0
        %v1672 = vadd.f32 0.0, %v1671
        %1673 = vmatmul.f32.gmra.mxu0 %v1463
        %v1674 = vpop.f32.mrf.mxu0
        %v1675 = vadd.f32 0.0, %v1674
        %1676 = vmatmul.f32.gmra.mxu0 %v1466
        %v1677 = vpop.f32.mrf.mxu0
        %v1678 = vadd.f32 0.0, %v1677
        %1679 = vmatmul.f32.gmra.mxu0 %v1469
        %v1680 = vpop.f32.mrf.mxu0
        %v1681 = vadd.f32 0.0, %v1680
        %1682 = vmatmul.f32.gmra.mxu0 %v1472
        %v1683 = vpop.f32.mrf.mxu0
        %v1684 = vadd.f32 0.0, %v1683
        %1685 = vmatmul.f32.gmra.mxu0 %v1475
        %v1686 = vpop.f32.mrf.mxu0
        %v1687 = vadd.f32 0.0, %v1686
        %1688 = vmatmul.f32.gmra.mxu0 %v1478
        %v1689 = vpop.f32.mrf.mxu0
        %v1690 = vadd.f32 0.0, %v1689
        %1691 = vmatmul.f32.gmra.mxu0 %v1481
        %v1692 = vpop.f32.mrf.mxu0
        %v1693 = vadd.f32 0.0, %v1692
        %1694 = vmatmul.f32.gmra.mxu0 %v1484
        %v1695 = vpop.f32.mrf.mxu0
        %v1696 = vadd.f32 0.0, %v1695
        %1697 = vmatmul.f32.gmra.mxu0 %v1487
        %v1698 = vpop.f32.mrf.mxu0
        %v1699 = vadd.f32 0.0, %v1698
        %1700 = vmatmul.f32.gmra.mxu0 %v1490
        %v1701 = vpop.f32.mrf.mxu0
        %v1702 = vadd.f32 0.0, %v1701
        %1703 = vmatmul.f32.gmra.mxu0 %v1493
        %v1704 = vpop.f32.mrf.mxu0
        %v1705 = vadd.f32 0.0, %v1704
        %1706 = vmatmul.f32.gmra.mxu0 %v1496
        %v1707 = vpop.f32.mrf.mxu0
        %v1708 = vadd.f32 0.0, %v1707
        %1709 = vmatmul.f32.gmra.mxu0 %v1499
        %v1710 = vpop.f32.mrf.mxu0
        %v1711 = vadd.f32 0.0, %v1710
        %1712 = vmatmul.f32.gmra.mxu0 %v1502
        %v1713 = vpop.f32.mrf.mxu0
        %v1714 = vadd.f32 0.0, %v1713
        %1715 = vmatmul.f32.gmra.mxu0 %v1505
        %v1716 = vpop.f32.mrf.mxu0
        %v1717 = vadd.f32 0.0, %v1716
        %1718 = vmatmul.f32.gmra.mxu0 %v1508
        %v1719 = vpop.f32.mrf.mxu0
        %v1720 = vadd.f32 0.0, %v1719
        %1721 = vmatmul.f32.gmra.mxu0 %v1511
        %v1722 = vpop.f32.mrf.mxu0
        %v1723 = vadd.f32 0.0, %v1722
        %1724 = vmatmul.f32.gmra.mxu0 %v1514
        %v1725 = vpop.f32.mrf.mxu0
        %v1726 = vadd.f32 0.0, %v1725
        %1727 = vmatmul.f32.gmra.mxu0 %v1517
        %v1728 = vpop.f32.mrf.mxu0
        %v1729 = vadd.f32 0.0, %v1728
        %1730 = vmatmul.f32.gmra.mxu0 %v1520
        %v1731 = vpop.f32.mrf.mxu0
        %v1732 = vadd.f32 0.0, %v1731
        %1733 = vmatmul.f32.gmra.mxu0 %v1523
        %v1734 = vpop.f32.mrf.mxu0
        %v1735 = vadd.f32 0.0, %v1734
        %1736 = vmatmul.f32.gmra.mxu0 %v1526
        %v1737 = vpop.f32.mrf.mxu0
        %v1738 = vadd.f32 0.0, %v1737
        %1739 = vmatmul.f32.gmra.mxu0 %v1529
        %v1740 = vpop.f32.mrf.mxu0
        %v1741 = vadd.f32 0.0, %v1740
        %1742 = vmatmul.f32.gmra.mxu0 %v1532
        %v1743 = vpop.f32.mrf.mxu0
        %v1744 = vadd.f32 0.0, %v1743
        %1745 = vmatmul.f32.gmra.mxu0 %v1535
        %v1746 = vpop.f32.mrf.mxu0
        %v1747 = vadd.f32 0.0, %v1746
        %1748 = vmatmul.f32.gmra.mxu0 %v1538
        %v1749 = vpop.f32.mrf.mxu0
        %v1750 = vadd.f32 0.0, %v1749
        %1751 = vmatmul.f32.gmra.mxu0 %v1541
        %v1752 = vpop.f32.mrf.mxu0
        %v1753 = vadd.f32 0.0, %v1752
        %1754 = vmatmul.f32.gmra.mxu0 %v1544
        %v1755 = vpop.f32.mrf.mxu0
        %v1756 = vadd.f32 0.0, %v1755
        %1757 = vmatmul.f32.gmra.mxu0 %v1547
        %v1758 = vpop.f32.mrf.mxu0
        %v1759 = vadd.f32 0.0, %v1758
        %1760 = vmatmul.f32.gmra.mxu0 %v1550
        %v1761 = vpop.f32.mrf.mxu0
        %v1762 = vadd.f32 0.0, %v1761
        %1763 = vmatmul.f32.gmra.mxu0 %v1553
        %v1764 = vpop.f32.mrf.mxu0
        %v1765 = vadd.f32 0.0, %v1764
        %1766 = vmatmul.f32.gmra.mxu0 %v1556
        %v1767 = vpop.f32.mrf.mxu0
        %v1768 = vadd.f32 0.0, %v1767
        %1769 = vmatmul.f32.gmra.mxu0 %v1559
        %v1770 = vpop.f32.mrf.mxu0
        %v1771 = vadd.f32 0.0, %v1770
        %1772 = vmatmul.f32.gmra.mxu0 %v1562
        %v1773 = vpop.f32.mrf.mxu0
        %v1774 = vadd.f32 0.0, %v1773
        %1775 = vmatmul.f32.gmra.mxu0 %v1565
        %v1776 = vpop.f32.mrf.mxu0
        %v1777 = vadd.f32 0.0, %v1776
        %1778 = vmatmul.f32.gmra.mxu0 %v1568
        %v1779 = vpop.f32.mrf.mxu0
        %v1780 = vadd.f32 0.0, %v1779
        %1781 = vmatmul.f32.gmra.mxu0 %v1571
        %v1782 = vpop.f32.mrf.mxu0
        %v1783 = vadd.f32 0.0, %v1782
        %1784 = vmatmul.f32.gmra.mxu0 %v1574
        %v1785 = vpop.f32.mrf.mxu0
        %v1786 = vadd.f32 0.0, %v1785
        %1787 = vmatmul.f32.gmra.mxu0 %v1577
        %v1788 = vpop.f32.mrf.mxu0
        %v1789 = vadd.f32 0.0, %v1788
        %1790 = vmatmul.f32.gmra.mxu0 %v1580
        %v1791 = vpop.f32.mrf.mxu0
        %v1792 = vadd.f32 0.0, %v1791
        %1793 = vmatmul.f32.gmra.mxu0 %v1583
        %v1794 = vpop.f32.mrf.mxu0
        %v1795 = vadd.f32 0.0, %v1794
        %1796 = vmatmul.f32.gmra.mxu0 %v1586
        %v1797 = vpop.f32.mrf.mxu0
        %v1798 = vadd.f32 0.0, %v1797
        %1799 = vmatmul.f32.gmra.mxu0 %v1589
        %v1800 = vpop.f32.mrf.mxu0
        %v1801 = vadd.f32 0.0, %v1800
        %1802 = vmatmul.f32.gmra.mxu0 %v1592
        %v1803 = vpop.f32.mrf.mxu0
        %v1804 = vadd.f32 0.0, %v1803
        %1805 = vmatmul.f32.gmra.mxu0 %v1595
        %v1806 = vpop.f32.mrf.mxu0
        %v1807 = vadd.f32 0.0, %v1806
        %1808 = vmatmul.f32.gmra.mxu0 %v1598
        %v1809 = vpop.f32.mrf.mxu0
        %v1810 = vadd.f32 0.0, %v1809
        %1811 = vmatmul.f32.gmra.mxu0 %v1601
        %v1812 = vpop.f32.mrf.mxu0
        %v1813 = vadd.f32 0.0, %v1812
        %1814 = vmatmul.f32.gmra.mxu0 %v1604
        %v1815 = vpop.f32.mrf.mxu0
        %v1816 = vadd.f32 0.0, %v1815
        %1817 = vmatmul.f32.gmra.mxu0 %v1607
        %v1818 = vpop.f32.mrf.mxu0
        %v1819 = vadd.f32 0.0, %v1818
        %1820 = vmatmul.f32.gmra.mxu0 %v1610
        %v1821 = vpop.f32.mrf.mxu0
        %v1822 = vadd.f32 0.0, %v1821
        %1823 = vmatmul.f32.gmra.mxu0 %v1613
        %v1824 = vpop.f32.mrf.mxu0
        %v1825 = vadd.f32 0.0, %v1824
        %1826 = vmatmul.f32.gmra.mxu0 %v1616
        %v1827 = vpop.f32.mrf.mxu0
        %v1828 = vadd.f32 0.0, %v1827
        %1829 = vdwg.mxu0
        %v1830 = vadd.f32 %v1169, %v1639
        %v1831 = vadd.f32 %v1172, %v1642
        %v1832 = vadd.f32 %v1175, %v1645
        %v1833 = vadd.f32 %v1178, %v1648
        %v1834 = vadd.f32 %v1181, %v1651
        %v1835 = vadd.f32 %v1184, %v1654
        %v1836 = vadd.f32 %v1187, %v1657
        %v1837 = vadd.f32 %v1190, %v1660
        %v1838 = vadd.f32 %v1193, %v1663
        %v1839 = vadd.f32 %v1196, %v1666
        %v1840 = vadd.f32 %v1199, %v1669
        %v1841 = vadd.f32 %v1202, %v1672
        %v1842 = vadd.f32 %v1205, %v1675
        %v1843 = vadd.f32 %v1208, %v1678
        %v1844 = vadd.f32 %v1211, %v1681
        %v1845 = vadd.f32 %v1214, %v1684
        %v1846 = vadd.f32 %v1217, %v1687
        %v1847 = vadd.f32 %v1220, %v1690
        %v1848 = vadd.f32 %v1223, %v1693
        %v1849 = vadd.f32 %v1226, %v1696
        %v1850 = vadd.f32 %v1229, %v1699
        %v1851 = vadd.f32 %v1232, %v1702
        %v1852 = vadd.f32 %v1235, %v1705
        %v1853 = vadd.f32 %v1238, %v1708
        %v1854 = vadd.f32 %v1241, %v1711
        %v1855 = vadd.f32 %v1244, %v1714
        %v1856 = vadd.f32 %v1247, %v1717
        %v1857 = vadd.f32 %v1250, %v1720
        %v1858 = vadd.f32 %v1253, %v1723
        %v1859 = vadd.f32 %v1256, %v1726
        %v1860 = vadd.f32 %v1259, %v1729
        %v1861 = vadd.f32 %v1262, %v1732
        %v1862 = vadd.f32 %v1265, %v1735
        %v1863 = vadd.f32 %v1268, %v1738
        %v1864 = vadd.f32 %v1271, %v1741
        %v1865 = vadd.f32 %v1274, %v1744
        %v1866 = vadd.f32 %v1277, %v1747
        %v1867 = vadd.f32 %v1280, %v1750
        %v1868 = vadd.f32 %v1283, %v1753
        %v1869 = vadd.f32 %v1286, %v1756
        %v1870 = vadd.f32 %v1289, %v1759
        %v1871 = vadd.f32 %v1292, %v1762
        %v1872 = vadd.f32 %v1295, %v1765
        %v1873 = vadd.f32 %v1298, %v1768
        %v1874 = vadd.f32 %v1301, %v1771
        %v1875 = vadd.f32 %v1304, %v1774
        %v1876 = vadd.f32 %v1307, %v1777
        %v1877 = vadd.f32 %v1310, %v1780
        %v1878 = vadd.f32 %v1313, %v1783
        %v1879 = vadd.f32 %v1316, %v1786
        %v1880 = vadd.f32 %v1319, %v1789
        %v1881 = vadd.f32 %v1322, %v1792
        %v1882 = vadd.f32 %v1325, %v1795
        %v1883 = vadd.f32 %v1328, %v1798
        %v1884 = vadd.f32 %v1331, %v1801
        %v1885 = vadd.f32 %v1334, %v1804
        %v1886 = vadd.f32 %v1337, %v1807
        %v1887 = vadd.f32 %v1340, %v1810
        %v1888 = vadd.f32 %v1343, %v1813
        %v1889 = vadd.f32 %v1346, %v1816
        %v1890 = vadd.f32 %v1349, %v1819
        %v1891 = vadd.f32 %v1352, %v1822
        %v1892 = vadd.f32 %v1355, %v1825
        %v1893 = vadd.f32 %v1358, %v1828
        %v1894 = vld [vmem:[#allocation8] sm:$0x1]
        %v1896 = vperm.slane %v1894, 0
        %v1898 = vadd.f32 %v1830, %v1896
        %v1899 = vadd.f32 %v1831, %v1896
        %v1900 = vadd.f32 %v1832, %v1896
        %v1901 = vadd.f32 %v1833, %v1896
        %v1902 = vadd.f32 %v1834, %v1896
        %v1903 = vadd.f32 %v1835, %v1896
        %v1904 = vadd.f32 %v1836, %v1896
        %v1905 = vadd.f32 %v1837, %v1896
        %v1906 = vadd.f32 %v1838, %v1896
        %v1907 = vadd.f32 %v1839, %v1896
        %v1908 = vadd.f32 %v1840, %v1896
        %v1909 = vadd.f32 %v1841, %v1896
        %v1910 = vadd.f32 %v1842, %v1896
        %v1911 = vadd.f32 %v1843, %v1896
        %v1912 = vadd.f32 %v1844, %v1896
        %v1913 = vadd.f32 %v1845, %v1896
        %v1914 = vadd.f32 %v1846, %v1896
        %v1915 = vadd.f32 %v1847, %v1896
        %v1916 = vadd.f32 %v1848, %v1896
        %v1917 = vadd.f32 %v1849, %v1896
        %v1918 = vadd.f32 %v1850, %v1896
        %v1919 = vadd.f32 %v1851, %v1896
        %v1920 = vadd.f32 %v1852, %v1896
        %v1921 = vadd.f32 %v1853, %v1896
        %v1922 = vadd.f32 %v1854, %v1896
        %v1923 = vadd.f32 %v1855, %v1896
        %v1924 = vadd.f32 %v1856, %v1896
        %v1925 = vadd.f32 %v1857, %v1896
        %v1926 = vadd.f32 %v1858, %v1896
        %v1927 = vadd.f32 %v1859, %v1896
        %v1928 = vadd.f32 %v1860, %v1896
        %v1929 = vadd.f32 %v1861, %v1896
        %v1930 = vadd.f32 %v1862, %v1896
        %v1931 = vadd.f32 %v1863, %v1896
        %v1932 = vadd.f32 %v1864, %v1896
        %v1933 = vadd.f32 %v1865, %v1896
        %v1934 = vadd.f32 %v1866, %v1896
        %v1935 = vadd.f32 %v1867, %v1896
        %v1936 = vadd.f32 %v1868, %v1896
        %v1937 = vadd.f32 %v1869, %v1896
        %v1938 = vadd.f32 %v1870, %v1896
        %v1939 = vadd.f32 %v1871, %v1896
        %v1940 = vadd.f32 %v1872, %v1896
        %v1941 = vadd.f32 %v1873, %v1896
        %v1942 = vadd.f32 %v1874, %v1896
        %v1943 = vadd.f32 %v1875, %v1896
        %v1944 = vadd.f32 %v1876, %v1896
        %v1945 = vadd.f32 %v1877, %v1896
        %v1946 = vadd.f32 %v1878, %v1896
        %v1947 = vadd.f32 %v1879, %v1896
        %v1948 = vadd.f32 %v1880, %v1896
        %v1949 = vadd.f32 %v1881, %v1896
        %v1950 = vadd.f32 %v1882, %v1896
        %v1951 = vadd.f32 %v1883, %v1896
        %v1952 = vadd.f32 %v1884, %v1896
        %v1953 = vadd.f32 %v1885, %v1896
        %v1954 = vadd.f32 %v1886, %v1896
        %v1955 = vadd.f32 %v1887, %v1896
        %v1956 = vadd.f32 %v1888, %v1896
        %v1957 = vadd.f32 %v1889, %v1896
        %v1958 = vadd.f32 %v1890, %v1896
        %v1959 = vadd.f32 %v1891, %v1896
        %v1960 = vadd.f32 %v1892, %v1896
        %v1961 = vadd.f32 %v1893, %v1896
        %v1962 = vmax.f32 %v1898, 0.0
        %v1963 = vmax.f32 %v1899, 0.0
        %v1964 = vmax.f32 %v1900, 0.0
        %v1965 = vmax.f32 %v1901, 0.0
        %v1966 = vmax.f32 %v1902, 0.0
        %v1967 = vmax.f32 %v1903, 0.0
        %v1968 = vmax.f32 %v1904, 0.0
        %v1969 = vmax.f32 %v1905, 0.0
        %v1970 = vmax.f32 %v1906, 0.0
        %v1971 = vmax.f32 %v1907, 0.0
        %v1972 = vmax.f32 %v1908, 0.0
        %v1973 = vmax.f32 %v1909, 0.0
        %v1974 = vmax.f32 %v1910, 0.0
        %v1975 = vmax.f32 %v1911, 0.0
        %v1976 = vmax.f32 %v1912, 0.0
        %v1977 = vmax.f32 %v1913, 0.0
        %v1978 = vmax.f32 %v1914, 0.0
        %v1979 = vmax.f32 %v1915, 0.0
        %v1980 = vmax.f32 %v1916, 0.0
        %v1981 = vmax.f32 %v1917, 0.0
        %v1982 = vmax.f32 %v1918, 0.0
        %v1983 = vmax.f32 %v1919, 0.0
        %v1984 = vmax.f32 %v1920, 0.0
        %v1985 = vmax.f32 %v1921, 0.0
        %v1986 = vmax.f32 %v1922, 0.0
        %v1987 = vmax.f32 %v1923, 0.0
        %v1988 = vmax.f32 %v1924, 0.0
        %v1989 = vmax.f32 %v1925, 0.0
        %v1990 = vmax.f32 %v1926, 0.0
        %v1991 = vmax.f32 %v1927, 0.0
        %v1992 = vmax.f32 %v1928, 0.0
        %v1993 = vmax.f32 %v1929, 0.0
        %v1994 = vmax.f32 %v1930, 0.0
        %v1995 = vmax.f32 %v1931, 0.0
        %v1996 = vmax.f32 %v1932, 0.0
        %v1997 = vmax.f32 %v1933, 0.0
        %v1998 = vmax.f32 %v1934, 0.0
        %v1999 = vmax.f32 %v1935, 0.0
        %v2000 = vmax.f32 %v1936, 0.0
        %v2001 = vmax.f32 %v1937, 0.0
        %v2002 = vmax.f32 %v1938, 0.0
        %v2003 = vmax.f32 %v1939, 0.0
        %v2004 = vmax.f32 %v1940, 0.0
        %v2005 = vmax.f32 %v1941, 0.0
        %v2006 = vmax.f32 %v1942, 0.0
        %v2007 = vmax.f32 %v1943, 0.0
        %v2008 = vmax.f32 %v1944, 0.0
        %v2009 = vmax.f32 %v1945, 0.0
        %v2010 = vmax.f32 %v1946, 0.0
        %v2011 = vmax.f32 %v1947, 0.0
        %v2012 = vmax.f32 %v1948, 0.0
        %v2013 = vmax.f32 %v1949, 0.0
        %v2014 = vmax.f32 %v1950, 0.0
        %v2015 = vmax.f32 %v1951, 0.0
        %v2016 = vmax.f32 %v1952, 0.0
        %v2017 = vmax.f32 %v1953, 0.0
        %v2018 = vmax.f32 %v1954, 0.0
        %v2019 = vmax.f32 %v1955, 0.0
        %v2020 = vmax.f32 %v1956, 0.0
        %v2021 = vmax.f32 %v1957, 0.0
        %v2022 = vmax.f32 %v1958, 0.0
        %v2023 = vmax.f32 %v1959, 0.0
        %v2024 = vmax.f32 %v1960, 0.0
        %v2025 = vmax.f32 %v1961, 0.0
        %vm2026 = vcmask 261120
        %2027 = vst.msk [vmem:[#allocation3] sm:$0xff] %vm2026, %v1962
        %2028 = vst.msk [vmem:[#allocation3 + $0x8] sm:$0xff] %vm2026, %v1963
        %2029 = vst.msk [vmem:[#allocation3 + $0x10] sm:$0xff] %vm2026, %v1964
        %2030 = vst.msk [vmem:[#allocation3 + $0x18] sm:$0xff] %vm2026, %v1965
        %2031 = vst.msk [vmem:[#allocation3 + $0x20] sm:$0xff] %vm2026, %v1966
        %2032 = vst.msk [vmem:[#allocation3 + $0x28] sm:$0xff] %vm2026, %v1967
        %2033 = vst.msk [vmem:[#allocation3 + $0x30] sm:$0xff] %vm2026, %v1968
        %2034 = vst.msk [vmem:[#allocation3 + $0x38] sm:$0xff] %vm2026, %v1969
        %2035 = vst.msk [vmem:[#allocation3 + $0x40] sm:$0xff] %vm2026, %v1970
        %2036 = vst.msk [vmem:[#allocation3 + $0x48] sm:$0xff] %vm2026, %v1971
        %2037 = vst.msk [vmem:[#allocation3 + $0x50] sm:$0xff] %vm2026, %v1972
        %2038 = vst.msk [vmem:[#allocation3 + $0x58] sm:$0xff] %vm2026, %v1973
        %2039 = vst.msk [vmem:[#allocation3 + $0x60] sm:$0xff] %vm2026, %v1974
        %2040 = vst.msk [vmem:[#allocation3 + $0x68] sm:$0xff] %vm2026, %v1975
        %2041 = vst.msk [vmem:[#allocation3 + $0x70] sm:$0xff] %vm2026, %v1976
        %2042 = vst.msk [vmem:[#allocation3 + $0x78] sm:$0xff] %vm2026, %v1977
        %2043 = vst.msk [vmem:[#allocation3 + $0x80] sm:$0xff] %vm2026, %v1978
        %2044 = vst.msk [vmem:[#allocation3 + $0x88] sm:$0xff] %vm2026, %v1979
        %2045 = vst.msk [vmem:[#allocation3 + $0x90] sm:$0xff] %vm2026, %v1980
        %2046 = vst.msk [vmem:[#allocation3 + $0x98] sm:$0xff] %vm2026, %v1981
        %2047 = vst.msk [vmem:[#allocation3 + $0xa0] sm:$0xff] %vm2026, %v1982
        %2048 = vst.msk [vmem:[#allocation3 + $0xa8] sm:$0xff] %vm2026, %v1983
        %2049 = vst.msk [vmem:[#allocation3 + $0xb0] sm:$0xff] %vm2026, %v1984
        %2050 = vst.msk [vmem:[#allocation3 + $0xb8] sm:$0xff] %vm2026, %v1985
        %2051 = vst.msk [vmem:[#allocation3 + $0xc0] sm:$0xff] %vm2026, %v1986
        %2052 = vst.msk [vmem:[#allocation3 + $0xc8] sm:$0xff] %vm2026, %v1987
        %2053 = vst.msk [vmem:[#allocation3 + $0xd0] sm:$0xff] %vm2026, %v1988
        %2054 = vst.msk [vmem:[#allocation3 + $0xd8] sm:$0xff] %vm2026, %v1989
        %2055 = vst.msk [vmem:[#allocation3 + $0xe0] sm:$0xff] %vm2026, %v1990
        %2056 = vst.msk [vmem:[#allocation3 + $0xe8] sm:$0xff] %vm2026, %v1991
        %2057 = vst.msk [vmem:[#allocation3 + $0xf0] sm:$0xff] %vm2026, %v1992
        %2058 = vst.msk [vmem:[#allocation3 + $0xf8] sm:$0xff] %vm2026, %v1993
        %2059 = vst.msk [vmem:[#allocation3 + $0x100] sm:$0xff] %vm2026, %v1994
        %2060 = vst.msk [vmem:[#allocation3 + $0x108] sm:$0xff] %vm2026, %v1995
        %2061 = vst.msk [vmem:[#allocation3 + $0x110] sm:$0xff] %vm2026, %v1996
        %2062 = vst.msk [vmem:[#allocation3 + $0x118] sm:$0xff] %vm2026, %v1997
        %2063 = vst.msk [vmem:[#allocation3 + $0x120] sm:$0xff] %vm2026, %v1998
        %2064 = vst.msk [vmem:[#allocation3 + $0x128] sm:$0xff] %vm2026, %v1999
        %2065 = vst.msk [vmem:[#allocation3 + $0x130] sm:$0xff] %vm2026, %v2000
        %2066 = vst.msk [vmem:[#allocation3 + $0x138] sm:$0xff] %vm2026, %v2001
        %2067 = vst.msk [vmem:[#allocation3 + $0x140] sm:$0xff] %vm2026, %v2002
        %2068 = vst.msk [vmem:[#allocation3 + $0x148] sm:$0xff] %vm2026, %v2003
        %2069 = vst.msk [vmem:[#allocation3 + $0x150] sm:$0xff] %vm2026, %v2004
        %2070 = vst.msk [vmem:[#allocation3 + $0x158] sm:$0xff] %vm2026, %v2005
        %2071 = vst.msk [vmem:[#allocation3 + $0x160] sm:$0xff] %vm2026, %v2006
        %2072 = vst.msk [vmem:[#allocation3 + $0x168] sm:$0xff] %vm2026, %v2007
        %2073 = vst.msk [vmem:[#allocation3 + $0x170] sm:$0xff] %vm2026, %v2008
        %2074 = vst.msk [vmem:[#allocation3 + $0x178] sm:$0xff] %vm2026, %v2009
        %2075 = vst.msk [vmem:[#allocation3 + $0x180] sm:$0xff] %vm2026, %v2010
        %2076 = vst.msk [vmem:[#allocation3 + $0x188] sm:$0xff] %vm2026, %v2011
        %2077 = vst.msk [vmem:[#allocation3 + $0x190] sm:$0xff] %vm2026, %v2012
        %2078 = vst.msk [vmem:[#allocation3 + $0x198] sm:$0xff] %vm2026, %v2013
        %2079 = vst.msk [vmem:[#allocation3 + $0x1a0] sm:$0xff] %vm2026, %v2014
        %2080 = vst.msk [vmem:[#allocation3 + $0x1a8] sm:$0xff] %vm2026, %v2015
        %2081 = vst.msk [vmem:[#allocation3 + $0x1b0] sm:$0xff] %vm2026, %v2016
        %2082 = vst.msk [vmem:[#allocation3 + $0x1b8] sm:$0xff] %vm2026, %v2017
        %2083 = vst.msk [vmem:[#allocation3 + $0x1c0] sm:$0xff] %vm2026, %v2018
        %2084 = vst.msk [vmem:[#allocation3 + $0x1c8] sm:$0xff] %vm2026, %v2019
        %2085 = vst.msk [vmem:[#allocation3 + $0x1d0] sm:$0xff] %vm2026, %v2020
        %2086 = vst.msk [vmem:[#allocation3 + $0x1d8] sm:$0xff] %vm2026, %v2021
        %2087 = vst.msk [vmem:[#allocation3 + $0x1e0] sm:$0xff] %vm2026, %v2022
        %2088 = vst.msk [vmem:[#allocation3 + $0x1e8] sm:$0xff] %vm2026, %v2023
        %2089 = vst.msk [vmem:[#allocation3 + $0x1f0] sm:$0xff] %vm2026, %v2024
        %2090 = vst.msk [vmem:[#allocation3 + $0x1f8] sm:$0xff] %vm2026, %v2025
        %v2091 = vld [vmem:[#allocation3] ss:$2 sm:$0xff]
        %s2092 = scalar_lea.vmem [#allocation3], 16
        %v2093 = vld [vmem:[%s2092] ss:$2 sm:$0xff]
        %s2094 = scalar_lea.vmem [#allocation3], 32
        %v2095 = vld [vmem:[%s2094] ss:$2 sm:$0xff]
        %s2096 = scalar_lea.vmem [#allocation3], 48
        %v2097 = vld [vmem:[%s2096] ss:$2 sm:$0xff]
        %s2098 = scalar_lea.vmem [#allocation3], 64
        %v2099 = vld [vmem:[%s2098] ss:$2 sm:$0xff]
        %s2100 = scalar_lea.vmem [#allocation3], 80
        %v2101 = vld [vmem:[%s2100] ss:$2 sm:$0xff]
        %s2102 = scalar_lea.vmem [#allocation3], 96
        %v2103 = vld [vmem:[%s2102] ss:$2 sm:$0xff]
        %s2104 = scalar_lea.vmem [#allocation3], 112
        %v2105 = vld [vmem:[%s2104] ss:$2 sm:$0xff]
        %s2106 = scalar_lea.vmem [#allocation3], 128
        %v2107 = vld [vmem:[%s2106] ss:$2 sm:$0xff]
        %s2108 = scalar_lea.vmem [#allocation3], 144
        %v2109 = vld [vmem:[%s2108] ss:$2 sm:$0xff]
        %s2110 = scalar_lea.vmem [#allocation3], 160
        %v2111 = vld [vmem:[%s2110] ss:$2 sm:$0xff]
        %s2112 = scalar_lea.vmem [#allocation3], 176
        %v2113 = vld [vmem:[%s2112] ss:$2 sm:$0xff]
        %s2114 = scalar_lea.vmem [#allocation3], 192
        %v2115 = vld [vmem:[%s2114] ss:$2 sm:$0xff]
        %s2116 = scalar_lea.vmem [#allocation3], 208
        %v2117 = vld [vmem:[%s2116] ss:$2 sm:$0xff]
        %s2118 = scalar_lea.vmem [#allocation3], 224
        %v2119 = vld [vmem:[%s2118] ss:$2 sm:$0xff]
        %s2120 = scalar_lea.vmem [#allocation3], 240
        %v2121 = vld [vmem:[%s2120] ss:$2 sm:$0xff]
        %s2122 = scalar_lea.vmem [#allocation3], 256
        %v2123 = vld [vmem:[%s2122] ss:$2 sm:$0xff]
        %s2124 = scalar_lea.vmem [#allocation3], 272
        %v2125 = vld [vmem:[%s2124] ss:$2 sm:$0xff]
        %s2126 = scalar_lea.vmem [#allocation3], 288
        %v2127 = vld [vmem:[%s2126] ss:$2 sm:$0xff]
        %s2128 = scalar_lea.vmem [#allocation3], 304
        %v2129 = vld [vmem:[%s2128] ss:$2 sm:$0xff]
        %s2130 = scalar_lea.vmem [#allocation3], 320
        %v2131 = vld [vmem:[%s2130] ss:$2 sm:$0xff]
        %s2132 = scalar_lea.vmem [#allocation3], 336
        %v2133 = vld [vmem:[%s2132] ss:$2 sm:$0xff]
        %s2134 = scalar_lea.vmem [#allocation3], 352
        %v2135 = vld [vmem:[%s2134] ss:$2 sm:$0xff]
        %s2136 = scalar_lea.vmem [#allocation3], 368
        %v2137 = vld [vmem:[%s2136] ss:$2 sm:$0xff]
        %s2138 = scalar_lea.vmem [#allocation3], 384
        %v2139 = vld [vmem:[%s2138] ss:$2 sm:$0xff]
        %s2140 = scalar_lea.vmem [#allocation3], 400
        %v2141 = vld [vmem:[%s2140] ss:$2 sm:$0xff]
        %s2142 = scalar_lea.vmem [#allocation3], 416
        %v2143 = vld [vmem:[%s2142] ss:$2 sm:$0xff]
        %s2144 = scalar_lea.vmem [#allocation3], 432
        %v2145 = vld [vmem:[%s2144] ss:$2 sm:$0xff]
        %s2146 = scalar_lea.vmem [#allocation3], 448
        %v2147 = vld [vmem:[%s2146] ss:$2 sm:$0xff]
        %s2148 = scalar_lea.vmem [#allocation3], 464
        %v2149 = vld [vmem:[%s2148] ss:$2 sm:$0xff]
        %s2150 = scalar_lea.vmem [#allocation3], 480
        %v2151 = vld [vmem:[%s2150] ss:$2 sm:$0xff]
        %s2152 = scalar_lea.vmem [#allocation3], 496
        %v2153 = vld [vmem:[%s2152] ss:$2 sm:$0xff]
        %s2154 = scalar_lea.vmem [#allocation3], 1
        %v2155 = vld [vmem:[%s2154] ss:$2 sm:$0xff]
        %s2156 = scalar_lea.vmem [#allocation3], 17
        %v2157 = vld [vmem:[%s2156] ss:$2 sm:$0xff]
        %s2158 = scalar_lea.vmem [#allocation3], 33
        %v2159 = vld [vmem:[%s2158] ss:$2 sm:$0xff]
        %s2160 = scalar_lea.vmem [#allocation3], 49
        %v2161 = vld [vmem:[%s2160] ss:$2 sm:$0xff]
        %s2162 = scalar_lea.vmem [#allocation3], 65
        %v2163 = vld [vmem:[%s2162] ss:$2 sm:$0xff]
        %s2164 = scalar_lea.vmem [#allocation3], 81
        %v2165 = vld [vmem:[%s2164] ss:$2 sm:$0xff]
        %s2166 = scalar_lea.vmem [#allocation3], 97
        %v2167 = vld [vmem:[%s2166] ss:$2 sm:$0xff]
        %s2168 = scalar_lea.vmem [#allocation3], 113
        %v2169 = vld [vmem:[%s2168] ss:$2 sm:$0xff]
        %s2170 = scalar_lea.vmem [#allocation3], 129
        %v2171 = vld [vmem:[%s2170] ss:$2 sm:$0xff]
        %s2172 = scalar_lea.vmem [#allocation3], 145
        %v2173 = vld [vmem:[%s2172] ss:$2 sm:$0xff]
        %s2174 = scalar_lea.vmem [#allocation3], 161
        %v2175 = vld [vmem:[%s2174] ss:$2 sm:$0xff]
        %s2176 = scalar_lea.vmem [#allocation3], 177
        %v2177 = vld [vmem:[%s2176] ss:$2 sm:$0xff]
        %s2178 = scalar_lea.vmem [#allocation3], 193
        %v2179 = vld [vmem:[%s2178] ss:$2 sm:$0xff]
        %s2180 = scalar_lea.vmem [#allocation3], 209
        %v2181 = vld [vmem:[%s2180] ss:$2 sm:$0xff]
        %s2182 = scalar_lea.vmem [#allocation3], 225
        %v2183 = vld [vmem:[%s2182] ss:$2 sm:$0xff]
        %s2184 = scalar_lea.vmem [#allocation3], 241
        %v2185 = vld [vmem:[%s2184] ss:$2 sm:$0xff]
        %s2186 = scalar_lea.vmem [#allocation3], 257
        %v2187 = vld [vmem:[%s2186] ss:$2 sm:$0xff]
        %s2188 = scalar_lea.vmem [#allocation3], 273
        %v2189 = vld [vmem:[%s2188] ss:$2 sm:$0xff]
        %s2190 = scalar_lea.vmem [#allocation3], 289
        %v2191 = vld [vmem:[%s2190] ss:$2 sm:$0xff]
        %s2192 = scalar_lea.vmem [#allocation3], 305
        %v2193 = vld [vmem:[%s2192] ss:$2 sm:$0xff]
        %s2194 = scalar_lea.vmem [#allocation3], 321
        %v2195 = vld [vmem:[%s2194] ss:$2 sm:$0xff]
        %s2196 = scalar_lea.vmem [#allocation3], 337
        %v2197 = vld [vmem:[%s2196] ss:$2 sm:$0xff]
        %s2198 = scalar_lea.vmem [#allocation3], 353
        %v2199 = vld [vmem:[%s2198] ss:$2 sm:$0xff]
        %s2200 = scalar_lea.vmem [#allocation3], 369
        %v2201 = vld [vmem:[%s2200] ss:$2 sm:$0xff]
        %s2202 = scalar_lea.vmem [#allocation3], 385
        %v2203 = vld [vmem:[%s2202] ss:$2 sm:$0xff]
        %s2204 = scalar_lea.vmem [#allocation3], 401
        %v2205 = vld [vmem:[%s2204] ss:$2 sm:$0xff]
        %s2206 = scalar_lea.vmem [#allocation3], 417
        %v2207 = vld [vmem:[%s2206] ss:$2 sm:$0xff]
        %s2208 = scalar_lea.vmem [#allocation3], 433
        %v2209 = vld [vmem:[%s2208] ss:$2 sm:$0xff]
        %s2210 = scalar_lea.vmem [#allocation3], 449
        %v2211 = vld [vmem:[%s2210] ss:$2 sm:$0xff]
        %s2212 = scalar_lea.vmem [#allocation3], 465
        %v2213 = vld [vmem:[%s2212] ss:$2 sm:$0xff]
        %s2214 = scalar_lea.vmem [#allocation3], 481
        %v2215 = vld [vmem:[%s2214] ss:$2 sm:$0xff]
        %s2216 = scalar_lea.vmem [#allocation3], 497
        %v2217 = vld [vmem:[%s2216] ss:$2 sm:$0xff]
        %v2218 = vmax.f32 %v2091, %v2155
        %v2219 = vmax.f32 %v2093, %v2157
        %v2220 = vmax.f32 %v2095, %v2159
        %v2221 = vmax.f32 %v2097, %v2161
        %v2222 = vmax.f32 %v2099, %v2163
        %v2223 = vmax.f32 %v2101, %v2165
        %v2224 = vmax.f32 %v2103, %v2167
        %v2225 = vmax.f32 %v2105, %v2169
        %v2226 = vmax.f32 %v2107, %v2171
        %v2227 = vmax.f32 %v2109, %v2173
        %v2228 = vmax.f32 %v2111, %v2175
        %v2229 = vmax.f32 %v2113, %v2177
        %v2230 = vmax.f32 %v2115, %v2179
        %v2231 = vmax.f32 %v2117, %v2181
        %v2232 = vmax.f32 %v2119, %v2183
        %v2233 = vmax.f32 %v2121, %v2185
        %v2234 = vmax.f32 %v2123, %v2187
        %v2235 = vmax.f32 %v2125, %v2189
        %v2236 = vmax.f32 %v2127, %v2191
        %v2237 = vmax.f32 %v2129, %v2193
        %v2238 = vmax.f32 %v2131, %v2195
        %v2239 = vmax.f32 %v2133, %v2197
        %v2240 = vmax.f32 %v2135, %v2199
        %v2241 = vmax.f32 %v2137, %v2201
        %v2242 = vmax.f32 %v2139, %v2203
        %v2243 = vmax.f32 %v2141, %v2205
        %v2244 = vmax.f32 %v2143, %v2207
        %v2245 = vmax.f32 %v2145, %v2209
        %v2246 = vmax.f32 %v2147, %v2211
        %v2247 = vmax.f32 %v2149, %v2213
        %v2248 = vmax.f32 %v2151, %v2215
        %v2249 = vmax.f32 %v2153, %v2217
        %vm2250 = vcmask 253952
        %2251 = vst.msk [vmem:[#allocation4] sm:$0x1] %vm2250, 0.0
        %2252 = vst.msk [vmem:[#allocation4 + $0x101] sm:$0x1] %vm2250, 0.0
        %2253 = vst.msk [vmem:[#allocation4 + $0x1] sm:$0xff] %vm2026, %v2218
        %2254 = vst.msk [vmem:[#allocation4 + $0x9] sm:$0xff] %vm2026, %v2219
        %2255 = vst.msk [vmem:[#allocation4 + $0x11] sm:$0xff] %vm2026, %v2220
        %2256 = vst.msk [vmem:[#allocation4 + $0x19] sm:$0xff] %vm2026, %v2221
        %2257 = vst.msk [vmem:[#allocation4 + $0x21] sm:$0xff] %vm2026, %v2222
        %2258 = vst.msk [vmem:[#allocation4 + $0x29] sm:$0xff] %vm2026, %v2223
        %2259 = vst.msk [vmem:[#allocation4 + $0x31] sm:$0xff] %vm2026, %v2224
        %2260 = vst.msk [vmem:[#allocation4 + $0x39] sm:$0xff] %vm2026, %v2225
        %2261 = vst.msk [vmem:[#allocation4 + $0x41] sm:$0xff] %vm2026, %v2226
        %2262 = vst.msk [vmem:[#allocation4 + $0x49] sm:$0xff] %vm2026, %v2227
        %2263 = vst.msk [vmem:[#allocation4 + $0x51] sm:$0xff] %vm2026, %v2228
        %2264 = vst.msk [vmem:[#allocation4 + $0x59] sm:$0xff] %vm2026, %v2229
        %2265 = vst.msk [vmem:[#allocation4 + $0x61] sm:$0xff] %vm2026, %v2230
        %2266 = vst.msk [vmem:[#allocation4 + $0x69] sm:$0xff] %vm2026, %v2231
        %2267 = vst.msk [vmem:[#allocation4 + $0x71] sm:$0xff] %vm2026, %v2232
        %2268 = vst.msk [vmem:[#allocation4 + $0x79] sm:$0xff] %vm2026, %v2233
        %2269 = vst.msk [vmem:[#allocation4 + $0x81] sm:$0xff] %vm2026, %v2234
        %2270 = vst.msk [vmem:[#allocation4 + $0x89] sm:$0xff] %vm2026, %v2235
        %2271 = vst.msk [vmem:[#allocation4 + $0x91] sm:$0xff] %vm2026, %v2236
        %2272 = vst.msk [vmem:[#allocation4 + $0x99] sm:$0xff] %vm2026, %v2237
        %2273 = vst.msk [vmem:[#allocation4 + $0xa1] sm:$0xff] %vm2026, %v2238
        %2274 = vst.msk [vmem:[#allocation4 + $0xa9] sm:$0xff] %vm2026, %v2239
        %2275 = vst.msk [vmem:[#allocation4 + $0xb1] sm:$0xff] %vm2026, %v2240
        %2276 = vst.msk [vmem:[#allocation4 + $0xb9] sm:$0xff] %vm2026, %v2241
        %2277 = vst.msk [vmem:[#allocation4 + $0xc1] sm:$0xff] %vm2026, %v2242
        %2278 = vst.msk [vmem:[#allocation4 + $0xc9] sm:$0xff] %vm2026, %v2243
        %2279 = vst.msk [vmem:[#allocation4 + $0xd1] sm:$0xff] %vm2026, %v2244
        %2280 = vst.msk [vmem:[#allocation4 + $0xd9] sm:$0xff] %vm2026, %v2245
        %2281 = vst.msk [vmem:[#allocation4 + $0xe1] sm:$0xff] %vm2026, %v2246
        %2282 = vst.msk [vmem:[#allocation4 + $0xe9] sm:$0xff] %vm2026, %v2247
        %2283 = vst.msk [vmem:[#allocation4 + $0xf1] sm:$0xff] %vm2026, %v2248
        %2284 = vst.msk [vmem:[#allocation4 + $0xf9] sm:$0xff] %vm2026, %v2249
        %v2285 = vld [vmem:[#allocation4] sm:$0xff]
        %v2286 = vld [vmem:[#allocation4 + $0x8] sm:$0xff]
        %v2287 = vld [vmem:[#allocation4 + $0x10] sm:$0xff]
        %v2288 = vld [vmem:[#allocation4 + $0x18] sm:$0xff]
        %v2289 = vld [vmem:[#allocation4 + $0x20] sm:$0xff]
        %v2290 = vld [vmem:[#allocation4 + $0x28] sm:$0xff]
        %v2291 = vld [vmem:[#allocation4 + $0x30] sm:$0xff]
        %v2292 = vld [vmem:[#allocation4 + $0x38] sm:$0xff]
        %v2293 = vld [vmem:[#allocation4 + $0x40] sm:$0xff]
        %v2294 = vld [vmem:[#allocation4 + $0x48] sm:$0xff]
        %v2295 = vld [vmem:[#allocation4 + $0x50] sm:$0xff]
        %v2296 = vld [vmem:[#allocation4 + $0x58] sm:$0xff]
        %v2297 = vld [vmem:[#allocation4 + $0x60] sm:$0xff]
        %v2298 = vld [vmem:[#allocation4 + $0x68] sm:$0xff]
        %v2299 = vld [vmem:[#allocation4 + $0x70] sm:$0xff]
        %v2300 = vld [vmem:[#allocation4 + $0x78] sm:$0xff]
        %v2301 = vld [vmem:[#allocation4 + $0x80] sm:$0xff]
        %v2302 = vld [vmem:[#allocation4 + $0x88] sm:$0xff]
        %v2303 = vld [vmem:[#allocation4 + $0x90] sm:$0xff]
        %v2304 = vld [vmem:[#allocation4 + $0x98] sm:$0xff]
        %v2305 = vld [vmem:[#allocation4 + $0xa0] sm:$0xff]
        %v2306 = vld [vmem:[#allocation4 + $0xa8] sm:$0xff]
        %v2307 = vld [vmem:[#allocation4 + $0xb0] sm:$0xff]
        %v2308 = vld [vmem:[#allocation4 + $0xb8] sm:$0xff]
        %v2309 = vld [vmem:[#allocation4 + $0xc0] sm:$0xff]
        %v2310 = vld [vmem:[#allocation4 + $0xc8] sm:$0xff]
        %v2311 = vld [vmem:[#allocation4 + $0xd0] sm:$0xff]
        %v2312 = vld [vmem:[#allocation4 + $0xd8] sm:$0xff]
        %v2313 = vld [vmem:[#allocation4 + $0xe0] sm:$0xff]
        %v2314 = vld [vmem:[#allocation4 + $0xe8] sm:$0xff]
        %v2315 = vld [vmem:[#allocation4 + $0xf0] sm:$0xff]
        %v2316 = vld [vmem:[#allocation4 + $0xf8] sm:$0xff]
        %v2317 = vld [vmem:[#allocation10] sm:$0xff]
        %v2318 = vld [vmem:[#allocation10 + $0x8] sm:$0xff]
        %v2319 = vld [vmem:[#allocation10 + $0x10] sm:$0xff]
        %v2320 = vld [vmem:[#allocation10 + $0x18] sm:$0xff]
        %v2321 = vld [vmem:[#allocation4 + $0x1] sm:$0xff]
        %v2322 = vld [vmem:[#allocation4 + $0x9] sm:$0xff]
        %v2323 = vld [vmem:[#allocation4 + $0x11] sm:$0xff]
        %v2324 = vld [vmem:[#allocation4 + $0x19] sm:$0xff]
        %v2325 = vld [vmem:[#allocation4 + $0x21] sm:$0xff]
        %v2326 = vld [vmem:[#allocation4 + $0x29] sm:$0xff]
        %v2327 = vld [vmem:[#allocation4 + $0x31] sm:$0xff]
        %v2328 = vld [vmem:[#allocation4 + $0x39] sm:$0xff]
        %v2329 = vld [vmem:[#allocation4 + $0x41] sm:$0xff]
        %v2330 = vld [vmem:[#allocation4 + $0x49] sm:$0xff]
        %v2331 = vld [vmem:[#allocation4 + $0x51] sm:$0xff]
        %v2332 = vld [vmem:[#allocation4 + $0x59] sm:$0xff]
        %v2333 = vld [vmem:[#allocation4 + $0x61] sm:$0xff]
        %v2334 = vld [vmem:[#allocation4 + $0x69] sm:$0xff]
        %v2335 = vld [vmem:[#allocation4 + $0x71] sm:$0xff]
        %v2336 = vld [vmem:[#allocation4 + $0x79] sm:$0xff]
        %v2337 = vld [vmem:[#allocation4 + $0x81] sm:$0xff]
        %v2338 = vld [vmem:[#allocation4 + $0x89] sm:$0xff]
        %v2339 = vld [vmem:[#allocation4 + $0x91] sm:$0xff]
        %v2340 = vld [vmem:[#allocation4 + $0x99] sm:$0xff]
        %v2341 = vld [vmem:[#allocation4 + $0xa1] sm:$0xff]
        %v2342 = vld [vmem:[#allocation4 + $0xa9] sm:$0xff]
        %v2343 = vld [vmem:[#allocation4 + $0xb1] sm:$0xff]
        %v2344 = vld [vmem:[#allocation4 + $0xb9] sm:$0xff]
        %v2345 = vld [vmem:[#allocation4 + $0xc1] sm:$0xff]
        %v2346 = vld [vmem:[#allocation4 + $0xc9] sm:$0xff]
        %v2347 = vld [vmem:[#allocation4 + $0xd1] sm:$0xff]
        %v2348 = vld [vmem:[#allocation4 + $0xd9] sm:$0xff]
        %v2349 = vld [vmem:[#allocation4 + $0xe1] sm:$0xff]
        %v2350 = vld [vmem:[#allocation4 + $0xe9] sm:$0xff]
        %v2351 = vld [vmem:[#allocation4 + $0xf1] sm:$0xff]
        %v2352 = vld [vmem:[#allocation4 + $0xf9] sm:$0xff]
        %s2353 = scalar_lea.vmem [#allocation10], 32
        %v2354 = vld [vmem:[%s2353] sm:$0xff]
        %v2355 = vld [vmem:[%s2353 + $0x8] sm:$0xff]
        %v2356 = vld [vmem:[%s2353 + $0x10] sm:$0xff]
        %v2357 = vld [vmem:[%s2353 + $0x18] sm:$0xff]
        %v2359 = vsel %vm2026, %v2321, 0
        %v2362 = vsel %vm2026, %v2322, 0
        %v2365 = vsel %vm2026, %v2323, 0
        %v2368 = vsel %vm2026, %v2324, 0
        %v2371 = vsel %vm2026, %v2325, 0
        %v2374 = vsel %vm2026, %v2326, 0
        %v2377 = vsel %vm2026, %v2327, 0
        %v2380 = vsel %vm2026, %v2328, 0
        %v2383 = vsel %vm2026, %v2329, 0
        %v2386 = vsel %vm2026, %v2330, 0
        %v2389 = vsel %vm2026, %v2331, 0
        %v2392 = vsel %vm2026, %v2332, 0
        %v2395 = vsel %vm2026, %v2333, 0
        %v2398 = vsel %vm2026, %v2334, 0
        %v2401 = vsel %vm2026, %v2335, 0
        %v2404 = vsel %vm2026, %v2336, 0
        %v2407 = vsel %vm2026, %v2337, 0
        %v2410 = vsel %vm2026, %v2338, 0
        %v2413 = vsel %vm2026, %v2339, 0
        %v2416 = vsel %vm2026, %v2340, 0
        %v2419 = vsel %vm2026, %v2341, 0
        %v2422 = vsel %vm2026, %v2342, 0
        %v2425 = vsel %vm2026, %v2343, 0
        %v2428 = vsel %vm2026, %v2344, 0
        %v2431 = vsel %vm2026, %v2345, 0
        %v2434 = vsel %vm2026, %v2346, 0
        %v2437 = vsel %vm2026, %v2347, 0
        %v2440 = vsel %vm2026, %v2348, 0
        %v2443 = vsel %vm2026, %v2349, 0
        %v2446 = vsel %vm2026, %v2350, 0
        %v2449 = vsel %vm2026, %v2351, 0
        %v2452 = vsel %vm2026, %v2352, 0
        %2454 = vmatpush.msra.mxu0 0.0
        %2455 = vmatpush.msra.mxu0 0.0
        %2456 = vmatpush.msra.mxu0 0.0
        %2457 = vmatpush.msra.mxu0 0.0
        %2458 = vmatpush.msra.mxu0 0.0
        %2459 = vmatpush.msra.mxu0 0.0
        %2460 = vmatpush.msra.mxu0 0.0
        %2461 = vmatpush.msra.mxu0 0.0
        %2462 = vmatpush.msra.mxu0 0.0
        %2463 = vmatpush.msra.mxu0 0.0
        %2464 = vmatpush.msra.mxu0 0.0
        %2465 = vmatpush.msra.mxu0 0.0
        %2466 = vmatpush.msra.mxu0 %v2357
        %2467 = vmatpush.msra.mxu0 %v2356
        %2468 = vmatpush.msra.mxu0 %v2355
        %2469 = vmatpush.msra.mxu0 %v2354
        %2470 = vmatmul.f32.gmra.mxu0 %v2359
        %v2471 = vpop.f32.mrf.mxu0
        %v2472 = vadd.f32 0.0, %v2471
        %2473 = vmatmul.f32.gmra.mxu0 %v2362
        %v2474 = vpop.f32.mrf.mxu0
        %v2475 = vadd.f32 0.0, %v2474
        %2476 = vmatmul.f32.gmra.mxu0 %v2365
        %v2477 = vpop.f32.mrf.mxu0
        %v2478 = vadd.f32 0.0, %v2477
        %2479 = vmatmul.f32.gmra.mxu0 %v2368
        %v2480 = vpop.f32.mrf.mxu0
        %v2481 = vadd.f32 0.0, %v2480
        %2482 = vmatmul.f32.gmra.mxu0 %v2371
        %v2483 = vpop.f32.mrf.mxu0
        %v2484 = vadd.f32 0.0, %v2483
        %2485 = vmatmul.f32.gmra.mxu0 %v2374
        %v2486 = vpop.f32.mrf.mxu0
        %v2487 = vadd.f32 0.0, %v2486
        %2488 = vmatmul.f32.gmra.mxu0 %v2377
        %v2489 = vpop.f32.mrf.mxu0
        %v2490 = vadd.f32 0.0, %v2489
        %2491 = vmatmul.f32.gmra.mxu0 %v2380
        %v2492 = vpop.f32.mrf.mxu0
        %v2493 = vadd.f32 0.0, %v2492
        %2494 = vmatmul.f32.gmra.mxu0 %v2383
        %v2495 = vpop.f32.mrf.mxu0
        %v2496 = vadd.f32 0.0, %v2495
        %2497 = vmatmul.f32.gmra.mxu0 %v2386
        %v2498 = vpop.f32.mrf.mxu0
        %v2499 = vadd.f32 0.0, %v2498
        %2500 = vmatmul.f32.gmra.mxu0 %v2389
        %v2501 = vpop.f32.mrf.mxu0
        %v2502 = vadd.f32 0.0, %v2501
        %2503 = vmatmul.f32.gmra.mxu0 %v2392
        %v2504 = vpop.f32.mrf.mxu0
        %v2505 = vadd.f32 0.0, %v2504
        %2506 = vmatmul.f32.gmra.mxu0 %v2395
        %v2507 = vpop.f32.mrf.mxu0
        %v2508 = vadd.f32 0.0, %v2507
        %2509 = vmatmul.f32.gmra.mxu0 %v2398
        %v2510 = vpop.f32.mrf.mxu0
        %v2511 = vadd.f32 0.0, %v2510
        %2512 = vmatmul.f32.gmra.mxu0 %v2401
        %v2513 = vpop.f32.mrf.mxu0
        %v2514 = vadd.f32 0.0, %v2513
        %2515 = vmatmul.f32.gmra.mxu0 %v2404
        %v2516 = vpop.f32.mrf.mxu0
        %v2517 = vadd.f32 0.0, %v2516
        %2518 = vmatmul.f32.gmra.mxu0 %v2407
        %v2519 = vpop.f32.mrf.mxu0
        %v2520 = vadd.f32 0.0, %v2519
        %2521 = vmatmul.f32.gmra.mxu0 %v2410
        %v2522 = vpop.f32.mrf.mxu0
        %v2523 = vadd.f32 0.0, %v2522
        %2524 = vmatmul.f32.gmra.mxu0 %v2413
        %v2525 = vpop.f32.mrf.mxu0
        %v2526 = vadd.f32 0.0, %v2525
        %2527 = vmatmul.f32.gmra.mxu0 %v2416
        %v2528 = vpop.f32.mrf.mxu0
        %v2529 = vadd.f32 0.0, %v2528
        %2530 = vmatmul.f32.gmra.mxu0 %v2419
        %v2531 = vpop.f32.mrf.mxu0
        %v2532 = vadd.f32 0.0, %v2531
        %2533 = vmatmul.f32.gmra.mxu0 %v2422
        %v2534 = vpop.f32.mrf.mxu0
        %v2535 = vadd.f32 0.0, %v2534
        %2536 = vmatmul.f32.gmra.mxu0 %v2425
        %v2537 = vpop.f32.mrf.mxu0
        %v2538 = vadd.f32 0.0, %v2537
        %2539 = vmatmul.f32.gmra.mxu0 %v2428
        %v2540 = vpop.f32.mrf.mxu0
        %v2541 = vadd.f32 0.0, %v2540
        %2542 = vmatmul.f32.gmra.mxu0 %v2431
        %v2543 = vpop.f32.mrf.mxu0
        %v2544 = vadd.f32 0.0, %v2543
        %2545 = vmatmul.f32.gmra.mxu0 %v2434
        %v2546 = vpop.f32.mrf.mxu0
        %v2547 = vadd.f32 0.0, %v2546
        %2548 = vmatmul.f32.gmra.mxu0 %v2437
        %v2549 = vpop.f32.mrf.mxu0
        %v2550 = vadd.f32 0.0, %v2549
        %2551 = vmatmul.f32.gmra.mxu0 %v2440
        %v2552 = vpop.f32.mrf.mxu0
        %v2553 = vadd.f32 0.0, %v2552
        %2554 = vmatmul.f32.gmra.mxu0 %v2443
        %v2555 = vpop.f32.mrf.mxu0
        %v2556 = vadd.f32 0.0, %v2555
        %2557 = vmatmul.f32.gmra.mxu0 %v2446
        %v2558 = vpop.f32.mrf.mxu0
        %v2559 = vadd.f32 0.0, %v2558
        %2560 = vmatmul.f32.gmra.mxu0 %v2449
        %v2561 = vpop.f32.mrf.mxu0
        %v2562 = vadd.f32 0.0, %v2561
        %2563 = vmatmul.f32.gmra.mxu0 %v2452
        %v2564 = vpop.f32.mrf.mxu0
        %v2565 = vadd.f32 0.0, %v2564
        %2566 = vdwg.mxu0
        %v2568 = vsel %vm2026, %v2285, 0
        %v2571 = vsel %vm2026, %v2286, 0
        %v2574 = vsel %vm2026, %v2287, 0
        %v2577 = vsel %vm2026, %v2288, 0
        %v2580 = vsel %vm2026, %v2289, 0
        %v2583 = vsel %vm2026, %v2290, 0
        %v2586 = vsel %vm2026, %v2291, 0
        %v2589 = vsel %vm2026, %v2292, 0
        %v2592 = vsel %vm2026, %v2293, 0
        %v2595 = vsel %vm2026, %v2294, 0
        %v2598 = vsel %vm2026, %v2295, 0
        %v2601 = vsel %vm2026, %v2296, 0
        %v2604 = vsel %vm2026, %v2297, 0
        %v2607 = vsel %vm2026, %v2298, 0
        %v2610 = vsel %vm2026, %v2299, 0
        %v2613 = vsel %vm2026, %v2300, 0
        %v2616 = vsel %vm2026, %v2301, 0
        %v2619 = vsel %vm2026, %v2302, 0
        %v2622 = vsel %vm2026, %v2303, 0
        %v2625 = vsel %vm2026, %v2304, 0
        %v2628 = vsel %vm2026, %v2305, 0
        %v2631 = vsel %vm2026, %v2306, 0
        %v2634 = vsel %vm2026, %v2307, 0
        %v2637 = vsel %vm2026, %v2308, 0
        %v2640 = vsel %vm2026, %v2309, 0
        %v2643 = vsel %vm2026, %v2310, 0
        %v2646 = vsel %vm2026, %v2311, 0
        %v2649 = vsel %vm2026, %v2312, 0
        %v2652 = vsel %vm2026, %v2313, 0
        %v2655 = vsel %vm2026, %v2314, 0
        %v2658 = vsel %vm2026, %v2315, 0
        %v2661 = vsel %vm2026, %v2316, 0
        %2663 = vmatpush.msra.mxu0 0.0
        %2664 = vmatpush.msra.mxu0 0.0
        %2665 = vmatpush.msra.mxu0 0.0
        %2666 = vmatpush.msra.mxu0 0.0
        %2667 = vmatpush.msra.mxu0 0.0
        %2668 = vmatpush.msra.mxu0 0.0
        %2669 = vmatpush.msra.mxu0 0.0
        %2670 = vmatpush.msra.mxu0 0.0
        %2671 = vmatpush.msra.mxu0 0.0
        %2672 = vmatpush.msra.mxu0 0.0
        %2673 = vmatpush.msra.mxu0 0.0
        %2674 = vmatpush.msra.mxu0 0.0
        %2675 = vmatpush.msra.mxu0 %v2320
        %2676 = vmatpush.msra.mxu0 %v2319
        %2677 = vmatpush.msra.mxu0 %v2318
        %2678 = vmatpush.msra.mxu0 %v2317
        %2679 = vmatmul.f32.gmra.mxu0 %v2568
        %v2680 = vpop.f32.mrf.mxu0
        %v2681 = vadd.f32 %v2472, %v2680
        %2682 = vmatmul.f32.gmra.mxu0 %v2571
        %v2683 = vpop.f32.mrf.mxu0
        %v2684 = vadd.f32 %v2475, %v2683
        %2685 = vmatmul.f32.gmra.mxu0 %v2574
        %v2686 = vpop.f32.mrf.mxu0
        %v2687 = vadd.f32 %v2478, %v2686
        %2688 = vmatmul.f32.gmra.mxu0 %v2577
        %v2689 = vpop.f32.mrf.mxu0
        %v2690 = vadd.f32 %v2481, %v2689
        %2691 = vmatmul.f32.gmra.mxu0 %v2580
        %v2692 = vpop.f32.mrf.mxu0
        %v2693 = vadd.f32 %v2484, %v2692
        %2694 = vmatmul.f32.gmra.mxu0 %v2583
        %v2695 = vpop.f32.mrf.mxu0
        %v2696 = vadd.f32 %v2487, %v2695
        %2697 = vmatmul.f32.gmra.mxu0 %v2586
        %v2698 = vpop.f32.mrf.mxu0
        %v2699 = vadd.f32 %v2490, %v2698
        %2700 = vmatmul.f32.gmra.mxu0 %v2589
        %v2701 = vpop.f32.mrf.mxu0
        %v2702 = vadd.f32 %v2493, %v2701
        %2703 = vmatmul.f32.gmra.mxu0 %v2592
        %v2704 = vpop.f32.mrf.mxu0
        %v2705 = vadd.f32 %v2496, %v2704
        %2706 = vmatmul.f32.gmra.mxu0 %v2595
        %v2707 = vpop.f32.mrf.mxu0
        %v2708 = vadd.f32 %v2499, %v2707
        %2709 = vmatmul.f32.gmra.mxu0 %v2598
        %v2710 = vpop.f32.mrf.mxu0
        %v2711 = vadd.f32 %v2502, %v2710
        %2712 = vmatmul.f32.gmra.mxu0 %v2601
        %v2713 = vpop.f32.mrf.mxu0
        %v2714 = vadd.f32 %v2505, %v2713
        %2715 = vmatmul.f32.gmra.mxu0 %v2604
        %v2716 = vpop.f32.mrf.mxu0
        %v2717 = vadd.f32 %v2508, %v2716
        %2718 = vmatmul.f32.gmra.mxu0 %v2607
        %v2719 = vpop.f32.mrf.mxu0
        %v2720 = vadd.f32 %v2511, %v2719
        %2721 = vmatmul.f32.gmra.mxu0 %v2610
        %v2722 = vpop.f32.mrf.mxu0
        %v2723 = vadd.f32 %v2514, %v2722
        %2724 = vmatmul.f32.gmra.mxu0 %v2613
        %v2725 = vpop.f32.mrf.mxu0
        %v2726 = vadd.f32 %v2517, %v2725
        %2727 = vmatmul.f32.gmra.mxu0 %v2616
        %v2728 = vpop.f32.mrf.mxu0
        %v2729 = vadd.f32 %v2520, %v2728
        %2730 = vmatmul.f32.gmra.mxu0 %v2619
        %v2731 = vpop.f32.mrf.mxu0
        %v2732 = vadd.f32 %v2523, %v2731
        %2733 = vmatmul.f32.gmra.mxu0 %v2622
        %v2734 = vpop.f32.mrf.mxu0
        %v2735 = vadd.f32 %v2526, %v2734
        %2736 = vmatmul.f32.gmra.mxu0 %v2625
        %v2737 = vpop.f32.mrf.mxu0
        %v2738 = vadd.f32 %v2529, %v2737
        %2739 = vmatmul.f32.gmra.mxu0 %v2628
        %v2740 = vpop.f32.mrf.mxu0
        %v2741 = vadd.f32 %v2532, %v2740
        %2742 = vmatmul.f32.gmra.mxu0 %v2631
        %v2743 = vpop.f32.mrf.mxu0
        %v2744 = vadd.f32 %v2535, %v2743
        %2745 = vmatmul.f32.gmra.mxu0 %v2634
        %v2746 = vpop.f32.mrf.mxu0
        %v2747 = vadd.f32 %v2538, %v2746
        %2748 = vmatmul.f32.gmra.mxu0 %v2637
        %v2749 = vpop.f32.mrf.mxu0
        %v2750 = vadd.f32 %v2541, %v2749
        %2751 = vmatmul.f32.gmra.mxu0 %v2640
        %v2752 = vpop.f32.mrf.mxu0
        %v2753 = vadd.f32 %v2544, %v2752
        %2754 = vmatmul.f32.gmra.mxu0 %v2643
        %v2755 = vpop.f32.mrf.mxu0
        %v2756 = vadd.f32 %v2547, %v2755
        %2757 = vmatmul.f32.gmra.mxu0 %v2646
        %v2758 = vpop.f32.mrf.mxu0
        %v2759 = vadd.f32 %v2550, %v2758
        %2760 = vmatmul.f32.gmra.mxu0 %v2649
        %v2761 = vpop.f32.mrf.mxu0
        %v2762 = vadd.f32 %v2553, %v2761
        %2763 = vmatmul.f32.gmra.mxu0 %v2652
        %v2764 = vpop.f32.mrf.mxu0
        %v2765 = vadd.f32 %v2556, %v2764
        %2766 = vmatmul.f32.gmra.mxu0 %v2655
        %v2767 = vpop.f32.mrf.mxu0
        %v2768 = vadd.f32 %v2559, %v2767
        %2769 = vmatmul.f32.gmra.mxu0 %v2658
        %v2770 = vpop.f32.mrf.mxu0
        %v2771 = vadd.f32 %v2562, %v2770
        %2772 = vmatmul.f32.gmra.mxu0 %v2661
        %v2773 = vpop.f32.mrf.mxu0
        %v2774 = vadd.f32 %v2565, %v2773
        %2775 = vdwg.mxu0
        %v2776 = vld [vmem:[#allocation4 + $0x2] sm:$0xff]
        %v2777 = vld [vmem:[#allocation4 + $0xa] sm:$0xff]
        %v2778 = vld [vmem:[#allocation4 + $0x12] sm:$0xff]
        %v2779 = vld [vmem:[#allocation4 + $0x1a] sm:$0xff]
        %v2780 = vld [vmem:[#allocation4 + $0x22] sm:$0xff]
        %v2781 = vld [vmem:[#allocation4 + $0x2a] sm:$0xff]
        %v2782 = vld [vmem:[#allocation4 + $0x32] sm:$0xff]
        %v2783 = vld [vmem:[#allocation4 + $0x3a] sm:$0xff]
        %v2784 = vld [vmem:[#allocation4 + $0x42] sm:$0xff]
        %v2785 = vld [vmem:[#allocation4 + $0x4a] sm:$0xff]
        %v2786 = vld [vmem:[#allocation4 + $0x52] sm:$0xff]
        %v2787 = vld [vmem:[#allocation4 + $0x5a] sm:$0xff]
        %v2788 = vld [vmem:[#allocation4 + $0x62] sm:$0xff]
        %v2789 = vld [vmem:[#allocation4 + $0x6a] sm:$0xff]
        %v2790 = vld [vmem:[#allocation4 + $0x72] sm:$0xff]
        %v2791 = vld [vmem:[#allocation4 + $0x7a] sm:$0xff]
        %v2792 = vld [vmem:[#allocation4 + $0x82] sm:$0xff]
        %v2793 = vld [vmem:[#allocation4 + $0x8a] sm:$0xff]
        %v2794 = vld [vmem:[#allocation4 + $0x92] sm:$0xff]
        %v2795 = vld [vmem:[#allocation4 + $0x9a] sm:$0xff]
        %v2796 = vld [vmem:[#allocation4 + $0xa2] sm:$0xff]
        %v2797 = vld [vmem:[#allocation4 + $0xaa] sm:$0xff]
        %v2798 = vld [vmem:[#allocation4 + $0xb2] sm:$0xff]
        %v2799 = vld [vmem:[#allocation4 + $0xba] sm:$0xff]
        %v2800 = vld [vmem:[#allocation4 + $0xc2] sm:$0xff]
        %v2801 = vld [vmem:[#allocation4 + $0xca] sm:$0xff]
        %v2802 = vld [vmem:[#allocation4 + $0xd2] sm:$0xff]
        %v2803 = vld [vmem:[#allocation4 + $0xda] sm:$0xff]
        %v2804 = vld [vmem:[#allocation4 + $0xe2] sm:$0xff]
        %v2805 = vld [vmem:[#allocation4 + $0xea] sm:$0xff]
        %v2806 = vld [vmem:[#allocation4 + $0xf2] sm:$0xff]
        %v2807 = vld [vmem:[#allocation4 + $0xfa] sm:$0xff]
        %s2808 = scalar_lea.vmem [#allocation10], 64
        %v2809 = vld [vmem:[%s2808] sm:$0xff]
        %v2810 = vld [vmem:[%s2808 + $0x8] sm:$0xff]
        %v2811 = vld [vmem:[%s2808 + $0x10] sm:$0xff]
        %v2812 = vld [vmem:[%s2808 + $0x18] sm:$0xff]
        %v2814 = vsel %vm2026, %v2776, 0
        %v2817 = vsel %vm2026, %v2777, 0
        %v2820 = vsel %vm2026, %v2778, 0
        %v2823 = vsel %vm2026, %v2779, 0
        %v2826 = vsel %vm2026, %v2780, 0
        %v2829 = vsel %vm2026, %v2781, 0
        %v2832 = vsel %vm2026, %v2782, 0
        %v2835 = vsel %vm2026, %v2783, 0
        %v2838 = vsel %vm2026, %v2784, 0
        %v2841 = vsel %vm2026, %v2785, 0
        %v2844 = vsel %vm2026, %v2786, 0
        %v2847 = vsel %vm2026, %v2787, 0
        %v2850 = vsel %vm2026, %v2788, 0
        %v2853 = vsel %vm2026, %v2789, 0
        %v2856 = vsel %vm2026, %v2790, 0
        %v2859 = vsel %vm2026, %v2791, 0
        %v2862 = vsel %vm2026, %v2792, 0
        %v2865 = vsel %vm2026, %v2793, 0
        %v2868 = vsel %vm2026, %v2794, 0
        %v2871 = vsel %vm2026, %v2795, 0
        %v2874 = vsel %vm2026, %v2796, 0
        %v2877 = vsel %vm2026, %v2797, 0
        %v2880 = vsel %vm2026, %v2798, 0
        %v2883 = vsel %vm2026, %v2799, 0
        %v2886 = vsel %vm2026, %v2800, 0
        %v2889 = vsel %vm2026, %v2801, 0
        %v2892 = vsel %vm2026, %v2802, 0
        %v2895 = vsel %vm2026, %v2803, 0
        %v2898 = vsel %vm2026, %v2804, 0
        %v2901 = vsel %vm2026, %v2805, 0
        %v2904 = vsel %vm2026, %v2806, 0
        %v2907 = vsel %vm2026, %v2807, 0
        %2909 = vmatpush.msra.mxu0 0.0
        %2910 = vmatpush.msra.mxu0 0.0
        %2911 = vmatpush.msra.mxu0 0.0
        %2912 = vmatpush.msra.mxu0 0.0
        %2913 = vmatpush.msra.mxu0 0.0
        %2914 = vmatpush.msra.mxu0 0.0
        %2915 = vmatpush.msra.mxu0 0.0
        %2916 = vmatpush.msra.mxu0 0.0
        %2917 = vmatpush.msra.mxu0 0.0
        %2918 = vmatpush.msra.mxu0 0.0
        %2919 = vmatpush.msra.mxu0 0.0
        %2920 = vmatpush.msra.mxu0 0.0
        %2921 = vmatpush.msra.mxu0 %v2812
        %2922 = vmatpush.msra.mxu0 %v2811
        %2923 = vmatpush.msra.mxu0 %v2810
        %2924 = vmatpush.msra.mxu0 %v2809
        %2925 = vmatmul.f32.gmra.mxu0 %v2814
        %v2926 = vpop.f32.mrf.mxu0
        %v2927 = vadd.f32 0.0, %v2926
        %2928 = vmatmul.f32.gmra.mxu0 %v2817
        %v2929 = vpop.f32.mrf.mxu0
        %v2930 = vadd.f32 0.0, %v2929
        %2931 = vmatmul.f32.gmra.mxu0 %v2820
        %v2932 = vpop.f32.mrf.mxu0
        %v2933 = vadd.f32 0.0, %v2932
        %2934 = vmatmul.f32.gmra.mxu0 %v2823
        %v2935 = vpop.f32.mrf.mxu0
        %v2936 = vadd.f32 0.0, %v2935
        %2937 = vmatmul.f32.gmra.mxu0 %v2826
        %v2938 = vpop.f32.mrf.mxu0
        %v2939 = vadd.f32 0.0, %v2938
        %2940 = vmatmul.f32.gmra.mxu0 %v2829
        %v2941 = vpop.f32.mrf.mxu0
        %v2942 = vadd.f32 0.0, %v2941
        %2943 = vmatmul.f32.gmra.mxu0 %v2832
        %v2944 = vpop.f32.mrf.mxu0
        %v2945 = vadd.f32 0.0, %v2944
        %2946 = vmatmul.f32.gmra.mxu0 %v2835
        %v2947 = vpop.f32.mrf.mxu0
        %v2948 = vadd.f32 0.0, %v2947
        %2949 = vmatmul.f32.gmra.mxu0 %v2838
        %v2950 = vpop.f32.mrf.mxu0
        %v2951 = vadd.f32 0.0, %v2950
        %2952 = vmatmul.f32.gmra.mxu0 %v2841
        %v2953 = vpop.f32.mrf.mxu0
        %v2954 = vadd.f32 0.0, %v2953
        %2955 = vmatmul.f32.gmra.mxu0 %v2844
        %v2956 = vpop.f32.mrf.mxu0
        %v2957 = vadd.f32 0.0, %v2956
        %2958 = vmatmul.f32.gmra.mxu0 %v2847
        %v2959 = vpop.f32.mrf.mxu0
        %v2960 = vadd.f32 0.0, %v2959
        %2961 = vmatmul.f32.gmra.mxu0 %v2850
        %v2962 = vpop.f32.mrf.mxu0
        %v2963 = vadd.f32 0.0, %v2962
        %2964 = vmatmul.f32.gmra.mxu0 %v2853
        %v2965 = vpop.f32.mrf.mxu0
        %v2966 = vadd.f32 0.0, %v2965
        %2967 = vmatmul.f32.gmra.mxu0 %v2856
        %v2968 = vpop.f32.mrf.mxu0
        %v2969 = vadd.f32 0.0, %v2968
        %2970 = vmatmul.f32.gmra.mxu0 %v2859
        %v2971 = vpop.f32.mrf.mxu0
        %v2972 = vadd.f32 0.0, %v2971
        %2973 = vmatmul.f32.gmra.mxu0 %v2862
        %v2974 = vpop.f32.mrf.mxu0
        %v2975 = vadd.f32 0.0, %v2974
        %2976 = vmatmul.f32.gmra.mxu0 %v2865
        %v2977 = vpop.f32.mrf.mxu0
        %v2978 = vadd.f32 0.0, %v2977
        %2979 = vmatmul.f32.gmra.mxu0 %v2868
        %v2980 = vpop.f32.mrf.mxu0
        %v2981 = vadd.f32 0.0, %v2980
        %2982 = vmatmul.f32.gmra.mxu0 %v2871
        %v2983 = vpop.f32.mrf.mxu0
        %v2984 = vadd.f32 0.0, %v2983
        %2985 = vmatmul.f32.gmra.mxu0 %v2874
        %v2986 = vpop.f32.mrf.mxu0
        %v2987 = vadd.f32 0.0, %v2986
        %2988 = vmatmul.f32.gmra.mxu0 %v2877
        %v2989 = vpop.f32.mrf.mxu0
        %v2990 = vadd.f32 0.0, %v2989
        %2991 = vmatmul.f32.gmra.mxu0 %v2880
        %v2992 = vpop.f32.mrf.mxu0
        %v2993 = vadd.f32 0.0, %v2992
        %2994 = vmatmul.f32.gmra.mxu0 %v2883
        %v2995 = vpop.f32.mrf.mxu0
        %v2996 = vadd.f32 0.0, %v2995
        %2997 = vmatmul.f32.gmra.mxu0 %v2886
        %v2998 = vpop.f32.mrf.mxu0
        %v2999 = vadd.f32 0.0, %v2998
        %3000 = vmatmul.f32.gmra.mxu0 %v2889
        %v3001 = vpop.f32.mrf.mxu0
        %v3002 = vadd.f32 0.0, %v3001
        %3003 = vmatmul.f32.gmra.mxu0 %v2892
        %v3004 = vpop.f32.mrf.mxu0
        %v3005 = vadd.f32 0.0, %v3004
        %3006 = vmatmul.f32.gmra.mxu0 %v2895
        %v3007 = vpop.f32.mrf.mxu0
        %v3008 = vadd.f32 0.0, %v3007
        %3009 = vmatmul.f32.gmra.mxu0 %v2898
        %v3010 = vpop.f32.mrf.mxu0
        %v3011 = vadd.f32 0.0, %v3010
        %3012 = vmatmul.f32.gmra.mxu0 %v2901
        %v3013 = vpop.f32.mrf.mxu0
        %v3014 = vadd.f32 0.0, %v3013
        %3015 = vmatmul.f32.gmra.mxu0 %v2904
        %v3016 = vpop.f32.mrf.mxu0
        %v3017 = vadd.f32 0.0, %v3016
        %3018 = vmatmul.f32.gmra.mxu0 %v2907
        %v3019 = vpop.f32.mrf.mxu0
        %v3020 = vadd.f32 0.0, %v3019
        %3021 = vdwg.mxu0
        %v3022 = vadd.f32 %v2681, %v2927
        %v3023 = vadd.f32 %v2684, %v2930
        %v3024 = vadd.f32 %v2687, %v2933
        %v3025 = vadd.f32 %v2690, %v2936
        %v3026 = vadd.f32 %v2693, %v2939
        %v3027 = vadd.f32 %v2696, %v2942
        %v3028 = vadd.f32 %v2699, %v2945
        %v3029 = vadd.f32 %v2702, %v2948
        %v3030 = vadd.f32 %v2705, %v2951
        %v3031 = vadd.f32 %v2708, %v2954
        %v3032 = vadd.f32 %v2711, %v2957
        %v3033 = vadd.f32 %v2714, %v2960
        %v3034 = vadd.f32 %v2717, %v2963
        %v3035 = vadd.f32 %v2720, %v2966
        %v3036 = vadd.f32 %v2723, %v2969
        %v3037 = vadd.f32 %v2726, %v2972
        %v3038 = vadd.f32 %v2729, %v2975
        %v3039 = vadd.f32 %v2732, %v2978
        %v3040 = vadd.f32 %v2735, %v2981
        %v3041 = vadd.f32 %v2738, %v2984
        %v3042 = vadd.f32 %v2741, %v2987
        %v3043 = vadd.f32 %v2744, %v2990
        %v3044 = vadd.f32 %v2747, %v2993
        %v3045 = vadd.f32 %v2750, %v2996
        %v3046 = vadd.f32 %v2753, %v2999
        %v3047 = vadd.f32 %v2756, %v3002
        %v3048 = vadd.f32 %v2759, %v3005
        %v3049 = vadd.f32 %v2762, %v3008
        %v3050 = vadd.f32 %v2765, %v3011
        %v3051 = vadd.f32 %v2768, %v3014
        %v3052 = vadd.f32 %v2771, %v3017
        %v3053 = vadd.f32 %v2774, %v3020
        %v3054 = vld [vmem:[#allocation11] sm:$0x1]
        %v3056 = vperm.slane %v3054, 0
        %v3058 = vadd.f32 %v3022, %v3056
        %v3059 = vadd.f32 %v3023, %v3056
        %v3060 = vadd.f32 %v3024, %v3056
        %v3061 = vadd.f32 %v3025, %v3056
        %v3062 = vadd.f32 %v3026, %v3056
        %v3063 = vadd.f32 %v3027, %v3056
        %v3064 = vadd.f32 %v3028, %v3056
        %v3065 = vadd.f32 %v3029, %v3056
        %v3066 = vadd.f32 %v3030, %v3056
        %v3067 = vadd.f32 %v3031, %v3056
        %v3068 = vadd.f32 %v3032, %v3056
        %v3069 = vadd.f32 %v3033, %v3056
        %v3070 = vadd.f32 %v3034, %v3056
        %v3071 = vadd.f32 %v3035, %v3056
        %v3072 = vadd.f32 %v3036, %v3056
        %v3073 = vadd.f32 %v3037, %v3056
        %v3074 = vadd.f32 %v3038, %v3056
        %v3075 = vadd.f32 %v3039, %v3056
        %v3076 = vadd.f32 %v3040, %v3056
        %v3077 = vadd.f32 %v3041, %v3056
        %v3078 = vadd.f32 %v3042, %v3056
        %v3079 = vadd.f32 %v3043, %v3056
        %v3080 = vadd.f32 %v3044, %v3056
        %v3081 = vadd.f32 %v3045, %v3056
        %v3082 = vadd.f32 %v3046, %v3056
        %v3083 = vadd.f32 %v3047, %v3056
        %v3084 = vadd.f32 %v3048, %v3056
        %v3085 = vadd.f32 %v3049, %v3056
        %v3086 = vadd.f32 %v3050, %v3056
        %v3087 = vadd.f32 %v3051, %v3056
        %v3088 = vadd.f32 %v3052, %v3056
        %v3089 = vadd.f32 %v3053, %v3056
        %v3090 = vmax.f32 %v3058, 0.0
        %v3091 = vmax.f32 %v3059, 0.0
        %v3092 = vmax.f32 %v3060, 0.0
        %v3093 = vmax.f32 %v3061, 0.0
        %v3094 = vmax.f32 %v3062, 0.0
        %v3095 = vmax.f32 %v3063, 0.0
        %v3096 = vmax.f32 %v3064, 0.0
        %v3097 = vmax.f32 %v3065, 0.0
        %v3098 = vmax.f32 %v3066, 0.0
        %v3099 = vmax.f32 %v3067, 0.0
        %v3100 = vmax.f32 %v3068, 0.0
        %v3101 = vmax.f32 %v3069, 0.0
        %v3102 = vmax.f32 %v3070, 0.0
        %v3103 = vmax.f32 %v3071, 0.0
        %v3104 = vmax.f32 %v3072, 0.0
        %v3105 = vmax.f32 %v3073, 0.0
        %v3106 = vmax.f32 %v3074, 0.0
        %v3107 = vmax.f32 %v3075, 0.0
        %v3108 = vmax.f32 %v3076, 0.0
        %v3109 = vmax.f32 %v3077, 0.0
        %v3110 = vmax.f32 %v3078, 0.0
        %v3111 = vmax.f32 %v3079, 0.0
        %v3112 = vmax.f32 %v3080, 0.0
        %v3113 = vmax.f32 %v3081, 0.0
        %v3114 = vmax.f32 %v3082, 0.0
        %v3115 = vmax.f32 %v3083, 0.0
        %v3116 = vmax.f32 %v3084, 0.0
        %v3117 = vmax.f32 %v3085, 0.0
        %v3118 = vmax.f32 %v3086, 0.0
        %v3119 = vmax.f32 %v3087, 0.0
        %v3120 = vmax.f32 %v3088, 0.0
        %v3121 = vmax.f32 %v3089, 0.0
        %vm3122 = vcmask 523264
        %3123 = vst.msk [vmem:[#allocation5] sm:$0xff] %vm3122, %v3090
        %3124 = vst.msk [vmem:[#allocation5 + $0x8] sm:$0xff] %vm3122, %v3091
        %3125 = vst.msk [vmem:[#allocation5 + $0x10] sm:$0xff] %vm3122, %v3092
        %3126 = vst.msk [vmem:[#allocation5 + $0x18] sm:$0xff] %vm3122, %v3093
        %3127 = vst.msk [vmem:[#allocation5 + $0x20] sm:$0xff] %vm3122, %v3094
        %3128 = vst.msk [vmem:[#allocation5 + $0x28] sm:$0xff] %vm3122, %v3095
        %3129 = vst.msk [vmem:[#allocation5 + $0x30] sm:$0xff] %vm3122, %v3096
        %3130 = vst.msk [vmem:[#allocation5 + $0x38] sm:$0xff] %vm3122, %v3097
        %3131 = vst.msk [vmem:[#allocation5 + $0x40] sm:$0xff] %vm3122, %v3098
        %3132 = vst.msk [vmem:[#allocation5 + $0x48] sm:$0xff] %vm3122, %v3099
        %3133 = vst.msk [vmem:[#allocation5 + $0x50] sm:$0xff] %vm3122, %v3100
        %3134 = vst.msk [vmem:[#allocation5 + $0x58] sm:$0xff] %vm3122, %v3101
        %3135 = vst.msk [vmem:[#allocation5 + $0x60] sm:$0xff] %vm3122, %v3102
        %3136 = vst.msk [vmem:[#allocation5 + $0x68] sm:$0xff] %vm3122, %v3103
        %3137 = vst.msk [vmem:[#allocation5 + $0x70] sm:$0xff] %vm3122, %v3104
        %3138 = vst.msk [vmem:[#allocation5 + $0x78] sm:$0xff] %vm3122, %v3105
        %3139 = vst.msk [vmem:[#allocation5 + $0x80] sm:$0xff] %vm3122, %v3106
        %3140 = vst.msk [vmem:[#allocation5 + $0x88] sm:$0xff] %vm3122, %v3107
        %3141 = vst.msk [vmem:[#allocation5 + $0x90] sm:$0xff] %vm3122, %v3108
        %3142 = vst.msk [vmem:[#allocation5 + $0x98] sm:$0xff] %vm3122, %v3109
        %3143 = vst.msk [vmem:[#allocation5 + $0xa0] sm:$0xff] %vm3122, %v3110
        %3144 = vst.msk [vmem:[#allocation5 + $0xa8] sm:$0xff] %vm3122, %v3111
        %3145 = vst.msk [vmem:[#allocation5 + $0xb0] sm:$0xff] %vm3122, %v3112
        %3146 = vst.msk [vmem:[#allocation5 + $0xb8] sm:$0xff] %vm3122, %v3113
        %3147 = vst.msk [vmem:[#allocation5 + $0xc0] sm:$0xff] %vm3122, %v3114
        %3148 = vst.msk [vmem:[#allocation5 + $0xc8] sm:$0xff] %vm3122, %v3115
        %3149 = vst.msk [vmem:[#allocation5 + $0xd0] sm:$0xff] %vm3122, %v3116
        %3150 = vst.msk [vmem:[#allocation5 + $0xd8] sm:$0xff] %vm3122, %v3117
        %3151 = vst.msk [vmem:[#allocation5 + $0xe0] sm:$0xff] %vm3122, %v3118
        %3152 = vst.msk [vmem:[#allocation5 + $0xe8] sm:$0xff] %vm3122, %v3119
        %3153 = vst.msk [vmem:[#allocation5 + $0xf0] sm:$0xff] %vm3122, %v3120
        %3154 = vst.msk [vmem:[#allocation5 + $0xf8] sm:$0xff] %vm3122, %v3121
        %v3155 = vld [vmem:[#allocation5] ss:$2 sm:$0xff]
        %s3156 = scalar_lea.vmem [#allocation5], 16
        %v3157 = vld [vmem:[%s3156] ss:$2 sm:$0xff]
        %s3158 = scalar_lea.vmem [#allocation5], 32
        %v3159 = vld [vmem:[%s3158] ss:$2 sm:$0xff]
        %s3160 = scalar_lea.vmem [#allocation5], 48
        %v3161 = vld [vmem:[%s3160] ss:$2 sm:$0xff]
        %s3162 = scalar_lea.vmem [#allocation5], 64
        %v3163 = vld [vmem:[%s3162] ss:$2 sm:$0xff]
        %s3164 = scalar_lea.vmem [#allocation5], 80
        %v3165 = vld [vmem:[%s3164] ss:$2 sm:$0xff]
        %s3166 = scalar_lea.vmem [#allocation5], 96
        %v3167 = vld [vmem:[%s3166] ss:$2 sm:$0xff]
        %s3168 = scalar_lea.vmem [#allocation5], 112
        %v3169 = vld [vmem:[%s3168] ss:$2 sm:$0xff]
        %s3170 = scalar_lea.vmem [#allocation5], 128
        %v3171 = vld [vmem:[%s3170] ss:$2 sm:$0xff]
        %s3172 = scalar_lea.vmem [#allocation5], 144
        %v3173 = vld [vmem:[%s3172] ss:$2 sm:$0xff]
        %s3174 = scalar_lea.vmem [#allocation5], 160
        %v3175 = vld [vmem:[%s3174] ss:$2 sm:$0xff]
        %s3176 = scalar_lea.vmem [#allocation5], 176
        %v3177 = vld [vmem:[%s3176] ss:$2 sm:$0xff]
        %s3178 = scalar_lea.vmem [#allocation5], 192
        %v3179 = vld [vmem:[%s3178] ss:$2 sm:$0xff]
        %s3180 = scalar_lea.vmem [#allocation5], 208
        %v3181 = vld [vmem:[%s3180] ss:$2 sm:$0xff]
        %s3182 = scalar_lea.vmem [#allocation5], 224
        %v3183 = vld [vmem:[%s3182] ss:$2 sm:$0xff]
        %s3184 = scalar_lea.vmem [#allocation5], 240
        %v3185 = vld [vmem:[%s3184] ss:$2 sm:$0xff]
        %s3186 = scalar_lea.vmem [#allocation5], 1
        %v3187 = vld [vmem:[%s3186] ss:$2 sm:$0xff]
        %s3188 = scalar_lea.vmem [#allocation5], 17
        %v3189 = vld [vmem:[%s3188] ss:$2 sm:$0xff]
        %s3190 = scalar_lea.vmem [#allocation5], 33
        %v3191 = vld [vmem:[%s3190] ss:$2 sm:$0xff]
        %s3192 = scalar_lea.vmem [#allocation5], 49
        %v3193 = vld [vmem:[%s3192] ss:$2 sm:$0xff]
        %s3194 = scalar_lea.vmem [#allocation5], 65
        %v3195 = vld [vmem:[%s3194] ss:$2 sm:$0xff]
        %s3196 = scalar_lea.vmem [#allocation5], 81
        %v3197 = vld [vmem:[%s3196] ss:$2 sm:$0xff]
        %s3198 = scalar_lea.vmem [#allocation5], 97
        %v3199 = vld [vmem:[%s3198] ss:$2 sm:$0xff]
        %s3200 = scalar_lea.vmem [#allocation5], 113
        %v3201 = vld [vmem:[%s3200] ss:$2 sm:$0xff]
        %s3202 = scalar_lea.vmem [#allocation5], 129
        %v3203 = vld [vmem:[%s3202] ss:$2 sm:$0xff]
        %s3204 = scalar_lea.vmem [#allocation5], 145
        %v3205 = vld [vmem:[%s3204] ss:$2 sm:$0xff]
        %s3206 = scalar_lea.vmem [#allocation5], 161
        %v3207 = vld [vmem:[%s3206] ss:$2 sm:$0xff]
        %s3208 = scalar_lea.vmem [#allocation5], 177
        %v3209 = vld [vmem:[%s3208] ss:$2 sm:$0xff]
        %s3210 = scalar_lea.vmem [#allocation5], 193
        %v3211 = vld [vmem:[%s3210] ss:$2 sm:$0xff]
        %s3212 = scalar_lea.vmem [#allocation5], 209
        %v3213 = vld [vmem:[%s3212] ss:$2 sm:$0xff]
        %s3214 = scalar_lea.vmem [#allocation5], 225
        %v3215 = vld [vmem:[%s3214] ss:$2 sm:$0xff]
        %s3216 = scalar_lea.vmem [#allocation5], 241
        %v3217 = vld [vmem:[%s3216] ss:$2 sm:$0xff]
        %v3218 = vmax.f32 %v3155, %v3187
        %v3219 = vmax.f32 %v3157, %v3189
        %v3220 = vmax.f32 %v3159, %v3191
        %v3221 = vmax.f32 %v3161, %v3193
        %v3222 = vmax.f32 %v3163, %v3195
        %v3223 = vmax.f32 %v3165, %v3197
        %v3224 = vmax.f32 %v3167, %v3199
        %v3225 = vmax.f32 %v3169, %v3201
        %v3226 = vmax.f32 %v3171, %v3203
        %v3227 = vmax.f32 %v3173, %v3205
        %v3228 = vmax.f32 %v3175, %v3207
        %v3229 = vmax.f32 %v3177, %v3209
        %v3230 = vmax.f32 %v3179, %v3211
        %v3231 = vmax.f32 %v3181, %v3213
        %v3232 = vmax.f32 %v3183, %v3215
        %v3233 = vmax.f32 %v3185, %v3217
        %3234 = vst.msk [vmem:[%s287] sm:$0xff] %vm3122, %v3218
        %3235 = vst.msk [vmem:[%s287 + $0x8] sm:$0xff] %vm3122, %v3219
        %3236 = vst.msk [vmem:[%s287 + $0x10] sm:$0xff] %vm3122, %v3220
        %3237 = vst.msk [vmem:[%s287 + $0x18] sm:$0xff] %vm3122, %v3221
        %3238 = vst.msk [vmem:[%s287 + $0x20] sm:$0xff] %vm3122, %v3222
        %3239 = vst.msk [vmem:[%s287 + $0x28] sm:$0xff] %vm3122, %v3223
        %3240 = vst.msk [vmem:[%s287 + $0x30] sm:$0xff] %vm3122, %v3224
        %3241 = vst.msk [vmem:[%s287 + $0x38] sm:$0xff] %vm3122, %v3225
        %3242 = vst.msk [vmem:[%s287 + $0x40] sm:$0xff] %vm3122, %v3226
        %3243 = vst.msk [vmem:[%s287 + $0x48] sm:$0xff] %vm3122, %v3227
        %3244 = vst.msk [vmem:[%s287 + $0x50] sm:$0xff] %vm3122, %v3228
        %3245 = vst.msk [vmem:[%s287 + $0x58] sm:$0xff] %vm3122, %v3229
        %3246 = vst.msk [vmem:[%s287 + $0x60] sm:$0xff] %vm3122, %v3230
        %3247 = vst.msk [vmem:[%s287 + $0x68] sm:$0xff] %vm3122, %v3231
        %3248 = vst.msk [vmem:[%s287 + $0x70] sm:$0xff] %vm3122, %v3232
        %3249 = vst.msk [vmem:[%s287 + $0x78] sm:$0xff] %vm3122, %v3233
        %p3250 = scmp.lt.s32.totalorder %s19, 1
        %s3251 = scalar_select %p3250, %s19, 1
        %s3252 = smul.addr %s3251, 16
        %s3253 = smul.addr %s3252, 8
        %s3254 = scalar_lea.vmem %s5, %s3253
        // Predicated region
        $region57: #{simple_cnn_forward.2} parent=39 // pred_check
          %p3255 = pneg %p147
        $region58: #{simple_cnn_forward.2} parent=39 // pred_check_branch
          %3257 = sbr.rel (%p3255) target = $region60
        $region59: #{simple_cnn_forward.2} parent=39 // pred_region
          _
        $region60: #{simple_cnn_forward.2} parent=39 // pred_fallthru
          _
      $region40: #{simple_cnn_forward.2} parent=5 // pred_fallthru
        _
      %p3258 = scmp.le.s32.totalorder 2, %s14
      // Predicated region
      $region61: #{simple_cnn_forward.2} parent=5 // pred_check
        %p3259 = pneg %p3258
      $region62: #{simple_cnn_forward.2} parent=5 // pred_check_branch
        %3261 = sbr.rel (%p3259) target = $region64
      $region63: #{simple_cnn_forward.2} parent=5 // pred_region
        %s3262 = ssub.s32 %s14, 2
        // Predicated region
        $region65: #{simple_cnn_forward.2} parent=63 // pred_check
          %p3263 = pneg %p153
        $region66: #{simple_cnn_forward.2} parent=63 // pred_check_branch
          %3265 = sbr.rel (%p3263) target = $region68
        $region67: #{simple_cnn_forward.2} parent=63 // pred_region
          %p3266 = scmp.lt.s32.totalorder %s20, 1
          %s3267 = scalar_select %p3266, %s20, 1
          %s3268 = smul.addr %s3267, 16
          %s3269 = smul.addr %s3268, 8
          %s3270 = scalar_lea.vmem %s5, %s3269
        $region68: #{simple_cnn_forward.2} parent=63 // pred_fallthru
          _
      $region64: #{simple_cnn_forward.2} parent=5 // pred_fallthru
        _
    $region6: #{simple_cnn_forward.2} parent=1 // loop_footer
      %s18 = sadd.s32 1, %s14
    $region7: #{simple_cnn_forward.2} parent=1 // loop_footer_branch
      %13 = sbr.rel target = $region3
    $region8: #{simple_cnn_forward.2} parent=1 // loop_exit
      _
    %3271 = vsyncpa [#allocation7], 1
    %s3272 = scalar_lea.sflag [#allocation7], 1
    %3273 = vsyncpa %s3272, 1
    %3274 = vsyncpa [#allocation9], 1
    %3275 = vsyncpa [#allocation12], 1

</llo_original>
